<compile_context>
chip_gen: v5e
topology: v5e:2x2
jax: 0.10.0
libtpu: 0.0.40
codegen_flags: <defaults>
</compile_context>

<pallas_src>
import functools

import numpy as np
import jax
import jax.numpy as jnp
from jax import lax
from jax.experimental import pallas as pl
from jax.experimental.pallas import tpu as pltpu


def _round_up(x, m):
    return ((x + m - 1) // m) * m


def _bilstm_recurrence_kernel(gx_ref, len_ref, whf_ref, whb_ref,
                              out_ref, hn_ref, *, unroll):
    """Fused fwd/bwd LSTM recurrence over one batch tile.

    gx_ref  : [L, Bt, 8*Hp]  precomputed x @ W_ih + b for both directions
              (cols [0,4Hp) = forward gates, [4Hp,8Hp) = backward gates,
              PyTorch gate order i,f,g,o, each gate padded to Hp lanes)
    len_ref : [Bt, 1]        int32 sequence lengths (0 for padded batch rows)
    whf_ref : [Hp, 4*Hp]     forward  W_hh^T (zero-padded)
    whb_ref : [Hp, 4*Hp]     backward W_hh^T (zero-padded)
    out_ref : [L, Bt, 2*Hp]  [..., :Hp] = fwd h_t, [..., Hp:] = bwd h_t
    hn_ref  : [Bt, 2*Hp]     final hidden states [fwd | bwd]
    """
    L, Bt, _ = gx_ref.shape
    Hp = whf_ref.shape[0]
    H4 = 4 * Hp

    whf = whf_ref[...]
    whb = whb_ref[...]
    lens = len_ref[...]                      # [Bt, 1] int32, loaded once

    def gates_to_hc(g, c):
        i_g = jax.nn.sigmoid(g[:, 0 * Hp:1 * Hp])
        f_g = jax.nn.sigmoid(g[:, 1 * Hp:2 * Hp])
        g_g = jnp.tanh(g[:, 2 * Hp:3 * Hp])
        o_g = jax.nn.sigmoid(g[:, 3 * Hp:4 * Hp])
        c_new = f_g * c + i_g * g_g
        h_new = o_g * jnp.tanh(c_new)
        return h_new, c_new

    zeros = jnp.zeros((Bt, Hp), jnp.float32)

    def body(s, carry):
        h_f, c_f, h_b, c_b = carry
        t_b = L - 1 - s

        # Per-step validity masks: cheap scalar-vs-vreg compares (no VMEM load).
        m_f = lens > s                       # [Bt, 1] bool
        m_b = lens > t_b

        # The two directions are independent: the recurrent matmuls issue
        # back-to-back on the MXU and one direction's gate math (VPU/EUP)
        # hides behind the other's matmul.
        g_f = gx_ref[s, :, 0:H4] + jnp.dot(
            h_f, whf, preferred_element_type=jnp.float32)
        g_b = gx_ref[t_b, :, H4:2 * H4] + jnp.dot(
            h_b, whb, preferred_element_type=jnp.float32)

        h_nf, c_nf = gates_to_hc(g_f, c_f)
        h_nb, c_nb = gates_to_hc(g_b, c_b)

        # Packed-sequence semantics: padded steps emit 0 and freeze h/c.
        # Both stores are 128-lane aligned slices of the lane-dense output.
        out_ref[s, :, 0:Hp] = jnp.where(m_f, h_nf, 0.0)
        out_ref[t_b, :, Hp:2 * Hp] = jnp.where(m_b, h_nb, 0.0)

        h_f = jnp.where(m_f, h_nf, h_f)
        c_f = jnp.where(m_f, c_nf, c_f)
        h_b = jnp.where(m_b, h_nb, h_b)
        c_b = jnp.where(m_b, c_nb, c_b)
        return (h_f, c_f, h_b, c_b)

    h_f, _, h_b, _ = lax.fori_loop(0, L, body, (zeros, zeros, zeros, zeros),
                                   unroll=unroll)

    hn_ref[:, 0:Hp] = h_f            # forward  h_n (h at t = len-1)
    hn_ref[:, Hp:2 * Hp] = h_b       # backward h_n (h at t = 0)


def _pad_gate_cols(w, H, H_pad):
    """[in, 4*H] -> [in, 4*H_pad]; gate k's real cols land in [k*H_pad, k*H_pad+H)."""
    parts = []
    for k in range(4):
        parts.append(jnp.pad(w[:, k * H:(k + 1) * H], ((0, 0), (0, H_pad - H))))
    return jnp.concatenate(parts, axis=1)


def init_params(key, vocab_size, emb_dim, enc_dim, forget_gate_bias=1.0):
    H = enc_dim // 2
    fan_avg = (H * 4 + (H + emb_dim)) / 2.0
    bound = float(np.sqrt(3.0 / fan_avg))
    ks = jax.random.split(key, 5)
    u = lambda k, shape: jax.random.uniform(k, shape, jnp.float32, -bound, bound)
    emb = jax.random.normal(ks[0], (vocab_size, emb_dim), jnp.float32) * 0.1
    w_ih_f = u(ks[1], (4 * H, emb_dim))
    w_hh_f = u(ks[2], (4 * H, H))
    w_ih_b = u(ks[3], (4 * H, emb_dim))
    w_hh_b = u(ks[4], (4 * H, H))
    # bias_ih has forget-gate slice = forget_gate_bias, bias_hh is zero
    b = jnp.zeros((4 * H,), jnp.float32).at[H:2 * H].set(forget_gate_bias)
    return {
        "emb": emb,
        "w_ih_f_T": w_ih_f.T, "w_hh_f_T": w_hh_f.T, "b_f": b.reshape(1, 4 * H),
        "w_ih_b_T": w_ih_b.T, "w_hh_b_T": w_hh_b.T, "b_b": b.reshape(1, 4 * H),
    }


@jax.jit
def encoder_forward(qIndices, questionLengths, params):
    E = params["emb"].shape[1]
    H = params["w_hh_f_T"].shape[0]
    B, L = qIndices.shape

    # TPU-friendly padded sizes: gates/hidden -> multiples of 128 lanes,
    # batch rows -> multiples of 8 (f32 sublane).  Tile capped at 64 rows so
    # the four [Bt, Hp] recurrence carries stay register-resident.
    H_pad = _round_up(H, 128)
    B_TILE = min(_round_up(B, 8), 64)
    B_pad = _round_up(B, B_TILE)

    # ---- embedding lookup (index 0 = zero padding row) ----------------------
    emb_full = jnp.concatenate(
        [jnp.zeros((1, E), jnp.float32), params["emb"]], axis=0)
    questions = jnp.take(emb_full, qIndices, axis=0)            # [B, L, E]
    # enc_input_drop / question_drop: identity (eval mode, deterministic)

    # ---- time-major + batch padding -----------------------------------------
    q_tm = jnp.transpose(questions, (1, 0, 2))                  # [L, B, E]
    q_tm = jnp.pad(q_tm, ((0, 0), (0, B_pad - B), (0, 0)))
    lengths = jnp.pad(questionLengths.astype(jnp.int32), (0, B_pad - B))
    lengths2d = lengths.reshape(B_pad, 1)                       # [B_pad, 1]

    # ---- zero-pad gate-structured weights (padded lanes stay exactly 0) -----
    w_ih_f = _pad_gate_cols(params["w_ih_f_T"], H, H_pad)       # [E, 4*H_pad]
    w_ih_b = _pad_gate_cols(params["w_ih_b_T"], H, H_pad)
    b_f = _pad_gate_cols(params["b_f"], H, H_pad)               # [1, 4*H_pad]
    b_b = _pad_gate_cols(params["b_b"], H, H_pad)
    w_hh_f = jnp.pad(_pad_gate_cols(params["w_hh_f_T"], H, H_pad),
                     ((0, H_pad - H), (0, 0)))                  # [H_pad, 4*H_pad]
    w_hh_b = jnp.pad(_pad_gate_cols(params["w_hh_b_T"], H, H_pad),
                     ((0, H_pad - H), (0, 0)))

    # ---- hoisted input projection: one big MXU matmul for all timesteps and
    # both directions, biases folded in (only h @ W_hh stays in the kernel) ---
    w_ih_cat = jnp.concatenate([w_ih_f, w_ih_b], axis=1)        # [E, 8*H_pad]
    b_cat = jnp.concatenate([b_f, b_b], axis=1)                 # [1, 8*H_pad]
    gx = jnp.dot(q_tm.reshape(L * B_pad, E), w_ih_cat,
                 preferred_element_type=jnp.float32,
                 precision=lax.Precision.HIGHEST) + b_cat
    gx = gx.reshape(L, B_pad, 8 * H_pad)
    # TODO(synk): at production sizes cast q/weights to bf16 for 2x MXU rate.

    # ---- Pallas recurrence kernel, gridded over independent batch tiles -----
    kernel = functools.partial(_bilstm_recurrence_kernel,
                               unroll=True if L <= 32 else 8)
    out_pad, hn_pad = pl.pallas_call(
        kernel,
        out_shape=(
            jax.ShapeDtypeStruct((L, B_pad, 2 * H_pad), jnp.float32),
            jax.ShapeDtypeStruct((B_pad, 2 * H_pad), jnp.float32),
        ),
        grid_spec=pltpu.PrefetchScalarGridSpec(
            num_scalar_prefetch=0,
            grid=(B_pad // B_TILE,),
            in_specs=[
                pl.BlockSpec((L, B_TILE, 8 * H_pad), lambda b: (0, b, 0)),
                pl.BlockSpec((B_TILE, 1), lambda b: (b, 0)),
                pl.BlockSpec((H_pad, 4 * H_pad), lambda b: (0, 0)),
                pl.BlockSpec((H_pad, 4 * H_pad), lambda b: (0, 0)),
            ],
            out_specs=(
                pl.BlockSpec((L, B_TILE, 2 * H_pad), lambda b: (0, b, 0)),
                pl.BlockSpec((B_TILE, 2 * H_pad), lambda b: (b, 0)),
            ),
        ),
        compiler_params=pltpu.CompilerParams(
            dimension_semantics=("parallel",),   # batch tiles -> 2 TCs on v7x
            vmem_limit_bytes=32 * 1024 * 1024,
        ),
    )(gx, lengths2d, w_hh_f, w_hh_b)

    # ---- strip padding, back to batch-first PyTorch layout -------------------
    ctx = jnp.concatenate(
        [out_pad[:, :B, 0:H], out_pad[:, :B, H_pad:H_pad + H]], axis=-1)
    questionCntxWords = jnp.transpose(ctx, (1, 0, 2))           # [B, L, 2H]
    vecQuestions = jnp.concatenate(
        [hn_pad[:B, 0:H], hn_pad[:B, H_pad:H_pad + H]], axis=-1)  # [B, 2H]
    return questionCntxWords, vecQuestions


def _reference(qIndices, lengths, params):
    """Pure numpy reference (packed bi-LSTM semantics)."""
    emb = np.asarray(params["emb"])
    E = emb.shape[1]
    emb_full = np.concatenate([np.zeros((1, E), np.float32), emb], axis=0)
    q = emb_full[np.asarray(qIndices)]                          # [B, L, E]
    wif = np.asarray(params["w_ih_f_T"]); whf = np.asarray(params["w_hh_f_T"])
    wib = np.asarray(params["w_ih_b_T"]); whb = np.asarray(params["w_hh_b_T"])
    bf = np.asarray(params["b_f"])[0]; bb = np.asarray(params["b_b"])[0]
    B, L, _ = q.shape
    H = whf.shape[0]
    sig = lambda x: 1.0 / (1.0 + np.exp(-x))
    out = np.zeros((B, L, 2 * H), np.float32)
    hn = np.zeros((B, 2 * H), np.float32)

    def step(x, h, c, w_ih, w_hh, b):
        g = x @ w_ih + h @ w_hh + b
        i, f, gg, o = sig(g[:H]), sig(g[H:2 * H]), np.tanh(g[2 * H:3 * H]), sig(g[3 * H:])
        c = f * c + i * gg
        h = o * np.tanh(c)
        return h, c

    for b_i in range(B):
        n = int(lengths[b_i])
        h = np.zeros(H, np.float32); c = np.zeros(H, np.float32)
        for t in range(n):
            h, c = step(q[b_i, t], h, c, wif, whf, bf)
            out[b_i, t, :H] = h
        hn[b_i, :H] = h
        h = np.zeros(H, np.float32); c = np.zeros(H, np.float32)
        for t in range(n - 1, -1, -1):
            h, c = step(q[b_i, t], h, c, wib, whb, bb)
            out[b_i, t, H:] = h
        hn[b_i, H:] = h
    return out, hn


if __name__ == "__main__":
    B, L = 2, 8
    vocab, emb_dim, enc_dim = 20, 32, 32

    params = init_params(jax.random.PRNGKey(0), vocab, emb_dim, enc_dim)

    kq, _ = jax.random.split(jax.random.PRNGKey(1))
    qIndices = jax.random.randint(kq, (B, L), 1, vocab + 1)     # 0 reserved for pad
    questionLengths = jnp.array([8, 5], dtype=jnp.int32)        # sorted descending
    pad_mask = jnp.arange(L)[None, :] < questionLengths[:, None]
    qIndices = jnp.where(pad_mask, qIndices, 0)

    ctx, vec = encoder_forward(qIndices, questionLengths, params)
    jax.block_until_ready((ctx, vec))

    ref_ctx, ref_vec = _reference(qIndices, np.asarray(questionLengths), params)
    np.testing.assert_allclose(np.asarray(ctx), ref_ctx, rtol=1e-4, atol=1e-4)
    np.testing.assert_allclose(np.asarray(vec), ref_vec, rtol=1e-4, atol=1e-4)

    print("KERNEL_OK")
</pallas_src>

<mosaic_0001>
module attributes {stable_mosaic.version = 11 : i64} {
  func.func @_bilstm_recurrence_kernel(%arg0: i32, %arg1: memref<8x8x1024xf32, #tpu.memory_space<vmem>>, %arg2: memref<8x1xi32, #tpu.memory_space<vmem>>, %arg3: memref<128x512xf32, #tpu.memory_space<vmem>>, %arg4: memref<128x512xf32, #tpu.memory_space<vmem>>, %arg5: memref<8x8x256xf32, #tpu.memory_space<vmem>>, %arg6: memref<8x256xf32, #tpu.memory_space<vmem>>) attributes {dimension_semantics = [#tpu.dimension_semantics<parallel>], iteration_bounds = array<i64: 1>, scalar_prefetch = 0 : i64, scratch_operands = 0 : i64, tpu.core_type = #tpu.core_type<tc>, window_params = [{transform_indices = @transform_0, window_bounds = array<i64: 8, 8, 1024>}, {transform_indices = @transform_1, window_bounds = array<i64: 8, 1>}, {pipeline_mode = #tpu.pipeline_mode<synchronous>, transform_indices = @transform_2, window_bounds = array<i64: 128, 512>}, {pipeline_mode = #tpu.pipeline_mode<synchronous>, transform_indices = @transform_3, window_bounds = array<i64: 128, 512>}, {transform_indices = @transform_4, window_bounds = array<i64: 8, 8, 256>}, {transform_indices = @transform_5, window_bounds = array<i64: 8, 256>}]} {
    %c0 = arith.constant 0 : index
    %c0_0 = arith.constant 0 : index
    %0 = vector.load %arg3[%c0, %c0_0] : memref<128x512xf32, #tpu.memory_space<vmem>>, vector<128x512xf32>
    %c0_1 = arith.constant 0 : index
    %c0_2 = arith.constant 0 : index
    %1 = vector.load %arg4[%c0_1, %c0_2] : memref<128x512xf32, #tpu.memory_space<vmem>>, vector<128x512xf32>
    %c0_3 = arith.constant 0 : index
    %c0_4 = arith.constant 0 : index
    %2 = vector.load %arg2[%c0_3, %c0_4] : memref<8x1xi32, #tpu.memory_space<vmem>>, vector<8x1xi32>
    %cst = arith.constant 0.000000e+00 : f32
    %3 = vector.broadcast %cst : f32 to vector<8x128xf32>
    %c0_i32 = arith.constant 0 : i32
    %c7_i32 = arith.constant 7 : i32
    %4 = arith.subi %c7_i32, %c0_i32 : i32
    %5 = vector.broadcast %c0_i32 : i32 to vector<8x1xi32>
    %6 = arith.cmpi sgt, %2, %5 : vector<8x1xi32>
    %7 = vector.broadcast %4 : i32 to vector<8x1xi32>
    %8 = arith.cmpi sgt, %2, %7 : vector<8x1xi32>
    %9 = arith.index_cast %c0_i32 : i32 to index
    %c0_5 = arith.constant 0 : index
    %c0_6 = arith.constant 0 : index
    %10 = vector.load %arg1[%9, %c0_5, %c0_6] : memref<8x8x1024xf32, #tpu.memory_space<vmem>>, vector<1x8x512xf32>
    %11 = vector.shape_cast %10 : vector<1x8x512xf32> to vector<8x512xf32>
    %cst_7 = arith.constant dense<0.000000e+00> : vector<8x512xf32>
    %12 = tpu.matmul %3, %0, %cst_7 {dimension_numbers = #tpu.dot_dimension_numbers<[1], [0], [0], [1], [0, 0, 1, 1], [], []>} : vector<8x128xf32>, vector<128x512xf32>, vector<8x512xf32> -> vector<8x512xf32>
    %13 = arith.addf %11, %12 : vector<8x512xf32>
    %14 = arith.index_cast %4 : i32 to index
    %c0_8 = arith.constant 0 : index
    %c512 = arith.constant 512 : index
    %15 = vector.load %arg1[%14, %c0_8, %c512] : memref<8x8x1024xf32, #tpu.memory_space<vmem>>, vector<1x8x512xf32>
    %16 = vector.shape_cast %15 : vector<1x8x512xf32> to vector<8x512xf32>
    %cst_9 = arith.constant dense<0.000000e+00> : vector<8x512xf32>
    %17 = tpu.matmul %3, %1, %cst_9 {dimension_numbers = #tpu.dot_dimension_numbers<[1], [0], [0], [1], [0, 0, 1, 1], [], []>} : vector<8x128xf32>, vector<128x512xf32>, vector<8x512xf32> -> vector<8x512xf32>
    %18 = arith.addf %16, %17 : vector<8x512xf32>
    %19 = vector.extract_strided_slice %13 {offsets = [0, 0], sizes = [8, 128], strides = [1, 1]} : vector<8x512xf32> to vector<8x128xf32>
    %20 = arith.negf %19 : vector<8x128xf32>
    %21 = math.exp %20 : vector<8x128xf32>
    %cst_10 = arith.constant 1.000000e+00 : f32
    %22 = vector.broadcast %cst_10 : f32 to vector<8x128xf32>
    %23 = arith.addf %22, %21 : vector<8x128xf32>
    %24 = arith.divf %22, %23 : vector<8x128xf32>
    %25 = vector.extract_strided_slice %13 {offsets = [0, 128], sizes = [8, 128], strides = [1, 1]} : vector<8x512xf32> to vector<8x128xf32>
    %26 = arith.negf %25 : vector<8x128xf32>
    %27 = math.exp %26 : vector<8x128xf32>
    %cst_11 = arith.constant 1.000000e+00 : f32
    %28 = vector.broadcast %cst_11 : f32 to vector<8x128xf32>
    %29 = arith.addf %28, %27 : vector<8x128xf32>
    %30 = arith.divf %28, %29 : vector<8x128xf32>
    %31 = vector.extract_strided_slice %13 {offsets = [0, 256], sizes = [8, 128], strides = [1, 1]} : vector<8x512xf32> to vector<8x128xf32>
    %32 = math.tanh %31 : vector<8x128xf32>
    %33 = vector.extract_strided_slice %13 {offsets = [0, 384], sizes = [8, 128], strides = [1, 1]} : vector<8x512xf32> to vector<8x128xf32>
    %34 = arith.negf %33 : vector<8x128xf32>
    %35 = math.exp %34 : vector<8x128xf32>
    %cst_12 = arith.constant 1.000000e+00 : f32
    %36 = vector.broadcast %cst_12 : f32 to vector<8x128xf32>
    %37 = arith.addf %36, %35 : vector<8x128xf32>
    %38 = arith.divf %36, %37 : vector<8x128xf32>
    %39 = arith.mulf %30, %3 : vector<8x128xf32>
    %40 = arith.mulf %24, %32 : vector<8x128xf32>
    %41 = arith.addf %39, %40 : vector<8x128xf32>
    %42 = math.tanh %41 : vector<8x128xf32>
    %43 = arith.mulf %38, %42 : vector<8x128xf32>
    %44 = vector.extract_strided_slice %18 {offsets = [0, 0], sizes = [8, 128], strides = [1, 1]} : vector<8x512xf32> to vector<8x128xf32>
    %45 = arith.negf %44 : vector<8x128xf32>
    %46 = math.exp %45 : vector<8x128xf32>
    %cst_13 = arith.constant 1.000000e+00 : f32
    %47 = vector.broadcast %cst_13 : f32 to vector<8x128xf32>
    %48 = arith.addf %47, %46 : vector<8x128xf32>
    %49 = arith.divf %47, %48 : vector<8x128xf32>
    %50 = vector.extract_strided_slice %18 {offsets = [0, 128], sizes = [8, 128], strides = [1, 1]} : vector<8x512xf32> to vector<8x128xf32>
    %51 = arith.negf %50 : vector<8x128xf32>
    %52 = math.exp %51 : vector<8x128xf32>
    %cst_14 = arith.constant 1.000000e+00 : f32
    %53 = vector.broadcast %cst_14 : f32 to vector<8x128xf32>
    %54 = arith.addf %53, %52 : vector<8x128xf32>
    %55 = arith.divf %53, %54 : vector<8x128xf32>
    %56 = vector.extract_strided_slice %18 {offsets = [0, 256], sizes = [8, 128], strides = [1, 1]} : vector<8x512xf32> to vector<8x128xf32>
    %57 = math.tanh %56 : vector<8x128xf32>
    %58 = vector.extract_strided_slice %18 {offsets = [0, 384], sizes = [8, 128], strides = [1, 1]} : vector<8x512xf32> to vector<8x128xf32>
    %59 = arith.negf %58 : vector<8x128xf32>
    %60 = math.exp %59 : vector<8x128xf32>
    %cst_15 = arith.constant 1.000000e+00 : f32
    %61 = vector.broadcast %cst_15 : f32 to vector<8x128xf32>
    %62 = arith.addf %61, %60 : vector<8x128xf32>
    %63 = arith.divf %61, %62 : vector<8x128xf32>
    %64 = arith.mulf %55, %3 : vector<8x128xf32>
    %65 = arith.mulf %49, %57 : vector<8x128xf32>
    %66 = arith.addf %64, %65 : vector<8x128xf32>
    %67 = math.tanh %66 : vector<8x128xf32>
    %68 = arith.mulf %63, %67 : vector<8x128xf32>
    %cst_16 = arith.constant 0.000000e+00 : f32
    %69 = vector.shape_cast %6 : vector<8x1xi1> to vector<8x1xi1>
    %70 = vector.broadcast %69 : vector<8x1xi1> to vector<8x128xi1>
    %71 = vector.broadcast %cst_16 : f32 to vector<8x128xf32>
    %72 = arith.select %70, %43, %71 : vector<8x128xi1>, vector<8x128xf32>
    %73 = arith.index_cast %c0_i32 : i32 to index
    %c0_17 = arith.constant 0 : index
    %c0_18 = arith.constant 0 : index
    %74 = vector.load %arg5[%73, %c0_17, %c0_18] : memref<8x8x256xf32, #tpu.memory_space<vmem>>, vector<1x8x128xf32>
    %75 = vector.shape_cast %74 : vector<1x8x128xf32> to vector<8x128xf32>
    %76 = vector.shape_cast %72 : vector<8x128xf32> to vector<1x8x128xf32>
    tpu.vector_store %arg5[%73, %c0_17, %c0_18], %76 {strides = array<i32>} : memref<8x8x256xf32, #tpu.memory_space<vmem>>, vector<1x8x128xf32>,
    %cst_19 = arith.constant 0.000000e+00 : f32
    %77 = vector.shape_cast %8 : vector<8x1xi1> to vector<8x1xi1>
    %78 = vector.broadcast %77 : vector<8x1xi1> to vector<8x128xi1>
    %79 = vector.broadcast %cst_19 : f32 to vector<8x128xf32>
    %80 = arith.select %78, %68, %79 : vector<8x128xi1>, vector<8x128xf32>
    %81 = arith.index_cast %4 : i32 to index
    %c0_20 = arith.constant 0 : index
    %c128 = arith.constant 128 : index
    %82 = vector.load %arg5[%81, %c0_20, %c128] : memref<8x8x256xf32, #tpu.memory_space<vmem>>, vector<1x8x128xf32>
    %83 = vector.shape_cast %82 : vector<1x8x128xf32> to vector<8x128xf32>
    %84 = vector.shape_cast %80 : vector<8x128xf32> to vector<1x8x128xf32>
    tpu.vector_store %arg5[%81, %c0_20, %c128], %84 {strides = array<i32>} : memref<8x8x256xf32, #tpu.memory_space<vmem>>, vector<1x8x128xf32>,
    %85 = vector.shape_cast %6 : vector<8x1xi1> to vector<8x1xi1>
    %86 = vector.broadcast %85 : vector<8x1xi1> to vector<8x128xi1>
    %87 = arith.select %86, %43, %3 : vector<8x128xi1>, vector<8x128xf32>
    %88 = vector.shape_cast %6 : vector<8x1xi1> to vector<8x1xi1>
    %89 = vector.broadcast %88 : vector<8x1xi1> to vector<8x128xi1>
    %90 = arith.select %89, %41, %3 : vector<8x128xi1>, vector<8x128xf32>
    %91 = vector.shape_cast %8 : vector<8x1xi1> to vector<8x1xi1>
    %92 = vector.broadcast %91 : vector<8x1xi1> to vector<8x128xi1>
    %93 = arith.select %92, %68, %3 : vector<8x128xi1>, vector<8x128xf32>
    %94 = vector.shape_cast %8 : vector<8x1xi1> to vector<8x1xi1>
    %95 = vector.broadcast %94 : vector<8x1xi1> to vector<8x128xi1>
    %96 = arith.select %95, %66, %3 : vector<8x128xi1>, vector<8x128xf32>
    %c1_i32 = arith.constant 1 : i32
    %c7_i32_21 = arith.constant 7 : i32
    %97 = arith.subi %c7_i32_21, %c1_i32 : i32
    %98 = vector.broadcast %c1_i32 : i32 to vector<8x1xi32>
    %99 = arith.cmpi sgt, %2, %98 : vector<8x1xi32>
    %100 = vector.broadcast %97 : i32 to vector<8x1xi32>
    %101 = arith.cmpi sgt, %2, %100 : vector<8x1xi32>
    %102 = arith.index_cast %c1_i32 : i32 to index
    %c0_22 = arith.constant 0 : index
    %c0_23 = arith.constant 0 : index
    %103 = vector.load %arg1[%102, %c0_22, %c0_23] : memref<8x8x1024xf32, #tpu.memory_space<vmem>>, vector<1x8x512xf32>
    %104 = vector.shape_cast %103 : vector<1x8x512xf32> to vector<8x512xf32>
    %cst_24 = arith.constant dense<0.000000e+00> : vector<8x512xf32>
    %105 = tpu.matmul %87, %0, %cst_24 {dimension_numbers = #tpu.dot_dimension_numbers<[1], [0], [0], [1], [0, 0, 1, 1], [], []>} : vector<8x128xf32>, vector<128x512xf32>, vector<8x512xf32> -> vector<8x512xf32>
    %106 = arith.addf %104, %105 : vector<8x512xf32>
    %107 = arith.index_cast %97 : i32 to index
    %c0_25 = arith.constant 0 : index
    %c512_26 = arith.constant 512 : index
    %108 = vector.load %arg1[%107, %c0_25, %c512_26] : memref<8x8x1024xf32, #tpu.memory_space<vmem>>, vector<1x8x512xf32>
    %109 = vector.shape_cast %108 : vector<1x8x512xf32> to vector<8x512xf32>
    %cst_27 = arith.constant dense<0.000000e+00> : vector<8x512xf32>
    %110 = tpu.matmul %93, %1, %cst_27 {dimension_numbers = #tpu.dot_dimension_numbers<[1], [0], [0], [1], [0, 0, 1, 1], [], []>} : vector<8x128xf32>, vector<128x512xf32>, vector<8x512xf32> -> vector<8x512xf32>
    %111 = arith.addf %109, %110 : vector<8x512xf32>
    %112 = vector.extract_strided_slice %106 {offsets = [0, 0], sizes = [8, 128], strides = [1, 1]} : vector<8x512xf32> to vector<8x128xf32>
    %113 = arith.negf %112 : vector<8x128xf32>
    %114 = math.exp %113 : vector<8x128xf32>
    %cst_28 = arith.constant 1.000000e+00 : f32
    %115 = vector.broadcast %cst_28 : f32 to vector<8x128xf32>
    %116 = arith.addf %115, %114 : vector<8x128xf32>
    %117 = arith.divf %115, %116 : vector<8x128xf32>
    %118 = vector.extract_strided_slice %106 {offsets = [0, 128], sizes = [8, 128], strides = [1, 1]} : vector<8x512xf32> to vector<8x128xf32>
    %119 = arith.negf %118 : vector<8x128xf32>
    %120 = math.exp %119 : vector<8x128xf32>
    %cst_29 = arith.constant 1.000000e+00 : f32
    %121 = vector.broadcast %cst_29 : f32 to vector<8x128xf32>
    %122 = arith.addf %121, %120 : vector<8x128xf32>
    %123 = arith.divf %121, %122 : vector<8x128xf32>
    %124 = vector.extract_strided_slice %106 {offsets = [0, 256], sizes = [8, 128], strides = [1, 1]} : vector<8x512xf32> to vector<8x128xf32>
    %125 = math.tanh %124 : vector<8x128xf32>
    %126 = vector.extract_strided_slice %106 {offsets = [0, 384], sizes = [8, 128], strides = [1, 1]} : vector<8x512xf32> to vector<8x128xf32>
    %127 = arith.negf %126 : vector<8x128xf32>
    %128 = math.exp %127 : vector<8x128xf32>
    %cst_30 = arith.constant 1.000000e+00 : f32
    %129 = vector.broadcast %cst_30 : f32 to vector<8x128xf32>
    %130 = arith.addf %129, %128 : vector<8x128xf32>
    %131 = arith.divf %129, %130 : vector<8x128xf32>
    %132 = arith.mulf %123, %90 : vector<8x128xf32>
    %133 = arith.mulf %117, %125 : vector<8x128xf32>
    %134 = arith.addf %132, %133 : vector<8x128xf32>
    %135 = math.tanh %134 : vector<8x128xf32>
    %136 = arith.mulf %131, %135 : vector<8x128xf32>
    %137 = vector.extract_strided_slice %111 {offsets = [0, 0], sizes = [8, 128], strides = [1, 1]} : vector<8x512xf32> to vector<8x128xf32>
    %138 = arith.negf %137 : vector<8x128xf32>
    %139 = math.exp %138 : vector<8x128xf32>
    %cst_31 = arith.constant 1.000000e+00 : f32
    %140 = vector.broadcast %cst_31 : f32 to vector<8x128xf32>
    %141 = arith.addf %140, %139 : vector<8x128xf32>
    %142 = arith.divf %140, %141 : vector<8x128xf32>
    %143 = vector.extract_strided_slice %111 {offsets = [0, 128], sizes = [8, 128], strides = [1, 1]} : vector<8x512xf32> to vector<8x128xf32>
    %144 = arith.negf %143 : vector<8x128xf32>
    %145 = math.exp %144 : vector<8x128xf32>
    %cst_32 = arith.constant 1.000000e+00 : f32
    %146 = vector.broadcast %cst_32 : f32 to vector<8x128xf32>
    %147 = arith.addf %146, %145 : vector<8x128xf32>
    %148 = arith.divf %146, %147 : vector<8x128xf32>
    %149 = vector.extract_strided_slice %111 {offsets = [0, 256], sizes = [8, 128], strides = [1, 1]} : vector<8x512xf32> to vector<8x128xf32>
    %150 = math.tanh %149 : vector<8x128xf32>
    %151 = vector.extract_strided_slice %111 {offsets = [0, 384], sizes = [8, 128], strides = [1, 1]} : vector<8x512xf32> to vector<8x128xf32>
    %152 = arith.negf %151 : vector<8x128xf32>
    %153 = math.exp %152 : vector<8x128xf32>
    %cst_33 = arith.constant 1.000000e+00 : f32
    %154 = vector.broadcast %cst_33 : f32 to vector<8x128xf32>
    %155 = arith.addf %154, %153 : vector<8x128xf32>
    %156 = arith.divf %154, %155 : vector<8x128xf32>
    %157 = arith.mulf %148, %96 : vector<8x128xf32>
    %158 = arith.mulf %142, %150 : vector<8x128xf32>
    %159 = arith.addf %157, %158 : vector<8x128xf32>
    %160 = math.tanh %159 : vector<8x128xf32>
    %161 = arith.mulf %156, %160 : vector<8x128xf32>
    %cst_34 = arith.constant 0.000000e+00 : f32
    %162 = vector.shape_cast %99 : vector<8x1xi1> to vector<8x1xi1>
    %163 = vector.broadcast %162 : vector<8x1xi1> to vector<8x128xi1>
    %164 = vector.broadcast %cst_34 : f32 to vector<8x128xf32>
    %165 = arith.select %163, %136, %164 : vector<8x128xi1>, vector<8x128xf32>
    %166 = arith.index_cast %c1_i32 : i32 to index
    %c0_35 = arith.constant 0 : index
    %c0_36 = arith.constant 0 : index
    %167 = vector.load %arg5[%166, %c0_35, %c0_36] : memref<8x8x256xf32, #tpu.memory_space<vmem>>, vector<1x8x128xf32>
    %168 = vector.shape_cast %167 : vector<1x8x128xf32> to vector<8x128xf32>
    %169 = vector.shape_cast %165 : vector<8x128xf32> to vector<1x8x128xf32>
    tpu.vector_store %arg5[%166, %c0_35, %c0_36], %169 {strides = array<i32>} : memref<8x8x256xf32, #tpu.memory_space<vmem>>, vector<1x8x128xf32>,
    %cst_37 = arith.constant 0.000000e+00 : f32
    %170 = vector.shape_cast %101 : vector<8x1xi1> to vector<8x1xi1>
    %171 = vector.broadcast %170 : vector<8x1xi1> to vector<8x128xi1>
    %172 = vector.broadcast %cst_37 : f32 to vector<8x128xf32>
    %173 = arith.select %171, %161, %172 : vector<8x128xi1>, vector<8x128xf32>
    %174 = arith.index_cast %97 : i32 to index
    %c0_38 = arith.constant 0 : index
    %c128_39 = arith.constant 128 : index
    %175 = vector.load %arg5[%174, %c0_38, %c128_39] : memref<8x8x256xf32, #tpu.memory_space<vmem>>, vector<1x8x128xf32>
    %176 = vector.shape_cast %175 : vector<1x8x128xf32> to vector<8x128xf32>
    %177 = vector.shape_cast %173 : vector<8x128xf32> to vector<1x8x128xf32>
    tpu.vector_store %arg5[%174, %c0_38, %c128_39], %177 {strides = array<i32>} : memref<8x8x256xf32, #tpu.memory_space<vmem>>, vector<1x8x128xf32>,
    %178 = vector.shape_cast %99 : vector<8x1xi1> to vector<8x1xi1>
    %179 = vector.broadcast %178 : vector<8x1xi1> to vector<8x128xi1>
    %180 = arith.select %179, %136, %87 : vector<8x128xi1>, vector<8x128xf32>
    %181 = vector.shape_cast %99 : vector<8x1xi1> to vector<8x1xi1>
    %182 = vector.broadcast %181 : vector<8x1xi1> to vector<8x128xi1>
    %183 = arith.select %182, %134, %90 : vector<8x128xi1>, vector<8x128xf32>
    %184 = vector.shape_cast %101 : vector<8x1xi1> to vector<8x1xi1>
    %185 = vector.broadcast %184 : vector<8x1xi1> to vector<8x128xi1>
    %186 = arith.select %185, %161, %93 : vector<8x128xi1>, vector<8x128xf32>
    %187 = vector.shape_cast %101 : vector<8x1xi1> to vector<8x1xi1>
    %188 = vector.broadcast %187 : vector<8x1xi1> to vector<8x128xi1>
    %189 = arith.select %188, %159, %96 : vector<8x128xi1>, vector<8x128xf32>
    %c2_i32 = arith.constant 2 : i32
    %c7_i32_40 = arith.constant 7 : i32
    %190 = arith.subi %c7_i32_40, %c2_i32 : i32
    %191 = vector.broadcast %c2_i32 : i32 to vector<8x1xi32>
    %192 = arith.cmpi sgt, %2, %191 : vector<8x1xi32>
    %193 = vector.broadcast %190 : i32 to vector<8x1xi32>
    %194 = arith.cmpi sgt, %2, %193 : vector<8x1xi32>
    %195 = arith.index_cast %c2_i32 : i32 to index
    %c0_41 = arith.constant 0 : index
    %c0_42 = arith.constant 0 : index
    %196 = vector.load %arg1[%195, %c0_41, %c0_42] : memref<8x8x1024xf32, #tpu.memory_space<vmem>>, vector<1x8x512xf32>
    %197 = vector.shape_cast %196 : vector<1x8x512xf32> to vector<8x512xf32>
    %cst_43 = arith.constant dense<0.000000e+00> : vector<8x512xf32>
    %198 = tpu.matmul %180, %0, %cst_43 {dimension_numbers = #tpu.dot_dimension_numbers<[1], [0], [0], [1], [0, 0, 1, 1], [], []>} : vector<8x128xf32>, vector<128x512xf32>, vector<8x512xf32> -> vector<8x512xf32>
    %199 = arith.addf %197, %198 : vector<8x512xf32>
    %200 = arith.index_cast %190 : i32 to index
    %c0_44 = arith.constant 0 : index
    %c512_45 = arith.constant 512 : index
    %201 = vector.load %arg1[%200, %c0_44, %c512_45] : memref<8x8x1024xf32, #tpu.memory_space<vmem>>, vector<1x8x512xf32>
    %202 = vector.shape_cast %201 : vector<1x8x512xf32> to vector<8x512xf32>
    %cst_46 = arith.constant dense<0.000000e+00> : vector<8x512xf32>
    %203 = tpu.matmul %186, %1, %cst_46 {dimension_numbers = #tpu.dot_dimension_numbers<[1], [0], [0], [1], [0, 0, 1, 1], [], []>} : vector<8x128xf32>, vector<128x512xf32>, vector<8x512xf32> -> vector<8x512xf32>
    %204 = arith.addf %202, %203 : vector<8x512xf32>
    %205 = vector.extract_strided_slice %199 {offsets = [0, 0], sizes = [8, 128], strides = [1, 1]} : vector<8x512xf32> to vector<8x128xf32>
    %206 = arith.negf %205 : vector<8x128xf32>
    %207 = math.exp %206 : vector<8x128xf32>
    %cst_47 = arith.constant 1.000000e+00 : f32
    %208 = vector.broadcast %cst_47 : f32 to vector<8x128xf32>
    %209 = arith.addf %208, %207 : vector<8x128xf32>
    %210 = arith.divf %208, %209 : vector<8x128xf32>
    %211 = vector.extract_strided_slice %199 {offsets = [0, 128], sizes = [8, 128], strides = [1, 1]} : vector<8x512xf32> to vector<8x128xf32>
    %212 = arith.negf %211 : vector<8x128xf32>
    %213 = math.exp %212 : vector<8x128xf32>
    %cst_48 = arith.constant 1.000000e+00 : f32
    %214 = vector.broadcast %cst_48 : f32 to vector<8x128xf32>
    %215 = arith.addf %214, %213 : vector<8x128xf32>
    %216 = arith.divf %214, %215 : vector<8x128xf32>
    %217 = vector.extract_strided_slice %199 {offsets = [0, 256], sizes = [8, 128], strides = [1, 1]} : vector<8x512xf32> to vector<8x128xf32>
    %218 = math.tanh %217 : vector<8x128xf32>
    %219 = vector.extract_strided_slice %199 {offsets = [0, 384], sizes = [8, 128], strides = [1, 1]} : vector<8x512xf32> to vector<8x128xf32>
    %220 = arith.negf %219 : vector<8x128xf32>
    %221 = math.exp %220 : vector<8x128xf32>
    %cst_49 = arith.constant 1.000000e+00 : f32
    %222 = vector.broadcast %cst_49 : f32 to vector<8x128xf32>
    %223 = arith.addf %222, %221 : vector<8x128xf32>
    %224 = arith.divf %222, %223 : vector<8x128xf32>
    %225 = arith.mulf %216, %183 : vector<8x128xf32>
    %226 = arith.mulf %210, %218 : vector<8x128xf32>
    %227 = arith.addf %225, %226 : vector<8x128xf32>
    %228 = math.tanh %227 : vector<8x128xf32>
    %229 = arith.mulf %224, %228 : vector<8x128xf32>
    %230 = vector.extract_strided_slice %204 {offsets = [0, 0], sizes = [8, 128], strides = [1, 1]} : vector<8x512xf32> to vector<8x128xf32>
    %231 = arith.negf %230 : vector<8x128xf32>
    %232 = math.exp %231 : vector<8x128xf32>
    %cst_50 = arith.constant 1.000000e+00 : f32
    %233 = vector.broadcast %cst_50 : f32 to vector<8x128xf32>
    %234 = arith.addf %233, %232 : vector<8x128xf32>
    %235 = arith.divf %233, %234 : vector<8x128xf32>
    %236 = vector.extract_strided_slice %204 {offsets = [0, 128], sizes = [8, 128], strides = [1, 1]} : vector<8x512xf32> to vector<8x128xf32>
    %237 = arith.negf %236 : vector<8x128xf32>
    %238 = math.exp %237 : vector<8x128xf32>
    %cst_51 = arith.constant 1.000000e+00 : f32
    %239 = vector.broadcast %cst_51 : f32 to vector<8x128xf32>
    %240 = arith.addf %239, %238 : vector<8x128xf32>
    %241 = arith.divf %239, %240 : vector<8x128xf32>
    %242 = vector.extract_strided_slice %204 {offsets = [0, 256], sizes = [8, 128], strides = [1, 1]} : vector<8x512xf32> to vector<8x128xf32>
    %243 = math.tanh %242 : vector<8x128xf32>
    %244 = vector.extract_strided_slice %204 {offsets = [0, 384], sizes = [8, 128], strides = [1, 1]} : vector<8x512xf32> to vector<8x128xf32>
    %245 = arith.negf %244 : vector<8x128xf32>
    %246 = math.exp %245 : vector<8x128xf32>
    %cst_52 = arith.constant 1.000000e+00 : f32
    %247 = vector.broadcast %cst_52 : f32 to vector<8x128xf32>
    %248 = arith.addf %247, %246 : vector<8x128xf32>
    %249 = arith.divf %247, %248 : vector<8x128xf32>
    %250 = arith.mulf %241, %189 : vector<8x128xf32>
    %251 = arith.mulf %235, %243 : vector<8x128xf32>
    %252 = arith.addf %250, %251 : vector<8x128xf32>
    %253 = math.tanh %252 : vector<8x128xf32>
    %254 = arith.mulf %249, %253 : vector<8x128xf32>
    %cst_53 = arith.constant 0.000000e+00 : f32
    %255 = vector.shape_cast %192 : vector<8x1xi1> to vector<8x1xi1>
    %256 = vector.broadcast %255 : vector<8x1xi1> to vector<8x128xi1>
    %257 = vector.broadcast %cst_53 : f32 to vector<8x128xf32>
    %258 = arith.select %256, %229, %257 : vector<8x128xi1>, vector<8x128xf32>
    %259 = arith.index_cast %c2_i32 : i32 to index
    %c0_54 = arith.constant 0 : index
    %c0_55 = arith.constant 0 : index
    %260 = vector.load %arg5[%259, %c0_54, %c0_55] : memref<8x8x256xf32, #tpu.memory_space<vmem>>, vector<1x8x128xf32>
    %261 = vector.shape_cast %260 : vector<1x8x128xf32> to vector<8x128xf32>
    %262 = vector.shape_cast %258 : vector<8x128xf32> to vector<1x8x128xf32>
    tpu.vector_store %arg5[%259, %c0_54, %c0_55], %262 {strides = array<i32>} : memref<8x8x256xf32, #tpu.memory_space<vmem>>, vector<1x8x128xf32>,
    %cst_56 = arith.constant 0.000000e+00 : f32
    %263 = vector.shape_cast %194 : vector<8x1xi1> to vector<8x1xi1>
    %264 = vector.broadcast %263 : vector<8x1xi1> to vector<8x128xi1>
    %265 = vector.broadcast %cst_56 : f32 to vector<8x128xf32>
    %266 = arith.select %264, %254, %265 : vector<8x128xi1>, vector<8x128xf32>
    %267 = arith.index_cast %190 : i32 to index
    %c0_57 = arith.constant 0 : index
    %c128_58 = arith.constant 128 : index
    %268 = vector.load %arg5[%267, %c0_57, %c128_58] : memref<8x8x256xf32, #tpu.memory_space<vmem>>, vector<1x8x128xf32>
    %269 = vector.shape_cast %268 : vector<1x8x128xf32> to vector<8x128xf32>
    %270 = vector.shape_cast %266 : vector<8x128xf32> to vector<1x8x128xf32>
    tpu.vector_store %arg5[%267, %c0_57, %c128_58], %270 {strides = array<i32>} : memref<8x8x256xf32, #tpu.memory_space<vmem>>, vector<1x8x128xf32>,
    %271 = vector.shape_cast %192 : vector<8x1xi1> to vector<8x1xi1>
    %272 = vector.broadcast %271 : vector<8x1xi1> to vector<8x128xi1>
    %273 = arith.select %272, %229, %180 : vector<8x128xi1>, vector<8x128xf32>
    %274 = vector.shape_cast %192 : vector<8x1xi1> to vector<8x1xi1>
    %275 = vector.broadcast %274 : vector<8x1xi1> to vector<8x128xi1>
    %276 = arith.select %275, %227, %183 : vector<8x128xi1>, vector<8x128xf32>
    %277 = vector.shape_cast %194 : vector<8x1xi1> to vector<8x1xi1>
    %278 = vector.broadcast %277 : vector<8x1xi1> to vector<8x128xi1>
    %279 = arith.select %278, %254, %186 : vector<8x128xi1>, vector<8x128xf32>
    %280 = vector.shape_cast %194 : vector<8x1xi1> to vector<8x1xi1>
    %281 = vector.broadcast %280 : vector<8x1xi1> to vector<8x128xi1>
    %282 = arith.select %281, %252, %189 : vector<8x128xi1>, vector<8x128xf32>
    %c3_i32 = arith.constant 3 : i32
    %c7_i32_59 = arith.constant 7 : i32
    %283 = arith.subi %c7_i32_59, %c3_i32 : i32
    %284 = vector.broadcast %c3_i32 : i32 to vector<8x1xi32>
    %285 = arith.cmpi sgt, %2, %284 : vector<8x1xi32>
    %286 = vector.broadcast %283 : i32 to vector<8x1xi32>
    %287 = arith.cmpi sgt, %2, %286 : vector<8x1xi32>
    %288 = arith.index_cast %c3_i32 : i32 to index
    %c0_60 = arith.constant 0 : index
    %c0_61 = arith.constant 0 : index
    %289 = vector.load %arg1[%288, %c0_60, %c0_61] : memref<8x8x1024xf32, #tpu.memory_space<vmem>>, vector<1x8x512xf32>
    %290 = vector.shape_cast %289 : vector<1x8x512xf32> to vector<8x512xf32>
    %cst_62 = arith.constant dense<0.000000e+00> : vector<8x512xf32>
    %291 = tpu.matmul %273, %0, %cst_62 {dimension_numbers = #tpu.dot_dimension_numbers<[1], [0], [0], [1], [0, 0, 1, 1], [], []>} : vector<8x128xf32>, vector<128x512xf32>, vector<8x512xf32> -> vector<8x512xf32>
    %292 = arith.addf %290, %291 : vector<8x512xf32>
    %293 = arith.index_cast %283 : i32 to index
    %c0_63 = arith.constant 0 : index
    %c512_64 = arith.constant 512 : index
    %294 = vector.load %arg1[%293, %c0_63, %c512_64] : memref<8x8x1024xf32, #tpu.memory_space<vmem>>, vector<1x8x512xf32>
    %295 = vector.shape_cast %294 : vector<1x8x512xf32> to vector<8x512xf32>
    %cst_65 = arith.constant dense<0.000000e+00> : vector<8x512xf32>
    %296 = tpu.matmul %279, %1, %cst_65 {dimension_numbers = #tpu.dot_dimension_numbers<[1], [0], [0], [1], [0, 0, 1, 1], [], []>} : vector<8x128xf32>, vector<128x512xf32>, vector<8x512xf32> -> vector<8x512xf32>
    %297 = arith.addf %295, %296 : vector<8x512xf32>
    %298 = vector.extract_strided_slice %292 {offsets = [0, 0], sizes = [8, 128], strides = [1, 1]} : vector<8x512xf32> to vector<8x128xf32>
    %299 = arith.negf %298 : vector<8x128xf32>
    %300 = math.exp %299 : vector<8x128xf32>
    %cst_66 = arith.constant 1.000000e+00 : f32
    %301 = vector.broadcast %cst_66 : f32 to vector<8x128xf32>
    %302 = arith.addf %301, %300 : vector<8x128xf32>
    %303 = arith.divf %301, %302 : vector<8x128xf32>
    %304 = vector.extract_strided_slice %292 {offsets = [0, 128], sizes = [8, 128], strides = [1, 1]} : vector<8x512xf32> to vector<8x128xf32>
    %305 = arith.negf %304 : vector<8x128xf32>
    %306 = math.exp %305 : vector<8x128xf32>
    %cst_67 = arith.constant 1.000000e+00 : f32
    %307 = vector.broadcast %cst_67 : f32 to vector<8x128xf32>
    %308 = arith.addf %307, %306 : vector<8x128xf32>
    %309 = arith.divf %307, %308 : vector<8x128xf32>
    %310 = vector.extract_strided_slice %292 {offsets = [0, 256], sizes = [8, 128], strides = [1, 1]} : vector<8x512xf32> to vector<8x128xf32>
    %311 = math.tanh %310 : vector<8x128xf32>
    %312 = vector.extract_strided_slice %292 {offsets = [0, 384], sizes = [8, 128], strides = [1, 1]} : vector<8x512xf32> to vector<8x128xf32>
    %313 = arith.negf %312 : vector<8x128xf32>
    %314 = math.exp %313 : vector<8x128xf32>
    %cst_68 = arith.constant 1.000000e+00 : f32
    %315 = vector.broadcast %cst_68 : f32 to vector<8x128xf32>
    %316 = arith.addf %315, %314 : vector<8x128xf32>
    %317 = arith.divf %315, %316 : vector<8x128xf32>
    %318 = arith.mulf %309, %276 : vector<8x128xf32>
    %319 = arith.mulf %303, %311 : vector<8x128xf32>
    %320 = arith.addf %318, %319 : vector<8x128xf32>
    %321 = math.tanh %320 : vector<8x128xf32>
    %322 = arith.mulf %317, %321 : vector<8x128xf32>
    %323 = vector.extract_strided_slice %297 {offsets = [0, 0], sizes = [8, 128], strides = [1, 1]} : vector<8x512xf32> to vector<8x128xf32>
    %324 = arith.negf %323 : vector<8x128xf32>
    %325 = math.exp %324 : vector<8x128xf32>
    %cst_69 = arith.constant 1.000000e+00 : f32
    %326 = vector.broadcast %cst_69 : f32 to vector<8x128xf32>
    %327 = arith.addf %326, %325 : vector<8x128xf32>
    %328 = arith.divf %326, %327 : vector<8x128xf32>
    %329 = vector.extract_strided_slice %297 {offsets = [0, 128], sizes = [8, 128], strides = [1, 1]} : vector<8x512xf32> to vector<8x128xf32>
    %330 = arith.negf %329 : vector<8x128xf32>
    %331 = math.exp %330 : vector<8x128xf32>
    %cst_70 = arith.constant 1.000000e+00 : f32
    %332 = vector.broadcast %cst_70 : f32 to vector<8x128xf32>
    %333 = arith.addf %332, %331 : vector<8x128xf32>
    %334 = arith.divf %332, %333 : vector<8x128xf32>
    %335 = vector.extract_strided_slice %297 {offsets = [0, 256], sizes = [8, 128], strides = [1, 1]} : vector<8x512xf32> to vector<8x128xf32>
    %336 = math.tanh %335 : vector<8x128xf32>
    %337 = vector.extract_strided_slice %297 {offsets = [0, 384], sizes = [8, 128], strides = [1, 1]} : vector<8x512xf32> to vector<8x128xf32>
    %338 = arith.negf %337 : vector<8x128xf32>
    %339 = math.exp %338 : vector<8x128xf32>
    %cst_71 = arith.constant 1.000000e+00 : f32
    %340 = vector.broadcast %cst_71 : f32 to vector<8x128xf32>
    %341 = arith.addf %340, %339 : vector<8x128xf32>
    %342 = arith.divf %340, %341 : vector<8x128xf32>
    %343 = arith.mulf %334, %282 : vector<8x128xf32>
    %344 = arith.mulf %328, %336 : vector<8x128xf32>
    %345 = arith.addf %343, %344 : vector<8x128xf32>
    %346 = math.tanh %345 : vector<8x128xf32>
    %347 = arith.mulf %342, %346 : vector<8x128xf32>
    %cst_72 = arith.constant 0.000000e+00 : f32
    %348 = vector.shape_cast %285 : vector<8x1xi1> to vector<8x1xi1>
    %349 = vector.broadcast %348 : vector<8x1xi1> to vector<8x128xi1>
    %350 = vector.broadcast %cst_72 : f32 to vector<8x128xf32>
    %351 = arith.select %349, %322, %350 : vector<8x128xi1>, vector<8x128xf32>
    %352 = arith.index_cast %c3_i32 : i32 to index
    %c0_73 = arith.constant 0 : index
    %c0_74 = arith.constant 0 : index
    %353 = vector.load %arg5[%352, %c0_73, %c0_74] : memref<8x8x256xf32, #tpu.memory_space<vmem>>, vector<1x8x128xf32>
    %354 = vector.shape_cast %353 : vector<1x8x128xf32> to vector<8x128xf32>
    %355 = vector.shape_cast %351 : vector<8x128xf32> to vector<1x8x128xf32>
    tpu.vector_store %arg5[%352, %c0_73, %c0_74], %355 {strides = array<i32>} : memref<8x8x256xf32, #tpu.memory_space<vmem>>, vector<1x8x128xf32>,
    %cst_75 = arith.constant 0.000000e+00 : f32
    %356 = vector.shape_cast %287 : vector<8x1xi1> to vector<8x1xi1>
    %357 = vector.broadcast %356 : vector<8x1xi1> to vector<8x128xi1>
    %358 = vector.broadcast %cst_75 : f32 to vector<8x128xf32>
    %359 = arith.select %357, %347, %358 : vector<8x128xi1>, vector<8x128xf32>
    %360 = arith.index_cast %283 : i32 to index
    %c0_76 = arith.constant 0 : index
    %c128_77 = arith.constant 128 : index
    %361 = vector.load %arg5[%360, %c0_76, %c128_77] : memref<8x8x256xf32, #tpu.memory_space<vmem>>, vector<1x8x128xf32>
    %362 = vector.shape_cast %361 : vector<1x8x128xf32> to vector<8x128xf32>
    %363 = vector.shape_cast %359 : vector<8x128xf32> to vector<1x8x128xf32>
    tpu.vector_store %arg5[%360, %c0_76, %c128_77], %363 {strides = array<i32>} : memref<8x8x256xf32, #tpu.memory_space<vmem>>, vector<1x8x128xf32>,
    %364 = vector.shape_cast %285 : vector<8x1xi1> to vector<8x1xi1>
    %365 = vector.broadcast %364 : vector<8x1xi1> to vector<8x128xi1>
    %366 = arith.select %365, %322, %273 : vector<8x128xi1>, vector<8x128xf32>
    %367 = vector.shape_cast %285 : vector<8x1xi1> to vector<8x1xi1>
    %368 = vector.broadcast %367 : vector<8x1xi1> to vector<8x128xi1>
    %369 = arith.select %368, %320, %276 : vector<8x128xi1>, vector<8x128xf32>
    %370 = vector.shape_cast %287 : vector<8x1xi1> to vector<8x1xi1>
    %371 = vector.broadcast %370 : vector<8x1xi1> to vector<8x128xi1>
    %372 = arith.select %371, %347, %279 : vector<8x128xi1>, vector<8x128xf32>
    %373 = vector.shape_cast %287 : vector<8x1xi1> to vector<8x1xi1>
    %374 = vector.broadcast %373 : vector<8x1xi1> to vector<8x128xi1>
    %375 = arith.select %374, %345, %282 : vector<8x128xi1>, vector<8x128xf32>
    %c4_i32 = arith.constant 4 : i32
    %c7_i32_78 = arith.constant 7 : i32
    %376 = arith.subi %c7_i32_78, %c4_i32 : i32
    %377 = vector.broadcast %c4_i32 : i32 to vector<8x1xi32>
    %378 = arith.cmpi sgt, %2, %377 : vector<8x1xi32>
    %379 = vector.broadcast %376 : i32 to vector<8x1xi32>
    %380 = arith.cmpi sgt, %2, %379 : vector<8x1xi32>
    %381 = arith.index_cast %c4_i32 : i32 to index
    %c0_79 = arith.constant 0 : index
    %c0_80 = arith.constant 0 : index
    %382 = vector.load %arg1[%381, %c0_79, %c0_80] : memref<8x8x1024xf32, #tpu.memory_space<vmem>>, vector<1x8x512xf32>
    %383 = vector.shape_cast %382 : vector<1x8x512xf32> to vector<8x512xf32>
    %cst_81 = arith.constant dense<0.000000e+00> : vector<8x512xf32>
    %384 = tpu.matmul %366, %0, %cst_81 {dimension_numbers = #tpu.dot_dimension_numbers<[1], [0], [0], [1], [0, 0, 1, 1], [], []>} : vector<8x128xf32>, vector<128x512xf32>, vector<8x512xf32> -> vector<8x512xf32>
    %385 = arith.addf %383, %384 : vector<8x512xf32>
    %386 = arith.index_cast %376 : i32 to index
    %c0_82 = arith.constant 0 : index
    %c512_83 = arith.constant 512 : index
    %387 = vector.load %arg1[%386, %c0_82, %c512_83] : memref<8x8x1024xf32, #tpu.memory_space<vmem>>, vector<1x8x512xf32>
    %388 = vector.shape_cast %387 : vector<1x8x512xf32> to vector<8x512xf32>
    %cst_84 = arith.constant dense<0.000000e+00> : vector<8x512xf32>
    %389 = tpu.matmul %372, %1, %cst_84 {dimension_numbers = #tpu.dot_dimension_numbers<[1], [0], [0], [1], [0, 0, 1, 1], [], []>} : vector<8x128xf32>, vector<128x512xf32>, vector<8x512xf32> -> vector<8x512xf32>
    %390 = arith.addf %388, %389 : vector<8x512xf32>
    %391 = vector.extract_strided_slice %385 {offsets = [0, 0], sizes = [8, 128], strides = [1, 1]} : vector<8x512xf32> to vector<8x128xf32>
    %392 = arith.negf %391 : vector<8x128xf32>
    %393 = math.exp %392 : vector<8x128xf32>
    %cst_85 = arith.constant 1.000000e+00 : f32
    %394 = vector.broadcast %cst_85 : f32 to vector<8x128xf32>
    %395 = arith.addf %394, %393 : vector<8x128xf32>
    %396 = arith.divf %394, %395 : vector<8x128xf32>
    %397 = vector.extract_strided_slice %385 {offsets = [0, 128], sizes = [8, 128], strides = [1, 1]} : vector<8x512xf32> to vector<8x128xf32>
    %398 = arith.negf %397 : vector<8x128xf32>
    %399 = math.exp %398 : vector<8x128xf32>
    %cst_86 = arith.constant 1.000000e+00 : f32
    %400 = vector.broadcast %cst_86 : f32 to vector<8x128xf32>
    %401 = arith.addf %400, %399 : vector<8x128xf32>
    %402 = arith.divf %400, %401 : vector<8x128xf32>
    %403 = vector.extract_strided_slice %385 {offsets = [0, 256], sizes = [8, 128], strides = [1, 1]} : vector<8x512xf32> to vector<8x128xf32>
    %404 = math.tanh %403 : vector<8x128xf32>
    %405 = vector.extract_strided_slice %385 {offsets = [0, 384], sizes = [8, 128], strides = [1, 1]} : vector<8x512xf32> to vector<8x128xf32>
    %406 = arith.negf %405 : vector<8x128xf32>
    %407 = math.exp %406 : vector<8x128xf32>
    %cst_87 = arith.constant 1.000000e+00 : f32
    %408 = vector.broadcast %cst_87 : f32 to vector<8x128xf32>
    %409 = arith.addf %408, %407 : vector<8x128xf32>
    %410 = arith.divf %408, %409 : vector<8x128xf32>
    %411 = arith.mulf %402, %369 : vector<8x128xf32>
    %412 = arith.mulf %396, %404 : vector<8x128xf32>
    %413 = arith.addf %411, %412 : vector<8x128xf32>
    %414 = math.tanh %413 : vector<8x128xf32>
    %415 = arith.mulf %410, %414 : vector<8x128xf32>
    %416 = vector.extract_strided_slice %390 {offsets = [0, 0], sizes = [8, 128], strides = [1, 1]} : vector<8x512xf32> to vector<8x128xf32>
    %417 = arith.negf %416 : vector<8x128xf32>
    %418 = math.exp %417 : vector<8x128xf32>
    %cst_88 = arith.constant 1.000000e+00 : f32
    %419 = vector.broadcast %cst_88 : f32 to vector<8x128xf32>
    %420 = arith.addf %419, %418 : vector<8x128xf32>
    %421 = arith.divf %419, %420 : vector<8x128xf32>
    %422 = vector.extract_strided_slice %390 {offsets = [0, 128], sizes = [8, 128], strides = [1, 1]} : vector<8x512xf32> to vector<8x128xf32>
    %423 = arith.negf %422 : vector<8x128xf32>
    %424 = math.exp %423 : vector<8x128xf32>
    %cst_89 = arith.constant 1.000000e+00 : f32
    %425 = vector.broadcast %cst_89 : f32 to vector<8x128xf32>
    %426 = arith.addf %425, %424 : vector<8x128xf32>
    %427 = arith.divf %425, %426 : vector<8x128xf32>
    %428 = vector.extract_strided_slice %390 {offsets = [0, 256], sizes = [8, 128], strides = [1, 1]} : vector<8x512xf32> to vector<8x128xf32>
    %429 = math.tanh %428 : vector<8x128xf32>
    %430 = vector.extract_strided_slice %390 {offsets = [0, 384], sizes = [8, 128], strides = [1, 1]} : vector<8x512xf32> to vector<8x128xf32>
    %431 = arith.negf %430 : vector<8x128xf32>
    %432 = math.exp %431 : vector<8x128xf32>
    %cst_90 = arith.constant 1.000000e+00 : f32
    %433 = vector.broadcast %cst_90 : f32 to vector<8x128xf32>
    %434 = arith.addf %433, %432 : vector<8x128xf32>
    %435 = arith.divf %433, %434 : vector<8x128xf32>
    %436 = arith.mulf %427, %375 : vector<8x128xf32>
    %437 = arith.mulf %421, %429 : vector<8x128xf32>
    %438 = arith.addf %436, %437 : vector<8x128xf32>
    %439 = math.tanh %438 : vector<8x128xf32>
    %440 = arith.mulf %435, %439 : vector<8x128xf32>
    %cst_91 = arith.constant 0.000000e+00 : f32
    %441 = vector.shape_cast %378 : vector<8x1xi1> to vector<8x1xi1>
    %442 = vector.broadcast %441 : vector<8x1xi1> to vector<8x128xi1>
    %443 = vector.broadcast %cst_91 : f32 to vector<8x128xf32>
    %444 = arith.select %442, %415, %443 : vector<8x128xi1>, vector<8x128xf32>
    %445 = arith.index_cast %c4_i32 : i32 to index
    %c0_92 = arith.constant 0 : index
    %c0_93 = arith.constant 0 : index
    %446 = vector.load %arg5[%445, %c0_92, %c0_93] : memref<8x8x256xf32, #tpu.memory_space<vmem>>, vector<1x8x128xf32>
    %447 = vector.shape_cast %446 : vector<1x8x128xf32> to vector<8x128xf32>
    %448 = vector.shape_cast %444 : vector<8x128xf32> to vector<1x8x128xf32>
    tpu.vector_store %arg5[%445, %c0_92, %c0_93], %448 {strides = array<i32>} : memref<8x8x256xf32, #tpu.memory_space<vmem>>, vector<1x8x128xf32>,
    %cst_94 = arith.constant 0.000000e+00 : f32
    %449 = vector.shape_cast %380 : vector<8x1xi1> to vector<8x1xi1>
    %450 = vector.broadcast %449 : vector<8x1xi1> to vector<8x128xi1>
    %451 = vector.broadcast %cst_94 : f32 to vector<8x128xf32>
    %452 = arith.select %450, %440, %451 : vector<8x128xi1>, vector<8x128xf32>
    %453 = arith.index_cast %376 : i32 to index
    %c0_95 = arith.constant 0 : index
    %c128_96 = arith.constant 128 : index
    %454 = vector.load %arg5[%453, %c0_95, %c128_96] : memref<8x8x256xf32, #tpu.memory_space<vmem>>, vector<1x8x128xf32>
    %455 = vector.shape_cast %454 : vector<1x8x128xf32> to vector<8x128xf32>
    %456 = vector.shape_cast %452 : vector<8x128xf32> to vector<1x8x128xf32>
    tpu.vector_store %arg5[%453, %c0_95, %c128_96], %456 {strides = array<i32>} : memref<8x8x256xf32, #tpu.memory_space<vmem>>, vector<1x8x128xf32>,
    %457 = vector.shape_cast %378 : vector<8x1xi1> to vector<8x1xi1>
    %458 = vector.broadcast %457 : vector<8x1xi1> to vector<8x128xi1>
    %459 = arith.select %458, %415, %366 : vector<8x128xi1>, vector<8x128xf32>
    %460 = vector.shape_cast %378 : vector<8x1xi1> to vector<8x1xi1>
    %461 = vector.broadcast %460 : vector<8x1xi1> to vector<8x128xi1>
    %462 = arith.select %461, %413, %369 : vector<8x128xi1>, vector<8x128xf32>
    %463 = vector.shape_cast %380 : vector<8x1xi1> to vector<8x1xi1>
    %464 = vector.broadcast %463 : vector<8x1xi1> to vector<8x128xi1>
    %465 = arith.select %464, %440, %372 : vector<8x128xi1>, vector<8x128xf32>
    %466 = vector.shape_cast %380 : vector<8x1xi1> to vector<8x1xi1>
    %467 = vector.broadcast %466 : vector<8x1xi1> to vector<8x128xi1>
    %468 = arith.select %467, %438, %375 : vector<8x128xi1>, vector<8x128xf32>
    %c5_i32 = arith.constant 5 : i32
    %c7_i32_97 = arith.constant 7 : i32
    %469 = arith.subi %c7_i32_97, %c5_i32 : i32
    %470 = vector.broadcast %c5_i32 : i32 to vector<8x1xi32>
    %471 = arith.cmpi sgt, %2, %470 : vector<8x1xi32>
    %472 = vector.broadcast %469 : i32 to vector<8x1xi32>
    %473 = arith.cmpi sgt, %2, %472 : vector<8x1xi32>
    %474 = arith.index_cast %c5_i32 : i32 to index
    %c0_98 = arith.constant 0 : index
    %c0_99 = arith.constant 0 : index
    %475 = vector.load %arg1[%474, %c0_98, %c0_99] : memref<8x8x1024xf32, #tpu.memory_space<vmem>>, vector<1x8x512xf32>
    %476 = vector.shape_cast %475 : vector<1x8x512xf32> to vector<8x512xf32>
    %cst_100 = arith.constant dense<0.000000e+00> : vector<8x512xf32>
    %477 = tpu.matmul %459, %0, %cst_100 {dimension_numbers = #tpu.dot_dimension_numbers<[1], [0], [0], [1], [0, 0, 1, 1], [], []>} : vector<8x128xf32>, vector<128x512xf32>, vector<8x512xf32> -> vector<8x512xf32>
    %478 = arith.addf %476, %477 : vector<8x512xf32>
    %479 = arith.index_cast %469 : i32 to index
    %c0_101 = arith.constant 0 : index
    %c512_102 = arith.constant 512 : index
    %480 = vector.load %arg1[%479, %c0_101, %c512_102] : memref<8x8x1024xf32, #tpu.memory_space<vmem>>, vector<1x8x512xf32>
    %481 = vector.shape_cast %480 : vector<1x8x512xf32> to vector<8x512xf32>
    %cst_103 = arith.constant dense<0.000000e+00> : vector<8x512xf32>
    %482 = tpu.matmul %465, %1, %cst_103 {dimension_numbers = #tpu.dot_dimension_numbers<[1], [0], [0], [1], [0, 0, 1, 1], [], []>} : vector<8x128xf32>, vector<128x512xf32>, vector<8x512xf32> -> vector<8x512xf32>
    %483 = arith.addf %481, %482 : vector<8x512xf32>
    %484 = vector.extract_strided_slice %478 {offsets = [0, 0], sizes = [8, 128], strides = [1, 1]} : vector<8x512xf32> to vector<8x128xf32>
    %485 = arith.negf %484 : vector<8x128xf32>
    %486 = math.exp %485 : vector<8x128xf32>
    %cst_104 = arith.constant 1.000000e+00 : f32
    %487 = vector.broadcast %cst_104 : f32 to vector<8x128xf32>
    %488 = arith.addf %487, %486 : vector<8x128xf32>
    %489 = arith.divf %487, %488 : vector<8x128xf32>
    %490 = vector.extract_strided_slice %478 {offsets = [0, 128], sizes = [8, 128], strides = [1, 1]} : vector<8x512xf32> to vector<8x128xf32>
    %491 = arith.negf %490 : vector<8x128xf32>
    %492 = math.exp %491 : vector<8x128xf32>
    %cst_105 = arith.constant 1.000000e+00 : f32
    %493 = vector.broadcast %cst_105 : f32 to vector<8x128xf32>
    %494 = arith.addf %493, %492 : vector<8x128xf32>
    %495 = arith.divf %493, %494 : vector<8x128xf32>
    %496 = vector.extract_strided_slice %478 {offsets = [0, 256], sizes = [8, 128], strides = [1, 1]} : vector<8x512xf32> to vector<8x128xf32>
    %497 = math.tanh %496 : vector<8x128xf32>
    %498 = vector.extract_strided_slice %478 {offsets = [0, 384], sizes = [8, 128], strides = [1, 1]} : vector<8x512xf32> to vector<8x128xf32>
    %499 = arith.negf %498 : vector<8x128xf32>
    %500 = math.exp %499 : vector<8x128xf32>
    %cst_106 = arith.constant 1.000000e+00 : f32
    %501 = vector.broadcast %cst_106 : f32 to vector<8x128xf32>
    %502 = arith.addf %501, %500 : vector<8x128xf32>
    %503 = arith.divf %501, %502 : vector<8x128xf32>
    %504 = arith.mulf %495, %462 : vector<8x128xf32>
    %505 = arith.mulf %489, %497 : vector<8x128xf32>
    %506 = arith.addf %504, %505 : vector<8x128xf32>
    %507 = math.tanh %506 : vector<8x128xf32>
    %508 = arith.mulf %503, %507 : vector<8x128xf32>
    %509 = vector.extract_strided_slice %483 {offsets = [0, 0], sizes = [8, 128], strides = [1, 1]} : vector<8x512xf32> to vector<8x128xf32>
    %510 = arith.negf %509 : vector<8x128xf32>
    %511 = math.exp %510 : vector<8x128xf32>
    %cst_107 = arith.constant 1.000000e+00 : f32
    %512 = vector.broadcast %cst_107 : f32 to vector<8x128xf32>
    %513 = arith.addf %512, %511 : vector<8x128xf32>
    %514 = arith.divf %512, %513 : vector<8x128xf32>
    %515 = vector.extract_strided_slice %483 {offsets = [0, 128], sizes = [8, 128], strides = [1, 1]} : vector<8x512xf32> to vector<8x128xf32>
    %516 = arith.negf %515 : vector<8x128xf32>
    %517 = math.exp %516 : vector<8x128xf32>
    %cst_108 = arith.constant 1.000000e+00 : f32
    %518 = vector.broadcast %cst_108 : f32 to vector<8x128xf32>
    %519 = arith.addf %518, %517 : vector<8x128xf32>
    %520 = arith.divf %518, %519 : vector<8x128xf32>
    %521 = vector.extract_strided_slice %483 {offsets = [0, 256], sizes = [8, 128], strides = [1, 1]} : vector<8x512xf32> to vector<8x128xf32>
    %522 = math.tanh %521 : vector<8x128xf32>
    %523 = vector.extract_strided_slice %483 {offsets = [0, 384], sizes = [8, 128], strides = [1, 1]} : vector<8x512xf32> to vector<8x128xf32>
    %524 = arith.negf %523 : vector<8x128xf32>
    %525 = math.exp %524 : vector<8x128xf32>
    %cst_109 = arith.constant 1.000000e+00 : f32
    %526 = vector.broadcast %cst_109 : f32 to vector<8x128xf32>
    %527 = arith.addf %526, %525 : vector<8x128xf32>
    %528 = arith.divf %526, %527 : vector<8x128xf32>
    %529 = arith.mulf %520, %468 : vector<8x128xf32>
    %530 = arith.mulf %514, %522 : vector<8x128xf32>
    %531 = arith.addf %529, %530 : vector<8x128xf32>
    %532 = math.tanh %531 : vector<8x128xf32>
    %533 = arith.mulf %528, %532 : vector<8x128xf32>
    %cst_110 = arith.constant 0.000000e+00 : f32
    %534 = vector.shape_cast %471 : vector<8x1xi1> to vector<8x1xi1>
    %535 = vector.broadcast %534 : vector<8x1xi1> to vector<8x128xi1>
    %536 = vector.broadcast %cst_110 : f32 to vector<8x128xf32>
    %537 = arith.select %535, %508, %536 : vector<8x128xi1>, vector<8x128xf32>
    %538 = arith.index_cast %c5_i32 : i32 to index
    %c0_111 = arith.constant 0 : index
    %c0_112 = arith.constant 0 : index
    %539 = vector.load %arg5[%538, %c0_111, %c0_112] : memref<8x8x256xf32, #tpu.memory_space<vmem>>, vector<1x8x128xf32>
    %540 = vector.shape_cast %539 : vector<1x8x128xf32> to vector<8x128xf32>
    %541 = vector.shape_cast %537 : vector<8x128xf32> to vector<1x8x128xf32>
    tpu.vector_store %arg5[%538, %c0_111, %c0_112], %541 {strides = array<i32>} : memref<8x8x256xf32, #tpu.memory_space<vmem>>, vector<1x8x128xf32>,
    %cst_113 = arith.constant 0.000000e+00 : f32
    %542 = vector.shape_cast %473 : vector<8x1xi1> to vector<8x1xi1>
    %543 = vector.broadcast %542 : vector<8x1xi1> to vector<8x128xi1>
    %544 = vector.broadcast %cst_113 : f32 to vector<8x128xf32>
    %545 = arith.select %543, %533, %544 : vector<8x128xi1>, vector<8x128xf32>
    %546 = arith.index_cast %469 : i32 to index
    %c0_114 = arith.constant 0 : index
    %c128_115 = arith.constant 128 : index
    %547 = vector.load %arg5[%546, %c0_114, %c128_115] : memref<8x8x256xf32, #tpu.memory_space<vmem>>, vector<1x8x128xf32>
    %548 = vector.shape_cast %547 : vector<1x8x128xf32> to vector<8x128xf32>
    %549 = vector.shape_cast %545 : vector<8x128xf32> to vector<1x8x128xf32>
    tpu.vector_store %arg5[%546, %c0_114, %c128_115], %549 {strides = array<i32>} : memref<8x8x256xf32, #tpu.memory_space<vmem>>, vector<1x8x128xf32>,
    %550 = vector.shape_cast %471 : vector<8x1xi1> to vector<8x1xi1>
    %551 = vector.broadcast %550 : vector<8x1xi1> to vector<8x128xi1>
    %552 = arith.select %551, %508, %459 : vector<8x128xi1>, vector<8x128xf32>
    %553 = vector.shape_cast %471 : vector<8x1xi1> to vector<8x1xi1>
    %554 = vector.broadcast %553 : vector<8x1xi1> to vector<8x128xi1>
    %555 = arith.select %554, %506, %462 : vector<8x128xi1>, vector<8x128xf32>
    %556 = vector.shape_cast %473 : vector<8x1xi1> to vector<8x1xi1>
    %557 = vector.broadcast %556 : vector<8x1xi1> to vector<8x128xi1>
    %558 = arith.select %557, %533, %465 : vector<8x128xi1>, vector<8x128xf32>
    %559 = vector.shape_cast %473 : vector<8x1xi1> to vector<8x1xi1>
    %560 = vector.broadcast %559 : vector<8x1xi1> to vector<8x128xi1>
    %561 = arith.select %560, %531, %468 : vector<8x128xi1>, vector<8x128xf32>
    %c6_i32 = arith.constant 6 : i32
    %c7_i32_116 = arith.constant 7 : i32
    %562 = arith.subi %c7_i32_116, %c6_i32 : i32
    %563 = vector.broadcast %c6_i32 : i32 to vector<8x1xi32>
    %564 = arith.cmpi sgt, %2, %563 : vector<8x1xi32>
    %565 = vector.broadcast %562 : i32 to vector<8x1xi32>
    %566 = arith.cmpi sgt, %2, %565 : vector<8x1xi32>
    %567 = arith.index_cast %c6_i32 : i32 to index
    %c0_117 = arith.constant 0 : index
    %c0_118 = arith.constant 0 : index
    %568 = vector.load %arg1[%567, %c0_117, %c0_118] : memref<8x8x1024xf32, #tpu.memory_space<vmem>>, vector<1x8x512xf32>
    %569 = vector.shape_cast %568 : vector<1x8x512xf32> to vector<8x512xf32>
    %cst_119 = arith.constant dense<0.000000e+00> : vector<8x512xf32>
    %570 = tpu.matmul %552, %0, %cst_119 {dimension_numbers = #tpu.dot_dimension_numbers<[1], [0], [0], [1], [0, 0, 1, 1], [], []>} : vector<8x128xf32>, vector<128x512xf32>, vector<8x512xf32> -> vector<8x512xf32>
    %571 = arith.addf %569, %570 : vector<8x512xf32>
    %572 = arith.index_cast %562 : i32 to index
    %c0_120 = arith.constant 0 : index
    %c512_121 = arith.constant 512 : index
    %573 = vector.load %arg1[%572, %c0_120, %c512_121] : memref<8x8x1024xf32, #tpu.memory_space<vmem>>, vector<1x8x512xf32>
    %574 = vector.shape_cast %573 : vector<1x8x512xf32> to vector<8x512xf32>
    %cst_122 = arith.constant dense<0.000000e+00> : vector<8x512xf32>
    %575 = tpu.matmul %558, %1, %cst_122 {dimension_numbers = #tpu.dot_dimension_numbers<[1], [0], [0], [1], [0, 0, 1, 1], [], []>} : vector<8x128xf32>, vector<128x512xf32>, vector<8x512xf32> -> vector<8x512xf32>
    %576 = arith.addf %574, %575 : vector<8x512xf32>
    %577 = vector.extract_strided_slice %571 {offsets = [0, 0], sizes = [8, 128], strides = [1, 1]} : vector<8x512xf32> to vector<8x128xf32>
    %578 = arith.negf %577 : vector<8x128xf32>
    %579 = math.exp %578 : vector<8x128xf32>
    %cst_123 = arith.constant 1.000000e+00 : f32
    %580 = vector.broadcast %cst_123 : f32 to vector<8x128xf32>
    %581 = arith.addf %580, %579 : vector<8x128xf32>
    %582 = arith.divf %580, %581 : vector<8x128xf32>
    %583 = vector.extract_strided_slice %571 {offsets = [0, 128], sizes = [8, 128], strides = [1, 1]} : vector<8x512xf32> to vector<8x128xf32>
    %584 = arith.negf %583 : vector<8x128xf32>
    %585 = math.exp %584 : vector<8x128xf32>
    %cst_124 = arith.constant 1.000000e+00 : f32
    %586 = vector.broadcast %cst_124 : f32 to vector<8x128xf32>
    %587 = arith.addf %586, %585 : vector<8x128xf32>
    %588 = arith.divf %586, %587 : vector<8x128xf32>
    %589 = vector.extract_strided_slice %571 {offsets = [0, 256], sizes = [8, 128], strides = [1, 1]} : vector<8x512xf32> to vector<8x128xf32>
    %590 = math.tanh %589 : vector<8x128xf32>
    %591 = vector.extract_strided_slice %571 {offsets = [0, 384], sizes = [8, 128], strides = [1, 1]} : vector<8x512xf32> to vector<8x128xf32>
    %592 = arith.negf %591 : vector<8x128xf32>
    %593 = math.exp %592 : vector<8x128xf32>
    %cst_125 = arith.constant 1.000000e+00 : f32
    %594 = vector.broadcast %cst_125 : f32 to vector<8x128xf32>
    %595 = arith.addf %594, %593 : vector<8x128xf32>
    %596 = arith.divf %594, %595 : vector<8x128xf32>
    %597 = arith.mulf %588, %555 : vector<8x128xf32>
    %598 = arith.mulf %582, %590 : vector<8x128xf32>
    %599 = arith.addf %597, %598 : vector<8x128xf32>
    %600 = math.tanh %599 : vector<8x128xf32>
    %601 = arith.mulf %596, %600 : vector<8x128xf32>
    %602 = vector.extract_strided_slice %576 {offsets = [0, 0], sizes = [8, 128], strides = [1, 1]} : vector<8x512xf32> to vector<8x128xf32>
    %603 = arith.negf %602 : vector<8x128xf32>
    %604 = math.exp %603 : vector<8x128xf32>
    %cst_126 = arith.constant 1.000000e+00 : f32
    %605 = vector.broadcast %cst_126 : f32 to vector<8x128xf32>
    %606 = arith.addf %605, %604 : vector<8x128xf32>
    %607 = arith.divf %605, %606 : vector<8x128xf32>
    %608 = vector.extract_strided_slice %576 {offsets = [0, 128], sizes = [8, 128], strides = [1, 1]} : vector<8x512xf32> to vector<8x128xf32>
    %609 = arith.negf %608 : vector<8x128xf32>
    %610 = math.exp %609 : vector<8x128xf32>
    %cst_127 = arith.constant 1.000000e+00 : f32
    %611 = vector.broadcast %cst_127 : f32 to vector<8x128xf32>
    %612 = arith.addf %611, %610 : vector<8x128xf32>
    %613 = arith.divf %611, %612 : vector<8x128xf32>
    %614 = vector.extract_strided_slice %576 {offsets = [0, 256], sizes = [8, 128], strides = [1, 1]} : vector<8x512xf32> to vector<8x128xf32>
    %615 = math.tanh %614 : vector<8x128xf32>
    %616 = vector.extract_strided_slice %576 {offsets = [0, 384], sizes = [8, 128], strides = [1, 1]} : vector<8x512xf32> to vector<8x128xf32>
    %617 = arith.negf %616 : vector<8x128xf32>
    %618 = math.exp %617 : vector<8x128xf32>
    %cst_128 = arith.constant 1.000000e+00 : f32
    %619 = vector.broadcast %cst_128 : f32 to vector<8x128xf32>
    %620 = arith.addf %619, %618 : vector<8x128xf32>
    %621 = arith.divf %619, %620 : vector<8x128xf32>
    %622 = arith.mulf %613, %561 : vector<8x128xf32>
    %623 = arith.mulf %607, %615 : vector<8x128xf32>
    %624 = arith.addf %622, %623 : vector<8x128xf32>
    %625 = math.tanh %624 : vector<8x128xf32>
    %626 = arith.mulf %621, %625 : vector<8x128xf32>
    %cst_129 = arith.constant 0.000000e+00 : f32
    %627 = vector.shape_cast %564 : vector<8x1xi1> to vector<8x1xi1>
    %628 = vector.broadcast %627 : vector<8x1xi1> to vector<8x128xi1>
    %629 = vector.broadcast %cst_129 : f32 to vector<8x128xf32>
    %630 = arith.select %628, %601, %629 : vector<8x128xi1>, vector<8x128xf32>
    %631 = arith.index_cast %c6_i32 : i32 to index
    %c0_130 = arith.constant 0 : index
    %c0_131 = arith.constant 0 : index
    %632 = vector.load %arg5[%631, %c0_130, %c0_131] : memref<8x8x256xf32, #tpu.memory_space<vmem>>, vector<1x8x128xf32>
    %633 = vector.shape_cast %632 : vector<1x8x128xf32> to vector<8x128xf32>
    %634 = vector.shape_cast %630 : vector<8x128xf32> to vector<1x8x128xf32>
    tpu.vector_store %arg5[%631, %c0_130, %c0_131], %634 {strides = array<i32>} : memref<8x8x256xf32, #tpu.memory_space<vmem>>, vector<1x8x128xf32>,
    %cst_132 = arith.constant 0.000000e+00 : f32
    %635 = vector.shape_cast %566 : vector<8x1xi1> to vector<8x1xi1>
    %636 = vector.broadcast %635 : vector<8x1xi1> to vector<8x128xi1>
    %637 = vector.broadcast %cst_132 : f32 to vector<8x128xf32>
    %638 = arith.select %636, %626, %637 : vector<8x128xi1>, vector<8x128xf32>
    %639 = arith.index_cast %562 : i32 to index
    %c0_133 = arith.constant 0 : index
    %c128_134 = arith.constant 128 : index
    %640 = vector.load %arg5[%639, %c0_133, %c128_134] : memref<8x8x256xf32, #tpu.memory_space<vmem>>, vector<1x8x128xf32>
    %641 = vector.shape_cast %640 : vector<1x8x128xf32> to vector<8x128xf32>
    %642 = vector.shape_cast %638 : vector<8x128xf32> to vector<1x8x128xf32>
    tpu.vector_store %arg5[%639, %c0_133, %c128_134], %642 {strides = array<i32>} : memref<8x8x256xf32, #tpu.memory_space<vmem>>, vector<1x8x128xf32>,
    %643 = vector.shape_cast %564 : vector<8x1xi1> to vector<8x1xi1>
    %644 = vector.broadcast %643 : vector<8x1xi1> to vector<8x128xi1>
    %645 = arith.select %644, %601, %552 : vector<8x128xi1>, vector<8x128xf32>
    %646 = vector.shape_cast %564 : vector<8x1xi1> to vector<8x1xi1>
    %647 = vector.broadcast %646 : vector<8x1xi1> to vector<8x128xi1>
    %648 = arith.select %647, %599, %555 : vector<8x128xi1>, vector<8x128xf32>
    %649 = vector.shape_cast %566 : vector<8x1xi1> to vector<8x1xi1>
    %650 = vector.broadcast %649 : vector<8x1xi1> to vector<8x128xi1>
    %651 = arith.select %650, %626, %558 : vector<8x128xi1>, vector<8x128xf32>
    %652 = vector.shape_cast %566 : vector<8x1xi1> to vector<8x1xi1>
    %653 = vector.broadcast %652 : vector<8x1xi1> to vector<8x128xi1>
    %654 = arith.select %653, %624, %561 : vector<8x128xi1>, vector<8x128xf32>
    %c7_i32_135 = arith.constant 7 : i32
    %c7_i32_136 = arith.constant 7 : i32
    %655 = arith.subi %c7_i32_136, %c7_i32_135 : i32
    %656 = vector.broadcast %c7_i32_135 : i32 to vector<8x1xi32>
    %657 = arith.cmpi sgt, %2, %656 : vector<8x1xi32>
    %658 = vector.broadcast %655 : i32 to vector<8x1xi32>
    %659 = arith.cmpi sgt, %2, %658 : vector<8x1xi32>
    %660 = arith.index_cast %c7_i32_135 : i32 to index
    %c0_137 = arith.constant 0 : index
    %c0_138 = arith.constant 0 : index
    %661 = vector.load %arg1[%660, %c0_137, %c0_138] : memref<8x8x1024xf32, #tpu.memory_space<vmem>>, vector<1x8x512xf32>
    %662 = vector.shape_cast %661 : vector<1x8x512xf32> to vector<8x512xf32>
    %cst_139 = arith.constant dense<0.000000e+00> : vector<8x512xf32>
    %663 = tpu.matmul %645, %0, %cst_139 {dimension_numbers = #tpu.dot_dimension_numbers<[1], [0], [0], [1], [0, 0, 1, 1], [], []>} : vector<8x128xf32>, vector<128x512xf32>, vector<8x512xf32> -> vector<8x512xf32>
    %664 = arith.addf %662, %663 : vector<8x512xf32>
    %665 = arith.index_cast %655 : i32 to index
    %c0_140 = arith.constant 0 : index
    %c512_141 = arith.constant 512 : index
    %666 = vector.load %arg1[%665, %c0_140, %c512_141] : memref<8x8x1024xf32, #tpu.memory_space<vmem>>, vector<1x8x512xf32>
    %667 = vector.shape_cast %666 : vector<1x8x512xf32> to vector<8x512xf32>
    %cst_142 = arith.constant dense<0.000000e+00> : vector<8x512xf32>
    %668 = tpu.matmul %651, %1, %cst_142 {dimension_numbers = #tpu.dot_dimension_numbers<[1], [0], [0], [1], [0, 0, 1, 1], [], []>} : vector<8x128xf32>, vector<128x512xf32>, vector<8x512xf32> -> vector<8x512xf32>
    %669 = arith.addf %667, %668 : vector<8x512xf32>
    %670 = vector.extract_strided_slice %664 {offsets = [0, 0], sizes = [8, 128], strides = [1, 1]} : vector<8x512xf32> to vector<8x128xf32>
    %671 = arith.negf %670 : vector<8x128xf32>
    %672 = math.exp %671 : vector<8x128xf32>
    %cst_143 = arith.constant 1.000000e+00 : f32
    %673 = vector.broadcast %cst_143 : f32 to vector<8x128xf32>
    %674 = arith.addf %673, %672 : vector<8x128xf32>
    %675 = arith.divf %673, %674 : vector<8x128xf32>
    %676 = vector.extract_strided_slice %664 {offsets = [0, 128], sizes = [8, 128], strides = [1, 1]} : vector<8x512xf32> to vector<8x128xf32>
    %677 = arith.negf %676 : vector<8x128xf32>
    %678 = math.exp %677 : vector<8x128xf32>
    %cst_144 = arith.constant 1.000000e+00 : f32
    %679 = vector.broadcast %cst_144 : f32 to vector<8x128xf32>
    %680 = arith.addf %679, %678 : vector<8x128xf32>
    %681 = arith.divf %679, %680 : vector<8x128xf32>
    %682 = vector.extract_strided_slice %664 {offsets = [0, 256], sizes = [8, 128], strides = [1, 1]} : vector<8x512xf32> to vector<8x128xf32>
    %683 = math.tanh %682 : vector<8x128xf32>
    %684 = vector.extract_strided_slice %664 {offsets = [0, 384], sizes = [8, 128], strides = [1, 1]} : vector<8x512xf32> to vector<8x128xf32>
    %685 = arith.negf %684 : vector<8x128xf32>
    %686 = math.exp %685 : vector<8x128xf32>
    %cst_145 = arith.constant 1.000000e+00 : f32
    %687 = vector.broadcast %cst_145 : f32 to vector<8x128xf32>
    %688 = arith.addf %687, %686 : vector<8x128xf32>
    %689 = arith.divf %687, %688 : vector<8x128xf32>
    %690 = arith.mulf %681, %648 : vector<8x128xf32>
    %691 = arith.mulf %675, %683 : vector<8x128xf32>
    %692 = arith.addf %690, %691 : vector<8x128xf32>
    %693 = math.tanh %692 : vector<8x128xf32>
    %694 = arith.mulf %689, %693 : vector<8x128xf32>
    %695 = vector.extract_strided_slice %669 {offsets = [0, 0], sizes = [8, 128], strides = [1, 1]} : vector<8x512xf32> to vector<8x128xf32>
    %696 = arith.negf %695 : vector<8x128xf32>
    %697 = math.exp %696 : vector<8x128xf32>
    %cst_146 = arith.constant 1.000000e+00 : f32
    %698 = vector.broadcast %cst_146 : f32 to vector<8x128xf32>
    %699 = arith.addf %698, %697 : vector<8x128xf32>
    %700 = arith.divf %698, %699 : vector<8x128xf32>
    %701 = vector.extract_strided_slice %669 {offsets = [0, 128], sizes = [8, 128], strides = [1, 1]} : vector<8x512xf32> to vector<8x128xf32>
    %702 = arith.negf %701 : vector<8x128xf32>
    %703 = math.exp %702 : vector<8x128xf32>
    %cst_147 = arith.constant 1.000000e+00 : f32
    %704 = vector.broadcast %cst_147 : f32 to vector<8x128xf32>
    %705 = arith.addf %704, %703 : vector<8x128xf32>
    %706 = arith.divf %704, %705 : vector<8x128xf32>
    %707 = vector.extract_strided_slice %669 {offsets = [0, 256], sizes = [8, 128], strides = [1, 1]} : vector<8x512xf32> to vector<8x128xf32>
    %708 = math.tanh %707 : vector<8x128xf32>
    %709 = vector.extract_strided_slice %669 {offsets = [0, 384], sizes = [8, 128], strides = [1, 1]} : vector<8x512xf32> to vector<8x128xf32>
    %710 = arith.negf %709 : vector<8x128xf32>
    %711 = math.exp %710 : vector<8x128xf32>
    %cst_148 = arith.constant 1.000000e+00 : f32
    %712 = vector.broadcast %cst_148 : f32 to vector<8x128xf32>
    %713 = arith.addf %712, %711 : vector<8x128xf32>
    %714 = arith.divf %712, %713 : vector<8x128xf32>
    %715 = arith.mulf %706, %654 : vector<8x128xf32>
    %716 = arith.mulf %700, %708 : vector<8x128xf32>
    %717 = arith.addf %715, %716 : vector<8x128xf32>
    %718 = math.tanh %717 : vector<8x128xf32>
    %719 = arith.mulf %714, %718 : vector<8x128xf32>
    %cst_149 = arith.constant 0.000000e+00 : f32
    %720 = vector.shape_cast %657 : vector<8x1xi1> to vector<8x1xi1>
    %721 = vector.broadcast %720 : vector<8x1xi1> to vector<8x128xi1>
    %722 = vector.broadcast %cst_149 : f32 to vector<8x128xf32>
    %723 = arith.select %721, %694, %722 : vector<8x128xi1>, vector<8x128xf32>
    %724 = arith.index_cast %c7_i32_135 : i32 to index
    %c0_150 = arith.constant 0 : index
    %c0_151 = arith.constant 0 : index
    %725 = vector.load %arg5[%724, %c0_150, %c0_151] : memref<8x8x256xf32, #tpu.memory_space<vmem>>, vector<1x8x128xf32>
    %726 = vector.shape_cast %725 : vector<1x8x128xf32> to vector<8x128xf32>
    %727 = vector.shape_cast %723 : vector<8x128xf32> to vector<1x8x128xf32>
    tpu.vector_store %arg5[%724, %c0_150, %c0_151], %727 {strides = array<i32>} : memref<8x8x256xf32, #tpu.memory_space<vmem>>, vector<1x8x128xf32>,
    %cst_152 = arith.constant 0.000000e+00 : f32
    %728 = vector.shape_cast %659 : vector<8x1xi1> to vector<8x1xi1>
    %729 = vector.broadcast %728 : vector<8x1xi1> to vector<8x128xi1>
    %730 = vector.broadcast %cst_152 : f32 to vector<8x128xf32>
    %731 = arith.select %729, %719, %730 : vector<8x128xi1>, vector<8x128xf32>
    %732 = arith.index_cast %655 : i32 to index
    %c0_153 = arith.constant 0 : index
    %c128_154 = arith.constant 128 : index
    %733 = vector.load %arg5[%732, %c0_153, %c128_154] : memref<8x8x256xf32, #tpu.memory_space<vmem>>, vector<1x8x128xf32>
    %734 = vector.shape_cast %733 : vector<1x8x128xf32> to vector<8x128xf32>
    %735 = vector.shape_cast %731 : vector<8x128xf32> to vector<1x8x128xf32>
    tpu.vector_store %arg5[%732, %c0_153, %c128_154], %735 {strides = array<i32>} : memref<8x8x256xf32, #tpu.memory_space<vmem>>, vector<1x8x128xf32>,
    %736 = vector.shape_cast %657 : vector<8x1xi1> to vector<8x1xi1>
    %737 = vector.broadcast %736 : vector<8x1xi1> to vector<8x128xi1>
    %738 = arith.select %737, %694, %645 : vector<8x128xi1>, vector<8x128xf32>
    %739 = vector.shape_cast %657 : vector<8x1xi1> to vector<8x1xi1>
    %740 = vector.broadcast %739 : vector<8x1xi1> to vector<8x128xi1>
    %741 = arith.select %740, %692, %648 : vector<8x128xi1>, vector<8x128xf32>
    %742 = vector.shape_cast %659 : vector<8x1xi1> to vector<8x1xi1>
    %743 = vector.broadcast %742 : vector<8x1xi1> to vector<8x128xi1>
    %744 = arith.select %743, %719, %651 : vector<8x128xi1>, vector<8x128xf32>
    %745 = vector.shape_cast %659 : vector<8x1xi1> to vector<8x1xi1>
    %746 = vector.broadcast %745 : vector<8x1xi1> to vector<8x128xi1>
    %747 = arith.select %746, %717, %654 : vector<8x128xi1>, vector<8x128xf32>
    %c8_i32 = arith.constant 8 : i32
    %c0_155 = arith.constant 0 : index
    %c0_156 = arith.constant 0 : index
    %748 = vector.load %arg6[%c0_155, %c0_156] : memref<8x256xf32, #tpu.memory_space<vmem>>, vector<8x128xf32>
    tpu.vector_store %arg6[%c0_155, %c0_156], %738 {strides = array<i32>} : memref<8x256xf32, #tpu.memory_space<vmem>>, vector<8x128xf32>,
    %c0_157 = arith.constant 0 : index
    %c128_158 = arith.constant 128 : index
    %749 = vector.load %arg6[%c0_157, %c128_158] : memref<8x256xf32, #tpu.memory_space<vmem>>, vector<8x128xf32>
    tpu.vector_store %arg6[%c0_157, %c128_158], %744 {strides = array<i32>} : memref<8x256xf32, #tpu.memory_space<vmem>>, vector<8x128xf32>,
    return
  }
  func.func @transform_0(%arg0: i32) -> (i32, i32, i32) {
    %c0_i32 = arith.constant 0 : i32
    %c0_i32_0 = arith.constant 0 : i32
    %c0_i32_1 = arith.constant 0 : i32
    return %c0_i32, %arg0, %c0_i32_0 : i32, i32, i32
  }
  func.func @transform_1(%arg0: i32) -> (i32, i32) {
    %c0_i32 = arith.constant 0 : i32
    %c0_i32_0 = arith.constant 0 : i32
    return %arg0, %c0_i32 : i32, i32
  }
  func.func @transform_2(%arg0: i32) -> (i32, i32) {
    %c0_i32 = arith.constant 0 : i32
    %c0_i32_0 = arith.constant 0 : i32
    %c0_i32_1 = arith.constant 0 : i32
    return %c0_i32, %c0_i32_0 : i32, i32
  }
  func.func @transform_3(%arg0: i32) -> (i32, i32) {
    %c0_i32 = arith.constant 0 : i32
    %c0_i32_0 = arith.constant 0 : i32
    %c0_i32_1 = arith.constant 0 : i32
    return %c0_i32, %c0_i32_0 : i32, i32
  }
  func.func @transform_4(%arg0: i32) -> (i32, i32, i32) {
    %c0_i32 = arith.constant 0 : i32
    %c0_i32_0 = arith.constant 0 : i32
    %c0_i32_1 = arith.constant 0 : i32
    return %c0_i32, %arg0, %c0_i32_0 : i32, i32, i32
  }
  func.func @transform_5(%arg0: i32) -> (i32, i32) {
    %c0_i32 = arith.constant 0 : i32
    %c0_i32_0 = arith.constant 0 : i32
    return %arg0, %c0_i32 : i32, i32
  }
}

</mosaic_0001>

<llo_original>
// kernel: encoder_forward.1
$region0: #{encoder_forward.1}
  #allocation0 [shape = 'u32[]', space=smem, size = 0x4, offset = 0x4, fixed_abs, tag = 'smem constant byte address 0x4 - core index']
  #allocation1 [shape = 'u32[72,128]{1,0:T(1,128)}', space=vmem, size = 0x9000, scoped, tag = 'internal scratch']
  %s0 = inlined_call_operand.vmem [shape: f32[8,8,1024], index: 0, kind: input, shape index: {}]
  %s1 = inlined_call_operand.vmem [shape: s32[8,1], index: 1, kind: input, shape index: {}]
  %s2 = inlined_call_operand.vmem [shape: f32[128,512], index: 2, kind: input, shape index: {}]
  %s3 = inlined_call_operand.vmem [shape: f32[128,512], index: 3, kind: input, shape index: {}]
  %s4 = inlined_call_operand.vmem [shape: f32[8,8,256], index: 4, kind: output, shape index: {0}]
  %s5 = inlined_call_operand.vmem [shape: f32[8,256], index: 5, kind: output, shape index: {1}]
  %6 = xla_tuple %s4, %s5
  %s7 = sld [smem:[#allocation0]]
  $region34: #{encoder_forward.1} parent=0
    _
  %s9 = ssub.s32 1, %s7
  %s10 = scalar_select 0, %s9, %s7
  // Predicated region
  $region2: #{encoder_forward.1} parent=0 // pred_check
    _
  $region3: #{encoder_forward.1} parent=0 // pred_check_branch
    %12 = sbr.rel (0) target = $region5
  $region4: #{encoder_forward.1} parent=0 // pred_region
    _
  $region5: #{encoder_forward.1} parent=0 // pred_fallthru
    _
  // Predicated region
  $region6: #{encoder_forward.1} parent=0 // pred_check
    _
  $region7: #{encoder_forward.1} parent=0 // pred_check_branch
    %14 = sbr.rel (0) target = $region9
  $region8: #{encoder_forward.1} parent=0 // pred_region
    _
  $region9: #{encoder_forward.1} parent=0 // pred_fallthru
    _
  // Predicated region
  $region10: #{encoder_forward.1} parent=0 // pred_check
    _
  $region11: #{encoder_forward.1} parent=0 // pred_check_branch
    %16 = sbr.rel (0) target = $region13
  $region12: #{encoder_forward.1} parent=0 // pred_region
    _
  $region13: #{encoder_forward.1} parent=0 // pred_fallthru
    _
  // Predicated region
  $region14: #{encoder_forward.1} parent=0 // pred_check
    _
  $region15: #{encoder_forward.1} parent=0 // pred_check_branch
    %18 = sbr.rel (0) target = $region17
  $region16: #{encoder_forward.1} parent=0 // pred_region
    _
  $region17: #{encoder_forward.1} parent=0 // pred_fallthru
    _
  %v19 = vld [vmem:[%s2] sm:$0xff]
  %v20 = vld [vmem:[%s2 + $0x8] sm:$0xff]
  %v21 = vld [vmem:[%s2 + $0x10] sm:$0xff]
  %v22 = vld [vmem:[%s2 + $0x18] sm:$0xff]
  %v23 = vld [vmem:[%s2 + $0x20] sm:$0xff]
  %v24 = vld [vmem:[%s2 + $0x28] sm:$0xff]
  %v25 = vld [vmem:[%s2 + $0x30] sm:$0xff]
  %v26 = vld [vmem:[%s2 + $0x38] sm:$0xff]
  %v27 = vld [vmem:[%s2 + $0x40] sm:$0xff]
  %v28 = vld [vmem:[%s2 + $0x48] sm:$0xff]
  %v29 = vld [vmem:[%s2 + $0x50] sm:$0xff]
  %v30 = vld [vmem:[%s2 + $0x58] sm:$0xff]
  %v31 = vld [vmem:[%s2 + $0x60] sm:$0xff]
  %v32 = vld [vmem:[%s2 + $0x68] sm:$0xff]
  %v33 = vld [vmem:[%s2 + $0x70] sm:$0xff]
  %v34 = vld [vmem:[%s2 + $0x78] sm:$0xff]
  %v35 = vld [vmem:[%s2 + $0x80] sm:$0xff]
  %v36 = vld [vmem:[%s2 + $0x88] sm:$0xff]
  %v37 = vld [vmem:[%s2 + $0x90] sm:$0xff]
  %v38 = vld [vmem:[%s2 + $0x98] sm:$0xff]
  %v39 = vld [vmem:[%s2 + $0xa0] sm:$0xff]
  %v40 = vld [vmem:[%s2 + $0xa8] sm:$0xff]
  %v41 = vld [vmem:[%s2 + $0xb0] sm:$0xff]
  %v42 = vld [vmem:[%s2 + $0xb8] sm:$0xff]
  %v43 = vld [vmem:[%s2 + $0xc0] sm:$0xff]
  %v44 = vld [vmem:[%s2 + $0xc8] sm:$0xff]
  %v45 = vld [vmem:[%s2 + $0xd0] sm:$0xff]
  %v46 = vld [vmem:[%s2 + $0xd8] sm:$0xff]
  %v47 = vld [vmem:[%s2 + $0xe0] sm:$0xff]
  %v48 = vld [vmem:[%s2 + $0xe8] sm:$0xff]
  %v49 = vld [vmem:[%s2 + $0xf0] sm:$0xff]
  %v50 = vld [vmem:[%s2 + $0xf8] sm:$0xff]
  %v51 = vld [vmem:[%s2 + $0x100] sm:$0xff]
  %v52 = vld [vmem:[%s2 + $0x108] sm:$0xff]
  %v53 = vld [vmem:[%s2 + $0x110] sm:$0xff]
  %v54 = vld [vmem:[%s2 + $0x118] sm:$0xff]
  %v55 = vld [vmem:[%s2 + $0x120] sm:$0xff]
  %v56 = vld [vmem:[%s2 + $0x128] sm:$0xff]
  %v57 = vld [vmem:[%s2 + $0x130] sm:$0xff]
  %v58 = vld [vmem:[%s2 + $0x138] sm:$0xff]
  %v59 = vld [vmem:[%s2 + $0x140] sm:$0xff]
  %v60 = vld [vmem:[%s2 + $0x148] sm:$0xff]
  %v61 = vld [vmem:[%s2 + $0x150] sm:$0xff]
  %v62 = vld [vmem:[%s2 + $0x158] sm:$0xff]
  %v63 = vld [vmem:[%s2 + $0x160] sm:$0xff]
  %v64 = vld [vmem:[%s2 + $0x168] sm:$0xff]
  %v65 = vld [vmem:[%s2 + $0x170] sm:$0xff]
  %v66 = vld [vmem:[%s2 + $0x178] sm:$0xff]
  %v67 = vld [vmem:[%s2 + $0x180] sm:$0xff]
  %v68 = vld [vmem:[%s2 + $0x188] sm:$0xff]
  %v69 = vld [vmem:[%s2 + $0x190] sm:$0xff]
  %v70 = vld [vmem:[%s2 + $0x198] sm:$0xff]
  %v71 = vld [vmem:[%s2 + $0x1a0] sm:$0xff]
  %v72 = vld [vmem:[%s2 + $0x1a8] sm:$0xff]
  %v73 = vld [vmem:[%s2 + $0x1b0] sm:$0xff]
  %v74 = vld [vmem:[%s2 + $0x1b8] sm:$0xff]
  %v75 = vld [vmem:[%s2 + $0x1c0] sm:$0xff]
  %v76 = vld [vmem:[%s2 + $0x1c8] sm:$0xff]
  %v77 = vld [vmem:[%s2 + $0x1d0] sm:$0xff]
  %v78 = vld [vmem:[%s2 + $0x1d8] sm:$0xff]
  %v79 = vld [vmem:[%s2 + $0x1e0] sm:$0xff]
  %v80 = vld [vmem:[%s2 + $0x1e8] sm:$0xff]
  %v81 = vld [vmem:[%s2 + $0x1f0] sm:$0xff]
  %v82 = vld [vmem:[%s2 + $0x1f8] sm:$0xff]
  %v83 = vld [vmem:[%s3] sm:$0xff]
  %v84 = vld [vmem:[%s3 + $0x8] sm:$0xff]
  %v85 = vld [vmem:[%s3 + $0x10] sm:$0xff]
  %v86 = vld [vmem:[%s3 + $0x18] sm:$0xff]
  %v87 = vld [vmem:[%s3 + $0x20] sm:$0xff]
  %v88 = vld [vmem:[%s3 + $0x28] sm:$0xff]
  %v89 = vld [vmem:[%s3 + $0x30] sm:$0xff]
  %v90 = vld [vmem:[%s3 + $0x38] sm:$0xff]
  %v91 = vld [vmem:[%s3 + $0x40] sm:$0xff]
  %v92 = vld [vmem:[%s3 + $0x48] sm:$0xff]
  %v93 = vld [vmem:[%s3 + $0x50] sm:$0xff]
  %v94 = vld [vmem:[%s3 + $0x58] sm:$0xff]
  %v95 = vld [vmem:[%s3 + $0x60] sm:$0xff]
  %v96 = vld [vmem:[%s3 + $0x68] sm:$0xff]
  %v97 = vld [vmem:[%s3 + $0x70] sm:$0xff]
  %v98 = vld [vmem:[%s3 + $0x78] sm:$0xff]
  %v99 = vld [vmem:[%s3 + $0x80] sm:$0xff]
  %v100 = vld [vmem:[%s3 + $0x88] sm:$0xff]
  %v101 = vld [vmem:[%s3 + $0x90] sm:$0xff]
  %v102 = vld [vmem:[%s3 + $0x98] sm:$0xff]
  %v103 = vld [vmem:[%s3 + $0xa0] sm:$0xff]
  %v104 = vld [vmem:[%s3 + $0xa8] sm:$0xff]
  %v105 = vld [vmem:[%s3 + $0xb0] sm:$0xff]
  %v106 = vld [vmem:[%s3 + $0xb8] sm:$0xff]
  %v107 = vld [vmem:[%s3 + $0xc0] sm:$0xff]
  %v108 = vld [vmem:[%s3 + $0xc8] sm:$0xff]
  %v109 = vld [vmem:[%s3 + $0xd0] sm:$0xff]
  %v110 = vld [vmem:[%s3 + $0xd8] sm:$0xff]
  %v111 = vld [vmem:[%s3 + $0xe0] sm:$0xff]
  %v112 = vld [vmem:[%s3 + $0xe8] sm:$0xff]
  %v113 = vld [vmem:[%s3 + $0xf0] sm:$0xff]
  %v114 = vld [vmem:[%s3 + $0xf8] sm:$0xff]
  %v115 = vld [vmem:[%s3 + $0x100] sm:$0xff]
  %v116 = vld [vmem:[%s3 + $0x108] sm:$0xff]
  %v117 = vld [vmem:[%s3 + $0x110] sm:$0xff]
  %v118 = vld [vmem:[%s3 + $0x118] sm:$0xff]
  %v119 = vld [vmem:[%s3 + $0x120] sm:$0xff]
  %v120 = vld [vmem:[%s3 + $0x128] sm:$0xff]
  %v121 = vld [vmem:[%s3 + $0x130] sm:$0xff]
  %v122 = vld [vmem:[%s3 + $0x138] sm:$0xff]
  %v123 = vld [vmem:[%s3 + $0x140] sm:$0xff]
  %v124 = vld [vmem:[%s3 + $0x148] sm:$0xff]
  %v125 = vld [vmem:[%s3 + $0x150] sm:$0xff]
  %v126 = vld [vmem:[%s3 + $0x158] sm:$0xff]
  %v127 = vld [vmem:[%s3 + $0x160] sm:$0xff]
  %v128 = vld [vmem:[%s3 + $0x168] sm:$0xff]
  %v129 = vld [vmem:[%s3 + $0x170] sm:$0xff]
  %v130 = vld [vmem:[%s3 + $0x178] sm:$0xff]
  %v131 = vld [vmem:[%s3 + $0x180] sm:$0xff]
  %v132 = vld [vmem:[%s3 + $0x188] sm:$0xff]
  %v133 = vld [vmem:[%s3 + $0x190] sm:$0xff]
  %v134 = vld [vmem:[%s3 + $0x198] sm:$0xff]
  %v135 = vld [vmem:[%s3 + $0x1a0] sm:$0xff]
  %v136 = vld [vmem:[%s3 + $0x1a8] sm:$0xff]
  %v137 = vld [vmem:[%s3 + $0x1b0] sm:$0xff]
  %v138 = vld [vmem:[%s3 + $0x1b8] sm:$0xff]
  %v139 = vld [vmem:[%s3 + $0x1c0] sm:$0xff]
  %v140 = vld [vmem:[%s3 + $0x1c8] sm:$0xff]
  %v141 = vld [vmem:[%s3 + $0x1d0] sm:$0xff]
  %v142 = vld [vmem:[%s3 + $0x1d8] sm:$0xff]
  %v143 = vld [vmem:[%s3 + $0x1e0] sm:$0xff]
  %v144 = vld [vmem:[%s3 + $0x1e8] sm:$0xff]
  %v145 = vld [vmem:[%s3 + $0x1f0] sm:$0xff]
  %v146 = vld [vmem:[%s3 + $0x1f8] sm:$0xff]
  %v147 = vld [vmem:[%s1] sm:$0xff]
  %vm148 = vcmp.gt.s32.totalorder %v147, 0
  %vm149 = vcmp.gt.s32.totalorder %v147, 7
  %v150 = vld [vmem:[%s0] sm:$0xff]
  %v151 = vld [vmem:[%s0 + $0x8] sm:$0xff]
  %v152 = vld [vmem:[%s0 + $0x10] sm:$0xff]
  %v153 = vld [vmem:[%s0 + $0x18] sm:$0xff]
  %154 = vmatpush.msra.mxu0 %v79
  %155 = vmatpush.msra.mxu0 %v75
  %156 = vmatpush.msra.mxu0 %v71
  %157 = vmatpush.msra.mxu0 %v67
  %158 = vmatpush.msra.mxu0 %v63
  %159 = vmatpush.msra.mxu0 %v59
  %160 = vmatpush.msra.mxu0 %v55
  %161 = vmatpush.msra.mxu0 %v51
  %162 = vmatpush.msra.mxu0 %v47
  %163 = vmatpush.msra.mxu0 %v43
  %164 = vmatpush.msra.mxu0 %v39
  %165 = vmatpush.msra.mxu0 %v35
  %166 = vmatpush.msra.mxu0 %v31
  %167 = vmatpush.msra.mxu0 %v27
  %168 = vmatpush.msra.mxu0 %v23
  %169 = vmatpush.msra.mxu0 %v19
  %170 = vmatmul.f32.gmra.mxu0 0.0
  %v171 = vpop.f32.mrf.mxu0
  %v172 = vadd.f32 0.0, %v171
  %173 = vdwg.mxu0
  %174 = vmatpush.msra.mxu0 %v80
  %175 = vmatpush.msra.mxu0 %v76
  %176 = vmatpush.msra.mxu0 %v72
  %177 = vmatpush.msra.mxu0 %v68
  %178 = vmatpush.msra.mxu0 %v64
  %179 = vmatpush.msra.mxu0 %v60
  %180 = vmatpush.msra.mxu0 %v56
  %181 = vmatpush.msra.mxu0 %v52
  %182 = vmatpush.msra.mxu0 %v48
  %183 = vmatpush.msra.mxu0 %v44
  %184 = vmatpush.msra.mxu0 %v40
  %185 = vmatpush.msra.mxu0 %v36
  %186 = vmatpush.msra.mxu0 %v32
  %187 = vmatpush.msra.mxu0 %v28
  %188 = vmatpush.msra.mxu0 %v24
  %189 = vmatpush.msra.mxu0 %v20
  %190 = vmatmul.f32.gmra.mxu0 0.0
  %v191 = vpop.f32.mrf.mxu0
  %v192 = vadd.f32 0.0, %v191
  %193 = vdwg.mxu0
  %194 = vmatpush.msra.mxu0 %v81
  %195 = vmatpush.msra.mxu0 %v77
  %196 = vmatpush.msra.mxu0 %v73
  %197 = vmatpush.msra.mxu0 %v69
  %198 = vmatpush.msra.mxu0 %v65
  %199 = vmatpush.msra.mxu0 %v61
  %200 = vmatpush.msra.mxu0 %v57
  %201 = vmatpush.msra.mxu0 %v53
  %202 = vmatpush.msra.mxu0 %v49
  %203 = vmatpush.msra.mxu0 %v45
  %204 = vmatpush.msra.mxu0 %v41
  %205 = vmatpush.msra.mxu0 %v37
  %206 = vmatpush.msra.mxu0 %v33
  %207 = vmatpush.msra.mxu0 %v29
  %208 = vmatpush.msra.mxu0 %v25
  %209 = vmatpush.msra.mxu0 %v21
  %210 = vmatmul.f32.gmra.mxu0 0.0
  %v211 = vpop.f32.mrf.mxu0
  %v212 = vadd.f32 0.0, %v211
  %213 = vdwg.mxu0
  %214 = vmatpush.msra.mxu0 %v82
  %215 = vmatpush.msra.mxu0 %v78
  %216 = vmatpush.msra.mxu0 %v74
  %217 = vmatpush.msra.mxu0 %v70
  %218 = vmatpush.msra.mxu0 %v66
  %219 = vmatpush.msra.mxu0 %v62
  %220 = vmatpush.msra.mxu0 %v58
  %221 = vmatpush.msra.mxu0 %v54
  %222 = vmatpush.msra.mxu0 %v50
  %223 = vmatpush.msra.mxu0 %v46
  %224 = vmatpush.msra.mxu0 %v42
  %225 = vmatpush.msra.mxu0 %v38
  %226 = vmatpush.msra.mxu0 %v34
  %227 = vmatpush.msra.mxu0 %v30
  %228 = vmatpush.msra.mxu0 %v26
  %229 = vmatpush.msra.mxu0 %v22
  %230 = vmatmul.f32.gmra.mxu0 0.0
  %v231 = vpop.f32.mrf.mxu0
  %v232 = vadd.f32 0.0, %v231
  %233 = vdwg.mxu0
  %v234 = vadd.f32 %v150, %v172
  %v235 = vadd.f32 %v151, %v192
  %v236 = vadd.f32 %v152, %v212
  %v237 = vadd.f32 %v153, %v232
  %s238 = scalar_lea.vmem %s0, 448
  %v239 = vld [vmem:[%s238 + $0x20] sm:$0xff]
  %v240 = vld [vmem:[%s238 + $0x28] sm:$0xff]
  %v241 = vld [vmem:[%s238 + $0x30] sm:$0xff]
  %v242 = vld [vmem:[%s238 + $0x38] sm:$0xff]
  %243 = vmatpush.msra.mxu0 %v143
  %244 = vmatpush.msra.mxu0 %v139
  %245 = vmatpush.msra.mxu0 %v135
  %246 = vmatpush.msra.mxu0 %v131
  %247 = vmatpush.msra.mxu0 %v127
  %248 = vmatpush.msra.mxu0 %v123
  %249 = vmatpush.msra.mxu0 %v119
  %250 = vmatpush.msra.mxu0 %v115
  %251 = vmatpush.msra.mxu0 %v111
  %252 = vmatpush.msra.mxu0 %v107
  %253 = vmatpush.msra.mxu0 %v103
  %254 = vmatpush.msra.mxu0 %v99
  %255 = vmatpush.msra.mxu0 %v95
  %256 = vmatpush.msra.mxu0 %v91
  %257 = vmatpush.msra.mxu0 %v87
  %258 = vmatpush.msra.mxu0 %v83
  %259 = vmatmul.f32.gmra.mxu0 0.0
  %v260 = vpop.f32.mrf.mxu0
  %v261 = vadd.f32 0.0, %v260
  %262 = vdwg.mxu0
  %263 = vmatpush.msra.mxu0 %v144
  %264 = vmatpush.msra.mxu0 %v140
  %265 = vmatpush.msra.mxu0 %v136
  %266 = vmatpush.msra.mxu0 %v132
  %267 = vmatpush.msra.mxu0 %v128
  %268 = vmatpush.msra.mxu0 %v124
  %269 = vmatpush.msra.mxu0 %v120
  %270 = vmatpush.msra.mxu0 %v116
  %271 = vmatpush.msra.mxu0 %v112
  %272 = vmatpush.msra.mxu0 %v108
  %273 = vmatpush.msra.mxu0 %v104
  %274 = vmatpush.msra.mxu0 %v100
  %275 = vmatpush.msra.mxu0 %v96
  %276 = vmatpush.msra.mxu0 %v92
  %277 = vmatpush.msra.mxu0 %v88
  %278 = vmatpush.msra.mxu0 %v84
  %279 = vmatmul.f32.gmra.mxu0 0.0
  %v280 = vpop.f32.mrf.mxu0
  %v281 = vadd.f32 0.0, %v280
  %282 = vdwg.mxu0
  %283 = vmatpush.msra.mxu0 %v145
  %284 = vmatpush.msra.mxu0 %v141
  %285 = vmatpush.msra.mxu0 %v137
  %286 = vmatpush.msra.mxu0 %v133
  %287 = vmatpush.msra.mxu0 %v129
  %288 = vmatpush.msra.mxu0 %v125
  %289 = vmatpush.msra.mxu0 %v121
  %290 = vmatpush.msra.mxu0 %v117
  %291 = vmatpush.msra.mxu0 %v113
  %292 = vmatpush.msra.mxu0 %v109
  %293 = vmatpush.msra.mxu0 %v105
  %294 = vmatpush.msra.mxu0 %v101
  %295 = vmatpush.msra.mxu0 %v97
  %296 = vmatpush.msra.mxu0 %v93
  %297 = vmatpush.msra.mxu0 %v89
  %298 = vmatpush.msra.mxu0 %v85
  %299 = vmatmul.f32.gmra.mxu0 0.0
  %v300 = vpop.f32.mrf.mxu0
  %v301 = vadd.f32 0.0, %v300
  %302 = vdwg.mxu0
  %303 = vmatpush.msra.mxu0 %v146
  %304 = vmatpush.msra.mxu0 %v142
  %305 = vmatpush.msra.mxu0 %v138
  %306 = vmatpush.msra.mxu0 %v134
  %307 = vmatpush.msra.mxu0 %v130
  %308 = vmatpush.msra.mxu0 %v126
  %309 = vmatpush.msra.mxu0 %v122
  %310 = vmatpush.msra.mxu0 %v118
  %311 = vmatpush.msra.mxu0 %v114
  %312 = vmatpush.msra.mxu0 %v110
  %313 = vmatpush.msra.mxu0 %v106
  %314 = vmatpush.msra.mxu0 %v102
  %315 = vmatpush.msra.mxu0 %v98
  %316 = vmatpush.msra.mxu0 %v94
  %317 = vmatpush.msra.mxu0 %v90
  %318 = vmatpush.msra.mxu0 %v86
  %319 = vmatmul.f32.gmra.mxu0 0.0
  %v320 = vpop.f32.mrf.mxu0
  %v321 = vadd.f32 0.0, %v320
  %322 = vdwg.mxu0
  %v323 = vadd.f32 %v239, %v261
  %v324 = vadd.f32 %v240, %v281
  %v325 = vadd.f32 %v241, %v301
  %v326 = vadd.f32 %v242, %v321
  %v327 = vxor.u32 %v234, 2147483648
  %v328 = vmul.f32 %v327, 1.442695
  %v329 = vpow.pop %v328
  %v330 = vadd.f32 %v329, 1.0
  %v331 = vrcp.pop %v330
  %v332 = vmul.f32 %v330, %v331
  %v333 = vsub.f32 1.0, %v332
  %v334 = vmul.f32 %v331, %v333
  %v335 = vadd.f32 %v331, %v334
  %vm336 = vweird.f32 %v330
  %vm337 = vweird.f32 %v331
  %vm338 = vmor %vm336, %vm337
  %v339 = vsel %vm338, %v331, %v335
  %v340 = vand.u32 2147483647, %v330
  %vm341 = vcmp.eq.f32.partialorder %v340, 8.507059e+37
  %v342 = vand.u32 %v330, 2147483648
  %v343 = vor.u32 1.1754944e-38, %v342
  %v344 = vsel %vm341, %v343, %v339
  %v345 = vmul.f32 1.0, %v344
  %v346 = vxor.u32 %v235, 2147483648
  %v347 = vmul.f32 %v346, 1.442695
  %v348 = vpow.pop %v347
  %v349 = vadd.f32 %v348, 1.0
  %v350 = vrcp.pop %v349
  %v351 = vmul.f32 %v349, %v350
  %v352 = vsub.f32 1.0, %v351
  %v353 = vmul.f32 %v350, %v352
  %v354 = vadd.f32 %v350, %v353
  %vm355 = vweird.f32 %v349
  %vm356 = vweird.f32 %v350
  %vm357 = vmor %vm355, %vm356
  %v358 = vsel %vm357, %v350, %v354
  %v359 = vand.u32 2147483647, %v349
  %vm360 = vcmp.eq.f32.partialorder %v359, 8.507059e+37
  %v361 = vand.u32 %v349, 2147483648
  %v362 = vor.u32 1.1754944e-38, %v361
  %v363 = vsel %vm360, %v362, %v358
  %v364 = vmul.f32 1.0, %v363
  %v365 = vtanh.pop %v236
  %v366 = vxor.u32 %v237, 2147483648
  %v367 = vmul.f32 %v366, 1.442695
  %v368 = vpow.pop %v367
  %v369 = vadd.f32 %v368, 1.0
  %v370 = vrcp.pop %v369
  %v371 = vmul.f32 %v369, %v370
  %v372 = vsub.f32 1.0, %v371
  %v373 = vmul.f32 %v370, %v372
  %v374 = vadd.f32 %v370, %v373
  %vm375 = vweird.f32 %v369
  %vm376 = vweird.f32 %v370
  %vm377 = vmor %vm375, %vm376
  %v378 = vsel %vm377, %v370, %v374
  %v379 = vand.u32 2147483647, %v369
  %vm380 = vcmp.eq.f32.partialorder %v379, 8.507059e+37
  %v381 = vand.u32 %v369, 2147483648
  %v382 = vor.u32 1.1754944e-38, %v381
  %v383 = vsel %vm380, %v382, %v378
  %v384 = vmul.f32 1.0, %v383
  %v385 = vmul.f32 %v364, 0.0
  %v386 = vmul.f32 %v345, %v365
  %v387 = vadd.f32 %v385, %v386
  %v388 = vtanh.pop %v387
  %v389 = vmul.f32 %v384, %v388
  %v390 = vxor.u32 %v323, 2147483648
  %v391 = vmul.f32 %v390, 1.442695
  %v392 = vpow.pop %v391
  %v393 = vadd.f32 %v392, 1.0
  %v394 = vrcp.pop %v393
  %v395 = vmul.f32 %v393, %v394
  %v396 = vsub.f32 1.0, %v395
  %v397 = vmul.f32 %v394, %v396
  %v398 = vadd.f32 %v394, %v397
  %vm399 = vweird.f32 %v393
  %vm400 = vweird.f32 %v394
  %vm401 = vmor %vm399, %vm400
  %v402 = vsel %vm401, %v394, %v398
  %v403 = vand.u32 2147483647, %v393
  %vm404 = vcmp.eq.f32.partialorder %v403, 8.507059e+37
  %v405 = vand.u32 %v393, 2147483648
  %v406 = vor.u32 1.1754944e-38, %v405
  %v407 = vsel %vm404, %v406, %v402
  %v408 = vmul.f32 1.0, %v407
  %v409 = vxor.u32 %v324, 2147483648
  %v410 = vmul.f32 %v409, 1.442695
  %v411 = vpow.pop %v410
  %v412 = vadd.f32 %v411, 1.0
  %v413 = vrcp.pop %v412
  %v414 = vmul.f32 %v412, %v413
  %v415 = vsub.f32 1.0, %v414
  %v416 = vmul.f32 %v413, %v415
  %v417 = vadd.f32 %v413, %v416
  %vm418 = vweird.f32 %v412
  %vm419 = vweird.f32 %v413
  %vm420 = vmor %vm418, %vm419
  %v421 = vsel %vm420, %v413, %v417
  %v422 = vand.u32 2147483647, %v412
  %vm423 = vcmp.eq.f32.partialorder %v422, 8.507059e+37
  %v424 = vand.u32 %v412, 2147483648
  %v425 = vor.u32 1.1754944e-38, %v424
  %v426 = vsel %vm423, %v425, %v421
  %v427 = vmul.f32 1.0, %v426
  %v428 = vtanh.pop %v325
  %v429 = vxor.u32 %v326, 2147483648
  %v430 = vmul.f32 %v429, 1.442695
  %v431 = vpow.pop %v430
  %v432 = vadd.f32 %v431, 1.0
  %v433 = vrcp.pop %v432
  %v434 = vmul.f32 %v432, %v433
  %v435 = vsub.f32 1.0, %v434
  %v436 = vmul.f32 %v433, %v435
  %v437 = vadd.f32 %v433, %v436
  %vm438 = vweird.f32 %v432
  %vm439 = vweird.f32 %v433
  %vm440 = vmor %vm438, %vm439
  %v441 = vsel %vm440, %v433, %v437
  %v442 = vand.u32 2147483647, %v432
  %vm443 = vcmp.eq.f32.partialorder %v442, 8.507059e+37
  %v444 = vand.u32 %v432, 2147483648
  %v445 = vor.u32 1.1754944e-38, %v444
  %v446 = vsel %vm443, %v445, %v441
  %v447 = vmul.f32 1.0, %v446
  %v448 = vmul.f32 %v427, 0.0
  %v449 = vmul.f32 %v408, %v428
  %v450 = vadd.f32 %v448, %v449
  %v451 = vtanh.pop %v450
  %v452 = vmul.f32 %v447, %v451
  %v453 = vsel %vm148, 1, 0
  %454 = vset.pattern.permute.xlu0 0
  %455 = vperm.xlu0 %454, %v453
  %v456 = vpop.permute.xlu0 %455
  %vm457 = vcmp.eq.s32.totalorder %v456, 1
  %v458 = vsel %vm457, %v389, 0.0
  %459 = vst [vmem:[%s4] sm:$0xff] %v458
  %v460 = vsel %vm149, 1, 0
  %461 = vset.pattern.permute.xlu0 0
  %462 = vperm.xlu0 %461, %v460
  %v463 = vpop.permute.xlu0 %462
  %vm464 = vcmp.eq.s32.totalorder %v463, 1
  %v465 = vsel %vm464, %v452, 0.0
  %s466 = scalar_lea.vmem %s4, 112
  %467 = vst [vmem:[%s466 + $0x8] sm:$0xff] %v465
  %v468 = vsel %vm457, %v387, 0.0
  %v469 = vsel %vm464, %v450, 0.0
  %vm470 = vcmp.gt.s32.totalorder %v147, 1
  %vm471 = vcmp.gt.s32.totalorder %v147, 6
  %s472 = scalar_lea.vmem %s0, 64
  %v473 = vld [vmem:[%s472] sm:$0xff]
  %v474 = vld [vmem:[%s472 + $0x8] sm:$0xff]
  %v475 = vld [vmem:[%s472 + $0x10] sm:$0xff]
  %v476 = vld [vmem:[%s472 + $0x18] sm:$0xff]
  %477 = vmatpush.msra.mxu0 %v79
  %478 = vmatpush.msra.mxu0 %v75
  %479 = vmatpush.msra.mxu0 %v71
  %480 = vmatpush.msra.mxu0 %v67
  %481 = vmatpush.msra.mxu0 %v63
  %482 = vmatpush.msra.mxu0 %v59
  %483 = vmatpush.msra.mxu0 %v55
  %484 = vmatpush.msra.mxu0 %v51
  %485 = vmatpush.msra.mxu0 %v47
  %486 = vmatpush.msra.mxu0 %v43
  %487 = vmatpush.msra.mxu0 %v39
  %488 = vmatpush.msra.mxu0 %v35
  %489 = vmatpush.msra.mxu0 %v31
  %490 = vmatpush.msra.mxu0 %v27
  %491 = vmatpush.msra.mxu0 %v23
  %492 = vmatpush.msra.mxu0 %v19
  %493 = vmatmul.f32.gmra.mxu0 %v458
  %v494 = vpop.f32.mrf.mxu0
  %v495 = vadd.f32 0.0, %v494
  %496 = vdwg.mxu0
  %497 = vmatpush.msra.mxu0 %v80
  %498 = vmatpush.msra.mxu0 %v76
  %499 = vmatpush.msra.mxu0 %v72
  %500 = vmatpush.msra.mxu0 %v68
  %501 = vmatpush.msra.mxu0 %v64
  %502 = vmatpush.msra.mxu0 %v60
  %503 = vmatpush.msra.mxu0 %v56
  %504 = vmatpush.msra.mxu0 %v52
  %505 = vmatpush.msra.mxu0 %v48
  %506 = vmatpush.msra.mxu0 %v44
  %507 = vmatpush.msra.mxu0 %v40
  %508 = vmatpush.msra.mxu0 %v36
  %509 = vmatpush.msra.mxu0 %v32
  %510 = vmatpush.msra.mxu0 %v28
  %511 = vmatpush.msra.mxu0 %v24
  %512 = vmatpush.msra.mxu0 %v20
  %513 = vmatmul.f32.gmra.mxu0 %v458
  %v514 = vpop.f32.mrf.mxu0
  %v515 = vadd.f32 0.0, %v514
  %516 = vdwg.mxu0
  %517 = vmatpush.msra.mxu0 %v81
  %518 = vmatpush.msra.mxu0 %v77
  %519 = vmatpush.msra.mxu0 %v73
  %520 = vmatpush.msra.mxu0 %v69
  %521 = vmatpush.msra.mxu0 %v65
  %522 = vmatpush.msra.mxu0 %v61
  %523 = vmatpush.msra.mxu0 %v57
  %524 = vmatpush.msra.mxu0 %v53
  %525 = vmatpush.msra.mxu0 %v49
  %526 = vmatpush.msra.mxu0 %v45
  %527 = vmatpush.msra.mxu0 %v41
  %528 = vmatpush.msra.mxu0 %v37
  %529 = vmatpush.msra.mxu0 %v33
  %530 = vmatpush.msra.mxu0 %v29
  %531 = vmatpush.msra.mxu0 %v25
  %532 = vmatpush.msra.mxu0 %v21
  %533 = vmatmul.f32.gmra.mxu0 %v458
  %v534 = vpop.f32.mrf.mxu0
  %v535 = vadd.f32 0.0, %v534
  %536 = vdwg.mxu0
  %537 = vmatpush.msra.mxu0 %v82
  %538 = vmatpush.msra.mxu0 %v78
  %539 = vmatpush.msra.mxu0 %v74
  %540 = vmatpush.msra.mxu0 %v70
  %541 = vmatpush.msra.mxu0 %v66
  %542 = vmatpush.msra.mxu0 %v62
  %543 = vmatpush.msra.mxu0 %v58
  %544 = vmatpush.msra.mxu0 %v54
  %545 = vmatpush.msra.mxu0 %v50
  %546 = vmatpush.msra.mxu0 %v46
  %547 = vmatpush.msra.mxu0 %v42
  %548 = vmatpush.msra.mxu0 %v38
  %549 = vmatpush.msra.mxu0 %v34
  %550 = vmatpush.msra.mxu0 %v30
  %551 = vmatpush.msra.mxu0 %v26
  %552 = vmatpush.msra.mxu0 %v22
  %553 = vmatmul.f32.gmra.mxu0 %v458
  %v554 = vpop.f32.mrf.mxu0
  %v555 = vadd.f32 0.0, %v554
  %556 = vdwg.mxu0
  %v557 = vadd.f32 %v473, %v495
  %v558 = vadd.f32 %v474, %v515
  %v559 = vadd.f32 %v475, %v535
  %v560 = vadd.f32 %v476, %v555
  %s561 = scalar_lea.vmem %s0, 384
  %v562 = vld [vmem:[%s561 + $0x20] sm:$0xff]
  %v563 = vld [vmem:[%s561 + $0x28] sm:$0xff]
  %v564 = vld [vmem:[%s561 + $0x30] sm:$0xff]
  %v565 = vld [vmem:[%s561 + $0x38] sm:$0xff]
  %566 = vmatpush.msra.mxu0 %v143
  %567 = vmatpush.msra.mxu0 %v139
  %568 = vmatpush.msra.mxu0 %v135
  %569 = vmatpush.msra.mxu0 %v131
  %570 = vmatpush.msra.mxu0 %v127
  %571 = vmatpush.msra.mxu0 %v123
  %572 = vmatpush.msra.mxu0 %v119
  %573 = vmatpush.msra.mxu0 %v115
  %574 = vmatpush.msra.mxu0 %v111
  %575 = vmatpush.msra.mxu0 %v107
  %576 = vmatpush.msra.mxu0 %v103
  %577 = vmatpush.msra.mxu0 %v99
  %578 = vmatpush.msra.mxu0 %v95
  %579 = vmatpush.msra.mxu0 %v91
  %580 = vmatpush.msra.mxu0 %v87
  %581 = vmatpush.msra.mxu0 %v83
  %582 = vmatmul.f32.gmra.mxu0 %v465
  %v583 = vpop.f32.mrf.mxu0
  %v584 = vadd.f32 0.0, %v583
  %585 = vdwg.mxu0
  %586 = vmatpush.msra.mxu0 %v144
  %587 = vmatpush.msra.mxu0 %v140
  %588 = vmatpush.msra.mxu0 %v136
  %589 = vmatpush.msra.mxu0 %v132
  %590 = vmatpush.msra.mxu0 %v128
  %591 = vmatpush.msra.mxu0 %v124
  %592 = vmatpush.msra.mxu0 %v120
  %593 = vmatpush.msra.mxu0 %v116
  %594 = vmatpush.msra.mxu0 %v112
  %595 = vmatpush.msra.mxu0 %v108
  %596 = vmatpush.msra.mxu0 %v104
  %597 = vmatpush.msra.mxu0 %v100
  %598 = vmatpush.msra.mxu0 %v96
  %599 = vmatpush.msra.mxu0 %v92
  %600 = vmatpush.msra.mxu0 %v88
  %601 = vmatpush.msra.mxu0 %v84
  %602 = vmatmul.f32.gmra.mxu0 %v465
  %v603 = vpop.f32.mrf.mxu0
  %v604 = vadd.f32 0.0, %v603
  %605 = vdwg.mxu0
  %606 = vmatpush.msra.mxu0 %v145
  %607 = vmatpush.msra.mxu0 %v141
  %608 = vmatpush.msra.mxu0 %v137
  %609 = vmatpush.msra.mxu0 %v133
  %610 = vmatpush.msra.mxu0 %v129
  %611 = vmatpush.msra.mxu0 %v125
  %612 = vmatpush.msra.mxu0 %v121
  %613 = vmatpush.msra.mxu0 %v117
  %614 = vmatpush.msra.mxu0 %v113
  %615 = vmatpush.msra.mxu0 %v109
  %616 = vmatpush.msra.mxu0 %v105
  %617 = vmatpush.msra.mxu0 %v101
  %618 = vmatpush.msra.mxu0 %v97
  %619 = vmatpush.msra.mxu0 %v93
  %620 = vmatpush.msra.mxu0 %v89
  %621 = vmatpush.msra.mxu0 %v85
  %622 = vmatmul.f32.gmra.mxu0 %v465
  %v623 = vpop.f32.mrf.mxu0
  %v624 = vadd.f32 0.0, %v623
  %625 = vdwg.mxu0
  %626 = vmatpush.msra.mxu0 %v146
  %627 = vmatpush.msra.mxu0 %v142
  %628 = vmatpush.msra.mxu0 %v138
  %629 = vmatpush.msra.mxu0 %v134
  %630 = vmatpush.msra.mxu0 %v130
  %631 = vmatpush.msra.mxu0 %v126
  %632 = vmatpush.msra.mxu0 %v122
  %633 = vmatpush.msra.mxu0 %v118
  %634 = vmatpush.msra.mxu0 %v114
  %635 = vmatpush.msra.mxu0 %v110
  %636 = vmatpush.msra.mxu0 %v106
  %637 = vmatpush.msra.mxu0 %v102
  %638 = vmatpush.msra.mxu0 %v98
  %639 = vmatpush.msra.mxu0 %v94
  %640 = vmatpush.msra.mxu0 %v90
  %641 = vmatpush.msra.mxu0 %v86
  %642 = vmatmul.f32.gmra.mxu0 %v465
  %v643 = vpop.f32.mrf.mxu0
  %v644 = vadd.f32 0.0, %v643
  %645 = vdwg.mxu0
  %v646 = vadd.f32 %v562, %v584
  %v647 = vadd.f32 %v563, %v604
  %v648 = vadd.f32 %v564, %v624
  %v649 = vadd.f32 %v565, %v644
  %v650 = vxor.u32 %v557, 2147483648
  %v651 = vmul.f32 %v650, 1.442695
  %v652 = vpow.pop %v651
  %v653 = vadd.f32 %v652, 1.0
  %v654 = vrcp.pop %v653
  %v655 = vmul.f32 %v653, %v654
  %v656 = vsub.f32 1.0, %v655
  %v657 = vmul.f32 %v654, %v656
  %v658 = vadd.f32 %v654, %v657
  %vm659 = vweird.f32 %v653
  %vm660 = vweird.f32 %v654
  %vm661 = vmor %vm659, %vm660
  %v662 = vsel %vm661, %v654, %v658
  %v663 = vand.u32 2147483647, %v653
  %vm664 = vcmp.eq.f32.partialorder %v663, 8.507059e+37
  %v665 = vand.u32 %v653, 2147483648
  %v666 = vor.u32 1.1754944e-38, %v665
  %v667 = vsel %vm664, %v666, %v662
  %v668 = vmul.f32 1.0, %v667
  %v669 = vxor.u32 %v558, 2147483648
  %v670 = vmul.f32 %v669, 1.442695
  %v671 = vpow.pop %v670
  %v672 = vadd.f32 %v671, 1.0
  %v673 = vrcp.pop %v672
  %v674 = vmul.f32 %v672, %v673
  %v675 = vsub.f32 1.0, %v674
  %v676 = vmul.f32 %v673, %v675
  %v677 = vadd.f32 %v673, %v676
  %vm678 = vweird.f32 %v672
  %vm679 = vweird.f32 %v673
  %vm680 = vmor %vm678, %vm679
  %v681 = vsel %vm680, %v673, %v677
  %v682 = vand.u32 2147483647, %v672
  %vm683 = vcmp.eq.f32.partialorder %v682, 8.507059e+37
  %v684 = vand.u32 %v672, 2147483648
  %v685 = vor.u32 1.1754944e-38, %v684
  %v686 = vsel %vm683, %v685, %v681
  %v687 = vmul.f32 1.0, %v686
  %v688 = vtanh.pop %v559
  %v689 = vxor.u32 %v560, 2147483648
  %v690 = vmul.f32 %v689, 1.442695
  %v691 = vpow.pop %v690
  %v692 = vadd.f32 %v691, 1.0
  %v693 = vrcp.pop %v692
  %v694 = vmul.f32 %v692, %v693
  %v695 = vsub.f32 1.0, %v694
  %v696 = vmul.f32 %v693, %v695
  %v697 = vadd.f32 %v693, %v696
  %vm698 = vweird.f32 %v692
  %vm699 = vweird.f32 %v693
  %vm700 = vmor %vm698, %vm699
  %v701 = vsel %vm700, %v693, %v697
  %v702 = vand.u32 2147483647, %v692
  %vm703 = vcmp.eq.f32.partialorder %v702, 8.507059e+37
  %v704 = vand.u32 %v692, 2147483648
  %v705 = vor.u32 1.1754944e-38, %v704
  %v706 = vsel %vm703, %v705, %v701
  %v707 = vmul.f32 1.0, %v706
  %v708 = vmul.f32 %v687, %v468
  %v709 = vmul.f32 %v668, %v688
  %v710 = vadd.f32 %v708, %v709
  %v711 = vtanh.pop %v710
  %v712 = vmul.f32 %v707, %v711
  %v713 = vxor.u32 %v646, 2147483648
  %v714 = vmul.f32 %v713, 1.442695
  %v715 = vpow.pop %v714
  %v716 = vadd.f32 %v715, 1.0
  %v717 = vrcp.pop %v716
  %v718 = vmul.f32 %v716, %v717
  %v719 = vsub.f32 1.0, %v718
  %v720 = vmul.f32 %v717, %v719
  %v721 = vadd.f32 %v717, %v720
  %vm722 = vweird.f32 %v716
  %vm723 = vweird.f32 %v717
  %vm724 = vmor %vm722, %vm723
  %v725 = vsel %vm724, %v717, %v721
  %v726 = vand.u32 2147483647, %v716
  %vm727 = vcmp.eq.f32.partialorder %v726, 8.507059e+37
  %v728 = vand.u32 %v716, 2147483648
  %v729 = vor.u32 1.1754944e-38, %v728
  %v730 = vsel %vm727, %v729, %v725
  %v731 = vmul.f32 1.0, %v730
  %v732 = vxor.u32 %v647, 2147483648
  %v733 = vmul.f32 %v732, 1.442695
  %v734 = vpow.pop %v733
  %v735 = vadd.f32 %v734, 1.0
  %v736 = vrcp.pop %v735
  %v737 = vmul.f32 %v735, %v736
  %v738 = vsub.f32 1.0, %v737
  %v739 = vmul.f32 %v736, %v738
  %v740 = vadd.f32 %v736, %v739
  %vm741 = vweird.f32 %v735
  %vm742 = vweird.f32 %v736
  %vm743 = vmor %vm741, %vm742
  %v744 = vsel %vm743, %v736, %v740
  %v745 = vand.u32 2147483647, %v735
  %vm746 = vcmp.eq.f32.partialorder %v745, 8.507059e+37
  %v747 = vand.u32 %v735, 2147483648
  %v748 = vor.u32 1.1754944e-38, %v747
  %v749 = vsel %vm746, %v748, %v744
  %v750 = vmul.f32 1.0, %v749
  %v751 = vtanh.pop %v648
  %v752 = vxor.u32 %v649, 2147483648
  %v753 = vmul.f32 %v752, 1.442695
  %v754 = vpow.pop %v753
  %v755 = vadd.f32 %v754, 1.0
  %v756 = vrcp.pop %v755
  %v757 = vmul.f32 %v755, %v756
  %v758 = vsub.f32 1.0, %v757
  %v759 = vmul.f32 %v756, %v758
  %v760 = vadd.f32 %v756, %v759
  %vm761 = vweird.f32 %v755
  %vm762 = vweird.f32 %v756
  %vm763 = vmor %vm761, %vm762
  %v764 = vsel %vm763, %v756, %v760
  %v765 = vand.u32 2147483647, %v755
  %vm766 = vcmp.eq.f32.partialorder %v765, 8.507059e+37
  %v767 = vand.u32 %v755, 2147483648
  %v768 = vor.u32 1.1754944e-38, %v767
  %v769 = vsel %vm766, %v768, %v764
  %v770 = vmul.f32 1.0, %v769
  %v771 = vmul.f32 %v750, %v469
  %v772 = vmul.f32 %v731, %v751
  %v773 = vadd.f32 %v771, %v772
  %v774 = vtanh.pop %v773
  %v775 = vmul.f32 %v770, %v774
  %v776 = vsel %vm470, 1, 0
  %777 = vset.pattern.permute.xlu0 0
  %778 = vperm.xlu0 %777, %v776
  %v779 = vpop.permute.xlu0 %778
  %vm780 = vcmp.eq.s32.totalorder %v779, 1
  %v781 = vsel %vm780, %v712, 0.0
  %s782 = scalar_lea.vmem %s4, 16
  %783 = vst [vmem:[%s782] sm:$0xff] %v781
  %v784 = vsel %vm471, 1, 0
  %785 = vset.pattern.permute.xlu0 0
  %786 = vperm.xlu0 %785, %v784
  %v787 = vpop.permute.xlu0 %786
  %vm788 = vcmp.eq.s32.totalorder %v787, 1
  %v789 = vsel %vm788, %v775, 0.0
  %s790 = scalar_lea.vmem %s4, 96
  %791 = vst [vmem:[%s790 + $0x8] sm:$0xff] %v789
  %v792 = vsel %vm780, %v712, %v458
  %v793 = vsel %vm780, %v710, %v468
  %v794 = vsel %vm788, %v775, %v465
  %v795 = vsel %vm788, %v773, %v469
  %vm796 = vcmp.gt.s32.totalorder %v147, 2
  %vm797 = vcmp.gt.s32.totalorder %v147, 5
  %s798 = scalar_lea.vmem %s0, 128
  %v799 = vld [vmem:[%s798] sm:$0xff]
  %v800 = vld [vmem:[%s798 + $0x8] sm:$0xff]
  %v801 = vld [vmem:[%s798 + $0x10] sm:$0xff]
  %v802 = vld [vmem:[%s798 + $0x18] sm:$0xff]
  %803 = vmatpush.msra.mxu0 %v79
  %804 = vmatpush.msra.mxu0 %v75
  %805 = vmatpush.msra.mxu0 %v71
  %806 = vmatpush.msra.mxu0 %v67
  %807 = vmatpush.msra.mxu0 %v63
  %808 = vmatpush.msra.mxu0 %v59
  %809 = vmatpush.msra.mxu0 %v55
  %810 = vmatpush.msra.mxu0 %v51
  %811 = vmatpush.msra.mxu0 %v47
  %812 = vmatpush.msra.mxu0 %v43
  %813 = vmatpush.msra.mxu0 %v39
  %814 = vmatpush.msra.mxu0 %v35
  %815 = vmatpush.msra.mxu0 %v31
  %816 = vmatpush.msra.mxu0 %v27
  %817 = vmatpush.msra.mxu0 %v23
  %818 = vmatpush.msra.mxu0 %v19
  %819 = vmatmul.f32.gmra.mxu0 %v792
  %v820 = vpop.f32.mrf.mxu0
  %v821 = vadd.f32 0.0, %v820
  %822 = vdwg.mxu0
  %823 = vmatpush.msra.mxu0 %v80
  %824 = vmatpush.msra.mxu0 %v76
  %825 = vmatpush.msra.mxu0 %v72
  %826 = vmatpush.msra.mxu0 %v68
  %827 = vmatpush.msra.mxu0 %v64
  %828 = vmatpush.msra.mxu0 %v60
  %829 = vmatpush.msra.mxu0 %v56
  %830 = vmatpush.msra.mxu0 %v52
  %831 = vmatpush.msra.mxu0 %v48
  %832 = vmatpush.msra.mxu0 %v44
  %833 = vmatpush.msra.mxu0 %v40
  %834 = vmatpush.msra.mxu0 %v36
  %835 = vmatpush.msra.mxu0 %v32
  %836 = vmatpush.msra.mxu0 %v28
  %837 = vmatpush.msra.mxu0 %v24
  %838 = vmatpush.msra.mxu0 %v20
  %839 = vmatmul.f32.gmra.mxu0 %v792
  %v840 = vpop.f32.mrf.mxu0
  %v841 = vadd.f32 0.0, %v840
  %842 = vdwg.mxu0
  %843 = vmatpush.msra.mxu0 %v81
  %844 = vmatpush.msra.mxu0 %v77
  %845 = vmatpush.msra.mxu0 %v73
  %846 = vmatpush.msra.mxu0 %v69
  %847 = vmatpush.msra.mxu0 %v65
  %848 = vmatpush.msra.mxu0 %v61
  %849 = vmatpush.msra.mxu0 %v57
  %850 = vmatpush.msra.mxu0 %v53
  %851 = vmatpush.msra.mxu0 %v49
  %852 = vmatpush.msra.mxu0 %v45
  %853 = vmatpush.msra.mxu0 %v41
  %854 = vmatpush.msra.mxu0 %v37
  %855 = vmatpush.msra.mxu0 %v33
  %856 = vmatpush.msra.mxu0 %v29
  %857 = vmatpush.msra.mxu0 %v25
  %858 = vmatpush.msra.mxu0 %v21
  %859 = vmatmul.f32.gmra.mxu0 %v792
  %v860 = vpop.f32.mrf.mxu0
  %v861 = vadd.f32 0.0, %v860
  %862 = vdwg.mxu0
  %863 = vmatpush.msra.mxu0 %v82
  %864 = vmatpush.msra.mxu0 %v78
  %865 = vmatpush.msra.mxu0 %v74
  %866 = vmatpush.msra.mxu0 %v70
  %867 = vmatpush.msra.mxu0 %v66
  %868 = vmatpush.msra.mxu0 %v62
  %869 = vmatpush.msra.mxu0 %v58
  %870 = vmatpush.msra.mxu0 %v54
  %871 = vmatpush.msra.mxu0 %v50
  %872 = vmatpush.msra.mxu0 %v46
  %873 = vmatpush.msra.mxu0 %v42
  %874 = vmatpush.msra.mxu0 %v38
  %875 = vmatpush.msra.mxu0 %v34
  %876 = vmatpush.msra.mxu0 %v30
  %877 = vmatpush.msra.mxu0 %v26
  %878 = vmatpush.msra.mxu0 %v22
  %879 = vmatmul.f32.gmra.mxu0 %v792
  %v880 = vpop.f32.mrf.mxu0
  %v881 = vadd.f32 0.0, %v880
  %882 = vdwg.mxu0
  %v883 = vadd.f32 %v799, %v821
  %v884 = vadd.f32 %v800, %v841
  %v885 = vadd.f32 %v801, %v861
  %v886 = vadd.f32 %v802, %v881
  %s887 = scalar_lea.vmem %s0, 320
  %v888 = vld [vmem:[%s887 + $0x20] sm:$0xff]
  %v889 = vld [vmem:[%s887 + $0x28] sm:$0xff]
  %v890 = vld [vmem:[%s887 + $0x30] sm:$0xff]
  %v891 = vld [vmem:[%s887 + $0x38] sm:$0xff]
  %892 = vmatpush.msra.mxu0 %v143
  %893 = vmatpush.msra.mxu0 %v139
  %894 = vmatpush.msra.mxu0 %v135
  %895 = vmatpush.msra.mxu0 %v131
  %896 = vmatpush.msra.mxu0 %v127
  %897 = vmatpush.msra.mxu0 %v123
  %898 = vmatpush.msra.mxu0 %v119
  %899 = vmatpush.msra.mxu0 %v115
  %900 = vmatpush.msra.mxu0 %v111
  %901 = vmatpush.msra.mxu0 %v107
  %902 = vmatpush.msra.mxu0 %v103
  %903 = vmatpush.msra.mxu0 %v99
  %904 = vmatpush.msra.mxu0 %v95
  %905 = vmatpush.msra.mxu0 %v91
  %906 = vmatpush.msra.mxu0 %v87
  %907 = vmatpush.msra.mxu0 %v83
  %908 = vmatmul.f32.gmra.mxu0 %v794
  %v909 = vpop.f32.mrf.mxu0
  %v910 = vadd.f32 0.0, %v909
  %911 = vdwg.mxu0
  %912 = vmatpush.msra.mxu0 %v144
  %913 = vmatpush.msra.mxu0 %v140
  %914 = vmatpush.msra.mxu0 %v136
  %915 = vmatpush.msra.mxu0 %v132
  %916 = vmatpush.msra.mxu0 %v128
  %917 = vmatpush.msra.mxu0 %v124
  %918 = vmatpush.msra.mxu0 %v120
  %919 = vmatpush.msra.mxu0 %v116
  %920 = vmatpush.msra.mxu0 %v112
  %921 = vmatpush.msra.mxu0 %v108
  %922 = vmatpush.msra.mxu0 %v104
  %923 = vmatpush.msra.mxu0 %v100
  %924 = vmatpush.msra.mxu0 %v96
  %925 = vmatpush.msra.mxu0 %v92
  %926 = vmatpush.msra.mxu0 %v88
  %927 = vmatpush.msra.mxu0 %v84
  %928 = vmatmul.f32.gmra.mxu0 %v794
  %v929 = vpop.f32.mrf.mxu0
  %v930 = vadd.f32 0.0, %v929
  %931 = vdwg.mxu0
  %932 = vmatpush.msra.mxu0 %v145
  %933 = vmatpush.msra.mxu0 %v141
  %934 = vmatpush.msra.mxu0 %v137
  %935 = vmatpush.msra.mxu0 %v133
  %936 = vmatpush.msra.mxu0 %v129
  %937 = vmatpush.msra.mxu0 %v125
  %938 = vmatpush.msra.mxu0 %v121
  %939 = vmatpush.msra.mxu0 %v117
  %940 = vmatpush.msra.mxu0 %v113
  %941 = vmatpush.msra.mxu0 %v109
  %942 = vmatpush.msra.mxu0 %v105
  %943 = vmatpush.msra.mxu0 %v101
  %944 = vmatpush.msra.mxu0 %v97
  %945 = vmatpush.msra.mxu0 %v93
  %946 = vmatpush.msra.mxu0 %v89
  %947 = vmatpush.msra.mxu0 %v85
  %948 = vmatmul.f32.gmra.mxu0 %v794
  %v949 = vpop.f32.mrf.mxu0
  %v950 = vadd.f32 0.0, %v949
  %951 = vdwg.mxu0
  %952 = vmatpush.msra.mxu0 %v146
  %953 = vmatpush.msra.mxu0 %v142
  %954 = vmatpush.msra.mxu0 %v138
  %955 = vmatpush.msra.mxu0 %v134
  %956 = vmatpush.msra.mxu0 %v130
  %957 = vmatpush.msra.mxu0 %v126
  %958 = vmatpush.msra.mxu0 %v122
  %959 = vmatpush.msra.mxu0 %v118
  %960 = vmatpush.msra.mxu0 %v114
  %961 = vmatpush.msra.mxu0 %v110
  %962 = vmatpush.msra.mxu0 %v106
  %963 = vmatpush.msra.mxu0 %v102
  %964 = vmatpush.msra.mxu0 %v98
  %965 = vmatpush.msra.mxu0 %v94
  %966 = vmatpush.msra.mxu0 %v90
  %967 = vmatpush.msra.mxu0 %v86
  %968 = vmatmul.f32.gmra.mxu0 %v794
  %v969 = vpop.f32.mrf.mxu0
  %v970 = vadd.f32 0.0, %v969
  %971 = vdwg.mxu0
  %v972 = vadd.f32 %v888, %v910
  %v973 = vadd.f32 %v889, %v930
  %v974 = vadd.f32 %v890, %v950
  %v975 = vadd.f32 %v891, %v970
  %v976 = vxor.u32 %v883, 2147483648
  %v977 = vmul.f32 %v976, 1.442695
  %v978 = vpow.pop %v977
  %v979 = vadd.f32 %v978, 1.0
  %v980 = vrcp.pop %v979
  %v981 = vmul.f32 %v979, %v980
  %v982 = vsub.f32 1.0, %v981
  %v983 = vmul.f32 %v980, %v982
  %v984 = vadd.f32 %v980, %v983
  %vm985 = vweird.f32 %v979
  %vm986 = vweird.f32 %v980
  %vm987 = vmor %vm985, %vm986
  %v988 = vsel %vm987, %v980, %v984
  %v989 = vand.u32 2147483647, %v979
  %vm990 = vcmp.eq.f32.partialorder %v989, 8.507059e+37
  %v991 = vand.u32 %v979, 2147483648
  %v992 = vor.u32 1.1754944e-38, %v991
  %v993 = vsel %vm990, %v992, %v988
  %v994 = vmul.f32 1.0, %v993
  %v995 = vxor.u32 %v884, 2147483648
  %v996 = vmul.f32 %v995, 1.442695
  %v997 = vpow.pop %v996
  %v998 = vadd.f32 %v997, 1.0
  %v999 = vrcp.pop %v998
  %v1000 = vmul.f32 %v998, %v999
  %v1001 = vsub.f32 1.0, %v1000
  %v1002 = vmul.f32 %v999, %v1001
  %v1003 = vadd.f32 %v999, %v1002
  %vm1004 = vweird.f32 %v998
  %vm1005 = vweird.f32 %v999
  %vm1006 = vmor %vm1004, %vm1005
  %v1007 = vsel %vm1006, %v999, %v1003
  %v1008 = vand.u32 2147483647, %v998
  %vm1009 = vcmp.eq.f32.partialorder %v1008, 8.507059e+37
  %v1010 = vand.u32 %v998, 2147483648
  %v1011 = vor.u32 1.1754944e-38, %v1010
  %v1012 = vsel %vm1009, %v1011, %v1007
  %v1013 = vmul.f32 1.0, %v1012
  %v1014 = vtanh.pop %v885
  %v1015 = vxor.u32 %v886, 2147483648
  %v1016 = vmul.f32 %v1015, 1.442695
  %v1017 = vpow.pop %v1016
  %v1018 = vadd.f32 %v1017, 1.0
  %v1019 = vrcp.pop %v1018
  %v1020 = vmul.f32 %v1018, %v1019
  %v1021 = vsub.f32 1.0, %v1020
  %v1022 = vmul.f32 %v1019, %v1021
  %v1023 = vadd.f32 %v1019, %v1022
  %vm1024 = vweird.f32 %v1018
  %vm1025 = vweird.f32 %v1019
  %vm1026 = vmor %vm1024, %vm1025
  %v1027 = vsel %vm1026, %v1019, %v1023
  %v1028 = vand.u32 2147483647, %v1018
  %vm1029 = vcmp.eq.f32.partialorder %v1028, 8.507059e+37
  %v1030 = vand.u32 %v1018, 2147483648
  %v1031 = vor.u32 1.1754944e-38, %v1030
  %v1032 = vsel %vm1029, %v1031, %v1027
  %v1033 = vmul.f32 1.0, %v1032
  %v1034 = vmul.f32 %v1013, %v793
  %v1035 = vmul.f32 %v994, %v1014
  %v1036 = vadd.f32 %v1034, %v1035
  %v1037 = vtanh.pop %v1036
  %v1038 = vmul.f32 %v1033, %v1037
  %v1039 = vxor.u32 %v972, 2147483648
  %v1040 = vmul.f32 %v1039, 1.442695
  %v1041 = vpow.pop %v1040
  %v1042 = vadd.f32 %v1041, 1.0
  %v1043 = vrcp.pop %v1042
  %v1044 = vmul.f32 %v1042, %v1043
  %v1045 = vsub.f32 1.0, %v1044
  %v1046 = vmul.f32 %v1043, %v1045
  %v1047 = vadd.f32 %v1043, %v1046
  %vm1048 = vweird.f32 %v1042
  %vm1049 = vweird.f32 %v1043
  %vm1050 = vmor %vm1048, %vm1049
  %v1051 = vsel %vm1050, %v1043, %v1047
  %v1052 = vand.u32 2147483647, %v1042
  %vm1053 = vcmp.eq.f32.partialorder %v1052, 8.507059e+37
  %v1054 = vand.u32 %v1042, 2147483648
  %v1055 = vor.u32 1.1754944e-38, %v1054
  %v1056 = vsel %vm1053, %v1055, %v1051
  %v1057 = vmul.f32 1.0, %v1056
  %v1058 = vxor.u32 %v973, 2147483648
  %v1059 = vmul.f32 %v1058, 1.442695
  %v1060 = vpow.pop %v1059
  %v1061 = vadd.f32 %v1060, 1.0
  %v1062 = vrcp.pop %v1061
  %v1063 = vmul.f32 %v1061, %v1062
  %v1064 = vsub.f32 1.0, %v1063
  %v1065 = vmul.f32 %v1062, %v1064
  %v1066 = vadd.f32 %v1062, %v1065
  %vm1067 = vweird.f32 %v1061
  %vm1068 = vweird.f32 %v1062
  %vm1069 = vmor %vm1067, %vm1068
  %v1070 = vsel %vm1069, %v1062, %v1066
  %v1071 = vand.u32 2147483647, %v1061
  %vm1072 = vcmp.eq.f32.partialorder %v1071, 8.507059e+37
  %v1073 = vand.u32 %v1061, 2147483648
  %v1074 = vor.u32 1.1754944e-38, %v1073
  %v1075 = vsel %vm1072, %v1074, %v1070
  %v1076 = vmul.f32 1.0, %v1075
  %v1077 = vtanh.pop %v974
  %v1078 = vxor.u32 %v975, 2147483648
  %v1079 = vmul.f32 %v1078, 1.442695
  %v1080 = vpow.pop %v1079
  %v1081 = vadd.f32 %v1080, 1.0
  %v1082 = vrcp.pop %v1081
  %v1083 = vmul.f32 %v1081, %v1082
  %v1084 = vsub.f32 1.0, %v1083
  %v1085 = vmul.f32 %v1082, %v1084
  %v1086 = vadd.f32 %v1082, %v1085
  %vm1087 = vweird.f32 %v1081
  %vm1088 = vweird.f32 %v1082
  %vm1089 = vmor %vm1087, %vm1088
  %v1090 = vsel %vm1089, %v1082, %v1086
  %v1091 = vand.u32 2147483647, %v1081
  %vm1092 = vcmp.eq.f32.partialorder %v1091, 8.507059e+37
  %v1093 = vand.u32 %v1081, 2147483648
  %v1094 = vor.u32 1.1754944e-38, %v1093
  %v1095 = vsel %vm1092, %v1094, %v1090
  %v1096 = vmul.f32 1.0, %v1095
  %v1097 = vmul.f32 %v1076, %v795
  %v1098 = vmul.f32 %v1057, %v1077
  %v1099 = vadd.f32 %v1097, %v1098
  %v1100 = vtanh.pop %v1099
  %v1101 = vmul.f32 %v1096, %v1100
  %v1102 = vsel %vm796, 1, 0
  %1103 = vset.pattern.permute.xlu0 0
  %1104 = vperm.xlu0 %1103, %v1102
  %v1105 = vpop.permute.xlu0 %1104
  %vm1106 = vcmp.eq.s32.totalorder %v1105, 1
  %v1107 = vsel %vm1106, %v1038, 0.0
  %s1108 = scalar_lea.vmem %s4, 32
  %1109 = vst [vmem:[%s1108] sm:$0xff] %v1107
  %v1110 = vsel %vm797, 1, 0
  %1111 = vset.pattern.permute.xlu0 0
  %1112 = vperm.xlu0 %1111, %v1110
  %v1113 = vpop.permute.xlu0 %1112
  %vm1114 = vcmp.eq.s32.totalorder %v1113, 1
  %v1115 = vsel %vm1114, %v1101, 0.0
  %s1116 = scalar_lea.vmem %s4, 80
  %1117 = vst [vmem:[%s1116 + $0x8] sm:$0xff] %v1115
  %v1118 = vsel %vm1106, %v1038, %v792
  %v1119 = vsel %vm1106, %v1036, %v793
  %v1120 = vsel %vm1114, %v1101, %v794
  %v1121 = vsel %vm1114, %v1099, %v795
  %vm1122 = vcmp.gt.s32.totalorder %v147, 3
  %vm1123 = vcmp.gt.s32.totalorder %v147, 4
  %s1124 = scalar_lea.vmem %s0, 192
  %v1125 = vld [vmem:[%s1124] sm:$0xff]
  %v1126 = vld [vmem:[%s1124 + $0x8] sm:$0xff]
  %v1127 = vld [vmem:[%s1124 + $0x10] sm:$0xff]
  %v1128 = vld [vmem:[%s1124 + $0x18] sm:$0xff]
  %1129 = vmatpush.msra.mxu0 %v79
  %1130 = vmatpush.msra.mxu0 %v75
  %1131 = vmatpush.msra.mxu0 %v71
  %1132 = vmatpush.msra.mxu0 %v67
  %1133 = vmatpush.msra.mxu0 %v63
  %1134 = vmatpush.msra.mxu0 %v59
  %1135 = vmatpush.msra.mxu0 %v55
  %1136 = vmatpush.msra.mxu0 %v51
  %1137 = vmatpush.msra.mxu0 %v47
  %1138 = vmatpush.msra.mxu0 %v43
  %1139 = vmatpush.msra.mxu0 %v39
  %1140 = vmatpush.msra.mxu0 %v35
  %1141 = vmatpush.msra.mxu0 %v31
  %1142 = vmatpush.msra.mxu0 %v27
  %1143 = vmatpush.msra.mxu0 %v23
  %1144 = vmatpush.msra.mxu0 %v19
  %1145 = vmatmul.f32.gmra.mxu0 %v1118
  %v1146 = vpop.f32.mrf.mxu0
  %v1147 = vadd.f32 0.0, %v1146
  %1148 = vdwg.mxu0
  %1149 = vmatpush.msra.mxu0 %v80
  %1150 = vmatpush.msra.mxu0 %v76
  %1151 = vmatpush.msra.mxu0 %v72
  %1152 = vmatpush.msra.mxu0 %v68
  %1153 = vmatpush.msra.mxu0 %v64
  %1154 = vmatpush.msra.mxu0 %v60
  %1155 = vmatpush.msra.mxu0 %v56
  %1156 = vmatpush.msra.mxu0 %v52
  %1157 = vmatpush.msra.mxu0 %v48
  %1158 = vmatpush.msra.mxu0 %v44
  %1159 = vmatpush.msra.mxu0 %v40
  %1160 = vmatpush.msra.mxu0 %v36
  %1161 = vmatpush.msra.mxu0 %v32
  %1162 = vmatpush.msra.mxu0 %v28
  %1163 = vmatpush.msra.mxu0 %v24
  %1164 = vmatpush.msra.mxu0 %v20
  %1165 = vmatmul.f32.gmra.mxu0 %v1118
  %v1166 = vpop.f32.mrf.mxu0
  %v1167 = vadd.f32 0.0, %v1166
  %1168 = vdwg.mxu0
  %1169 = vmatpush.msra.mxu0 %v81
  %1170 = vmatpush.msra.mxu0 %v77
  %1171 = vmatpush.msra.mxu0 %v73
  %1172 = vmatpush.msra.mxu0 %v69
  %1173 = vmatpush.msra.mxu0 %v65
  %1174 = vmatpush.msra.mxu0 %v61
  %1175 = vmatpush.msra.mxu0 %v57
  %1176 = vmatpush.msra.mxu0 %v53
  %1177 = vmatpush.msra.mxu0 %v49
  %1178 = vmatpush.msra.mxu0 %v45
  %1179 = vmatpush.msra.mxu0 %v41
  %1180 = vmatpush.msra.mxu0 %v37
  %1181 = vmatpush.msra.mxu0 %v33
  %1182 = vmatpush.msra.mxu0 %v29
  %1183 = vmatpush.msra.mxu0 %v25
  %1184 = vmatpush.msra.mxu0 %v21
  %1185 = vmatmul.f32.gmra.mxu0 %v1118
  %v1186 = vpop.f32.mrf.mxu0
  %v1187 = vadd.f32 0.0, %v1186
  %1188 = vdwg.mxu0
  %1189 = vmatpush.msra.mxu0 %v82
  %1190 = vmatpush.msra.mxu0 %v78
  %1191 = vmatpush.msra.mxu0 %v74
  %1192 = vmatpush.msra.mxu0 %v70
  %1193 = vmatpush.msra.mxu0 %v66
  %1194 = vmatpush.msra.mxu0 %v62
  %1195 = vmatpush.msra.mxu0 %v58
  %1196 = vmatpush.msra.mxu0 %v54
  %1197 = vmatpush.msra.mxu0 %v50
  %1198 = vmatpush.msra.mxu0 %v46
  %1199 = vmatpush.msra.mxu0 %v42
  %1200 = vmatpush.msra.mxu0 %v38
  %1201 = vmatpush.msra.mxu0 %v34
  %1202 = vmatpush.msra.mxu0 %v30
  %1203 = vmatpush.msra.mxu0 %v26
  %1204 = vmatpush.msra.mxu0 %v22
  %1205 = vmatmul.f32.gmra.mxu0 %v1118
  %v1206 = vpop.f32.mrf.mxu0
  %v1207 = vadd.f32 0.0, %v1206
  %1208 = vdwg.mxu0
  %v1209 = vadd.f32 %v1125, %v1147
  %v1210 = vadd.f32 %v1126, %v1167
  %v1211 = vadd.f32 %v1127, %v1187
  %v1212 = vadd.f32 %v1128, %v1207
  %s1213 = scalar_lea.vmem %s0, 256
  %v1214 = vld [vmem:[%s1213 + $0x20] sm:$0xff]
  %v1215 = vld [vmem:[%s1213 + $0x28] sm:$0xff]
  %v1216 = vld [vmem:[%s1213 + $0x30] sm:$0xff]
  %v1217 = vld [vmem:[%s1213 + $0x38] sm:$0xff]
  %1218 = vmatpush.msra.mxu0 %v143
  %1219 = vmatpush.msra.mxu0 %v139
  %1220 = vmatpush.msra.mxu0 %v135
  %1221 = vmatpush.msra.mxu0 %v131
  %1222 = vmatpush.msra.mxu0 %v127
  %1223 = vmatpush.msra.mxu0 %v123
  %1224 = vmatpush.msra.mxu0 %v119
  %1225 = vmatpush.msra.mxu0 %v115
  %1226 = vmatpush.msra.mxu0 %v111
  %1227 = vmatpush.msra.mxu0 %v107
  %1228 = vmatpush.msra.mxu0 %v103
  %1229 = vmatpush.msra.mxu0 %v99
  %1230 = vmatpush.msra.mxu0 %v95
  %1231 = vmatpush.msra.mxu0 %v91
  %1232 = vmatpush.msra.mxu0 %v87
  %1233 = vmatpush.msra.mxu0 %v83
  %1234 = vmatmul.f32.gmra.mxu0 %v1120
  %v1235 = vpop.f32.mrf.mxu0
  %v1236 = vadd.f32 0.0, %v1235
  %1237 = vdwg.mxu0
  %1238 = vmatpush.msra.mxu0 %v144
  %1239 = vmatpush.msra.mxu0 %v140
  %1240 = vmatpush.msra.mxu0 %v136
  %1241 = vmatpush.msra.mxu0 %v132
  %1242 = vmatpush.msra.mxu0 %v128
  %1243 = vmatpush.msra.mxu0 %v124
  %1244 = vmatpush.msra.mxu0 %v120
  %1245 = vmatpush.msra.mxu0 %v116
  %1246 = vmatpush.msra.mxu0 %v112
  %1247 = vmatpush.msra.mxu0 %v108
  %1248 = vmatpush.msra.mxu0 %v104
  %1249 = vmatpush.msra.mxu0 %v100
  %1250 = vmatpush.msra.mxu0 %v96
  %1251 = vmatpush.msra.mxu0 %v92
  %1252 = vmatpush.msra.mxu0 %v88
  %1253 = vmatpush.msra.mxu0 %v84
  %1254 = vmatmul.f32.gmra.mxu0 %v1120
  %v1255 = vpop.f32.mrf.mxu0
  %v1256 = vadd.f32 0.0, %v1255
  %1257 = vdwg.mxu0
  %1258 = vmatpush.msra.mxu0 %v145
  %1259 = vmatpush.msra.mxu0 %v141
  %1260 = vmatpush.msra.mxu0 %v137
  %1261 = vmatpush.msra.mxu0 %v133
  %1262 = vmatpush.msra.mxu0 %v129
  %1263 = vmatpush.msra.mxu0 %v125
  %1264 = vmatpush.msra.mxu0 %v121
  %1265 = vmatpush.msra.mxu0 %v117
  %1266 = vmatpush.msra.mxu0 %v113
  %1267 = vmatpush.msra.mxu0 %v109
  %1268 = vmatpush.msra.mxu0 %v105
  %1269 = vmatpush.msra.mxu0 %v101
  %1270 = vmatpush.msra.mxu0 %v97
  %1271 = vmatpush.msra.mxu0 %v93
  %1272 = vmatpush.msra.mxu0 %v89
  %1273 = vmatpush.msra.mxu0 %v85
  %1274 = vmatmul.f32.gmra.mxu0 %v1120
  %v1275 = vpop.f32.mrf.mxu0
  %v1276 = vadd.f32 0.0, %v1275
  %1277 = vdwg.mxu0
  %1278 = vmatpush.msra.mxu0 %v146
  %1279 = vmatpush.msra.mxu0 %v142
  %1280 = vmatpush.msra.mxu0 %v138
  %1281 = vmatpush.msra.mxu0 %v134
  %1282 = vmatpush.msra.mxu0 %v130
  %1283 = vmatpush.msra.mxu0 %v126
  %1284 = vmatpush.msra.mxu0 %v122
  %1285 = vmatpush.msra.mxu0 %v118
  %1286 = vmatpush.msra.mxu0 %v114
  %1287 = vmatpush.msra.mxu0 %v110
  %1288 = vmatpush.msra.mxu0 %v106
  %1289 = vmatpush.msra.mxu0 %v102
  %1290 = vmatpush.msra.mxu0 %v98
  %1291 = vmatpush.msra.mxu0 %v94
  %1292 = vmatpush.msra.mxu0 %v90
  %1293 = vmatpush.msra.mxu0 %v86
  %1294 = vmatmul.f32.gmra.mxu0 %v1120
  %v1295 = vpop.f32.mrf.mxu0
  %v1296 = vadd.f32 0.0, %v1295
  %1297 = vdwg.mxu0
  %v1298 = vadd.f32 %v1214, %v1236
  %v1299 = vadd.f32 %v1215, %v1256
  %v1300 = vadd.f32 %v1216, %v1276
  %v1301 = vadd.f32 %v1217, %v1296
  %v1302 = vxor.u32 %v1209, 2147483648
  %v1303 = vmul.f32 %v1302, 1.442695
  %v1304 = vpow.pop %v1303
  %v1305 = vadd.f32 %v1304, 1.0
  %v1306 = vrcp.pop %v1305
  %v1307 = vmul.f32 %v1305, %v1306
  %v1308 = vsub.f32 1.0, %v1307
  %v1309 = vmul.f32 %v1306, %v1308
  %v1310 = vadd.f32 %v1306, %v1309
  %vm1311 = vweird.f32 %v1305
  %vm1312 = vweird.f32 %v1306
  %vm1313 = vmor %vm1311, %vm1312
  %v1314 = vsel %vm1313, %v1306, %v1310
  %v1315 = vand.u32 2147483647, %v1305
  %vm1316 = vcmp.eq.f32.partialorder %v1315, 8.507059e+37
  %v1317 = vand.u32 %v1305, 2147483648
  %v1318 = vor.u32 1.1754944e-38, %v1317
  %v1319 = vsel %vm1316, %v1318, %v1314
  %v1320 = vmul.f32 1.0, %v1319
  %v1321 = vxor.u32 %v1210, 2147483648
  %v1322 = vmul.f32 %v1321, 1.442695
  %v1323 = vpow.pop %v1322
  %v1324 = vadd.f32 %v1323, 1.0
  %v1325 = vrcp.pop %v1324
  %v1326 = vmul.f32 %v1324, %v1325
  %v1327 = vsub.f32 1.0, %v1326
  %v1328 = vmul.f32 %v1325, %v1327
  %v1329 = vadd.f32 %v1325, %v1328
  %vm1330 = vweird.f32 %v1324
  %vm1331 = vweird.f32 %v1325
  %vm1332 = vmor %vm1330, %vm1331
  %v1333 = vsel %vm1332, %v1325, %v1329
  %v1334 = vand.u32 2147483647, %v1324
  %vm1335 = vcmp.eq.f32.partialorder %v1334, 8.507059e+37
  %v1336 = vand.u32 %v1324, 2147483648
  %v1337 = vor.u32 1.1754944e-38, %v1336
  %v1338 = vsel %vm1335, %v1337, %v1333
  %v1339 = vmul.f32 1.0, %v1338
  %v1340 = vtanh.pop %v1211
  %v1341 = vxor.u32 %v1212, 2147483648
  %v1342 = vmul.f32 %v1341, 1.442695
  %v1343 = vpow.pop %v1342
  %v1344 = vadd.f32 %v1343, 1.0
  %v1345 = vrcp.pop %v1344
  %v1346 = vmul.f32 %v1344, %v1345
  %v1347 = vsub.f32 1.0, %v1346
  %v1348 = vmul.f32 %v1345, %v1347
  %v1349 = vadd.f32 %v1345, %v1348
  %vm1350 = vweird.f32 %v1344
  %vm1351 = vweird.f32 %v1345
  %vm1352 = vmor %vm1350, %vm1351
  %v1353 = vsel %vm1352, %v1345, %v1349
  %v1354 = vand.u32 2147483647, %v1344
  %vm1355 = vcmp.eq.f32.partialorder %v1354, 8.507059e+37
  %v1356 = vand.u32 %v1344, 2147483648
  %v1357 = vor.u32 1.1754944e-38, %v1356
  %v1358 = vsel %vm1355, %v1357, %v1353
  %v1359 = vmul.f32 1.0, %v1358
  %v1360 = vmul.f32 %v1339, %v1119
  %v1361 = vmul.f32 %v1320, %v1340
  %v1362 = vadd.f32 %v1360, %v1361
  %v1363 = vtanh.pop %v1362
  %v1364 = vmul.f32 %v1359, %v1363
  %v1365 = vxor.u32 %v1298, 2147483648
  %v1366 = vmul.f32 %v1365, 1.442695
  %v1367 = vpow.pop %v1366
  %v1368 = vadd.f32 %v1367, 1.0
  %v1369 = vrcp.pop %v1368
  %v1370 = vmul.f32 %v1368, %v1369
  %v1371 = vsub.f32 1.0, %v1370
  %v1372 = vmul.f32 %v1369, %v1371
  %v1373 = vadd.f32 %v1369, %v1372
  %vm1374 = vweird.f32 %v1368
  %vm1375 = vweird.f32 %v1369
  %vm1376 = vmor %vm1374, %vm1375
  %v1377 = vsel %vm1376, %v1369, %v1373
  %v1378 = vand.u32 2147483647, %v1368
  %vm1379 = vcmp.eq.f32.partialorder %v1378, 8.507059e+37
  %v1380 = vand.u32 %v1368, 2147483648
  %v1381 = vor.u32 1.1754944e-38, %v1380
  %v1382 = vsel %vm1379, %v1381, %v1377
  %v1383 = vmul.f32 1.0, %v1382
  %v1384 = vxor.u32 %v1299, 2147483648
  %v1385 = vmul.f32 %v1384, 1.442695
  %v1386 = vpow.pop %v1385
  %v1387 = vadd.f32 %v1386, 1.0
  %v1388 = vrcp.pop %v1387
  %v1389 = vmul.f32 %v1387, %v1388
  %v1390 = vsub.f32 1.0, %v1389
  %v1391 = vmul.f32 %v1388, %v1390
  %v1392 = vadd.f32 %v1388, %v1391
  %vm1393 = vweird.f32 %v1387
  %vm1394 = vweird.f32 %v1388
  %vm1395 = vmor %vm1393, %vm1394
  %v1396 = vsel %vm1395, %v1388, %v1392
  %v1397 = vand.u32 2147483647, %v1387
  %vm1398 = vcmp.eq.f32.partialorder %v1397, 8.507059e+37
  %v1399 = vand.u32 %v1387, 2147483648
  %v1400 = vor.u32 1.1754944e-38, %v1399
  %v1401 = vsel %vm1398, %v1400, %v1396
  %v1402 = vmul.f32 1.0, %v1401
  %v1403 = vtanh.pop %v1300
  %v1404 = vxor.u32 %v1301, 2147483648
  %v1405 = vmul.f32 %v1404, 1.442695
  %v1406 = vpow.pop %v1405
  %v1407 = vadd.f32 %v1406, 1.0
  %v1408 = vrcp.pop %v1407
  %v1409 = vmul.f32 %v1407, %v1408
  %v1410 = vsub.f32 1.0, %v1409
  %v1411 = vmul.f32 %v1408, %v1410
  %v1412 = vadd.f32 %v1408, %v1411
  %vm1413 = vweird.f32 %v1407
  %vm1414 = vweird.f32 %v1408
  %vm1415 = vmor %vm1413, %vm1414
  %v1416 = vsel %vm1415, %v1408, %v1412
  %v1417 = vand.u32 2147483647, %v1407
  %vm1418 = vcmp.eq.f32.partialorder %v1417, 8.507059e+37
  %v1419 = vand.u32 %v1407, 2147483648
  %v1420 = vor.u32 1.1754944e-38, %v1419
  %v1421 = vsel %vm1418, %v1420, %v1416
  %v1422 = vmul.f32 1.0, %v1421
  %v1423 = vmul.f32 %v1402, %v1121
  %v1424 = vmul.f32 %v1383, %v1403
  %v1425 = vadd.f32 %v1423, %v1424
  %v1426 = vtanh.pop %v1425
  %v1427 = vmul.f32 %v1422, %v1426
  %v1428 = vsel %vm1122, 1, 0
  %1429 = vset.pattern.permute.xlu0 0
  %1430 = vperm.xlu0 %1429, %v1428
  %v1431 = vpop.permute.xlu0 %1430
  %vm1432 = vcmp.eq.s32.totalorder %v1431, 1
  %v1433 = vsel %vm1432, %v1364, 0.0
  %s1434 = scalar_lea.vmem %s4, 48
  %1435 = vst [vmem:[%s1434] sm:$0xff] %v1433
  %v1436 = vsel %vm1123, 1, 0
  %1437 = vset.pattern.permute.xlu0 0
  %1438 = vperm.xlu0 %1437, %v1436
  %v1439 = vpop.permute.xlu0 %1438
  %vm1440 = vcmp.eq.s32.totalorder %v1439, 1
  %v1441 = vsel %vm1440, %v1427, 0.0
  %s1442 = scalar_lea.vmem %s4, 64
  %1443 = vst [vmem:[%s1442 + $0x8] sm:$0xff] %v1441
  %v1444 = vsel %vm1432, %v1364, %v1118
  %v1445 = vsel %vm1432, %v1362, %v1119
  %v1446 = vsel %vm1440, %v1427, %v1120
  %v1447 = vsel %vm1440, %v1425, %v1121
  %v1448 = vld [vmem:[%s1213] sm:$0xff]
  %v1449 = vld [vmem:[%s1213 + $0x8] sm:$0xff]
  %v1450 = vld [vmem:[%s1213 + $0x10] sm:$0xff]
  %v1451 = vld [vmem:[%s1213 + $0x18] sm:$0xff]
  %1452 = vmatpush.msra.mxu0 %v79
  %1453 = vmatpush.msra.mxu0 %v75
  %1454 = vmatpush.msra.mxu0 %v71
  %1455 = vmatpush.msra.mxu0 %v67
  %1456 = vmatpush.msra.mxu0 %v63
  %1457 = vmatpush.msra.mxu0 %v59
  %1458 = vmatpush.msra.mxu0 %v55
  %1459 = vmatpush.msra.mxu0 %v51
  %1460 = vmatpush.msra.mxu0 %v47
  %1461 = vmatpush.msra.mxu0 %v43
  %1462 = vmatpush.msra.mxu0 %v39
  %1463 = vmatpush.msra.mxu0 %v35
  %1464 = vmatpush.msra.mxu0 %v31
  %1465 = vmatpush.msra.mxu0 %v27
  %1466 = vmatpush.msra.mxu0 %v23
  %1467 = vmatpush.msra.mxu0 %v19
  %1468 = vmatmul.f32.gmra.mxu0 %v1444
  %v1469 = vpop.f32.mrf.mxu0
  %v1470 = vadd.f32 0.0, %v1469
  %1471 = vdwg.mxu0
  %1472 = vmatpush.msra.mxu0 %v80
  %1473 = vmatpush.msra.mxu0 %v76
  %1474 = vmatpush.msra.mxu0 %v72
  %1475 = vmatpush.msra.mxu0 %v68
  %1476 = vmatpush.msra.mxu0 %v64
  %1477 = vmatpush.msra.mxu0 %v60
  %1478 = vmatpush.msra.mxu0 %v56
  %1479 = vmatpush.msra.mxu0 %v52
  %1480 = vmatpush.msra.mxu0 %v48
  %1481 = vmatpush.msra.mxu0 %v44
  %1482 = vmatpush.msra.mxu0 %v40
  %1483 = vmatpush.msra.mxu0 %v36
  %1484 = vmatpush.msra.mxu0 %v32
  %1485 = vmatpush.msra.mxu0 %v28
  %1486 = vmatpush.msra.mxu0 %v24
  %1487 = vmatpush.msra.mxu0 %v20
  %1488 = vmatmul.f32.gmra.mxu0 %v1444
  %v1489 = vpop.f32.mrf.mxu0
  %v1490 = vadd.f32 0.0, %v1489
  %1491 = vdwg.mxu0
  %1492 = vmatpush.msra.mxu0 %v81
  %1493 = vmatpush.msra.mxu0 %v77
  %1494 = vmatpush.msra.mxu0 %v73
  %1495 = vmatpush.msra.mxu0 %v69
  %1496 = vmatpush.msra.mxu0 %v65
  %1497 = vmatpush.msra.mxu0 %v61
  %1498 = vmatpush.msra.mxu0 %v57
  %1499 = vmatpush.msra.mxu0 %v53
  %1500 = vmatpush.msra.mxu0 %v49
  %1501 = vmatpush.msra.mxu0 %v45
  %1502 = vmatpush.msra.mxu0 %v41
  %1503 = vmatpush.msra.mxu0 %v37
  %1504 = vmatpush.msra.mxu0 %v33
  %1505 = vmatpush.msra.mxu0 %v29
  %1506 = vmatpush.msra.mxu0 %v25
  %1507 = vmatpush.msra.mxu0 %v21
  %1508 = vmatmul.f32.gmra.mxu0 %v1444
  %v1509 = vpop.f32.mrf.mxu0
  %v1510 = vadd.f32 0.0, %v1509
  %1511 = vdwg.mxu0
  %1512 = vmatpush.msra.mxu0 %v82
  %1513 = vmatpush.msra.mxu0 %v78
  %1514 = vmatpush.msra.mxu0 %v74
  %1515 = vmatpush.msra.mxu0 %v70
  %1516 = vmatpush.msra.mxu0 %v66
  %1517 = vmatpush.msra.mxu0 %v62
  %1518 = vmatpush.msra.mxu0 %v58
  %1519 = vmatpush.msra.mxu0 %v54
  %1520 = vmatpush.msra.mxu0 %v50
  %1521 = vmatpush.msra.mxu0 %v46
  %1522 = vmatpush.msra.mxu0 %v42
  %1523 = vmatpush.msra.mxu0 %v38
  %1524 = vmatpush.msra.mxu0 %v34
  %1525 = vmatpush.msra.mxu0 %v30
  %1526 = vmatpush.msra.mxu0 %v26
  %1527 = vmatpush.msra.mxu0 %v22
  %1528 = vmatmul.f32.gmra.mxu0 %v1444
  %v1529 = vpop.f32.mrf.mxu0
  %v1530 = vadd.f32 0.0, %v1529
  %1531 = vdwg.mxu0
  %v1532 = vadd.f32 %v1448, %v1470
  %v1533 = vadd.f32 %v1449, %v1490
  %v1534 = vadd.f32 %v1450, %v1510
  %v1535 = vadd.f32 %v1451, %v1530
  %v1536 = vld [vmem:[%s1124 + $0x20] sm:$0xff]
  %v1537 = vld [vmem:[%s1124 + $0x28] sm:$0xff]
  %v1538 = vld [vmem:[%s1124 + $0x30] sm:$0xff]
  %v1539 = vld [vmem:[%s1124 + $0x38] sm:$0xff]
  %1540 = vmatpush.msra.mxu0 %v143
  %1541 = vmatpush.msra.mxu0 %v139
  %1542 = vmatpush.msra.mxu0 %v135
  %1543 = vmatpush.msra.mxu0 %v131
  %1544 = vmatpush.msra.mxu0 %v127
  %1545 = vmatpush.msra.mxu0 %v123
  %1546 = vmatpush.msra.mxu0 %v119
  %1547 = vmatpush.msra.mxu0 %v115
  %1548 = vmatpush.msra.mxu0 %v111
  %1549 = vmatpush.msra.mxu0 %v107
  %1550 = vmatpush.msra.mxu0 %v103
  %1551 = vmatpush.msra.mxu0 %v99
  %1552 = vmatpush.msra.mxu0 %v95
  %1553 = vmatpush.msra.mxu0 %v91
  %1554 = vmatpush.msra.mxu0 %v87
  %1555 = vmatpush.msra.mxu0 %v83
  %1556 = vmatmul.f32.gmra.mxu0 %v1446
  %v1557 = vpop.f32.mrf.mxu0
  %v1558 = vadd.f32 0.0, %v1557
  %1559 = vdwg.mxu0
  %1560 = vmatpush.msra.mxu0 %v144
  %1561 = vmatpush.msra.mxu0 %v140
  %1562 = vmatpush.msra.mxu0 %v136
  %1563 = vmatpush.msra.mxu0 %v132
  %1564 = vmatpush.msra.mxu0 %v128
  %1565 = vmatpush.msra.mxu0 %v124
  %1566 = vmatpush.msra.mxu0 %v120
  %1567 = vmatpush.msra.mxu0 %v116
  %1568 = vmatpush.msra.mxu0 %v112
  %1569 = vmatpush.msra.mxu0 %v108
  %1570 = vmatpush.msra.mxu0 %v104
  %1571 = vmatpush.msra.mxu0 %v100
  %1572 = vmatpush.msra.mxu0 %v96
  %1573 = vmatpush.msra.mxu0 %v92
  %1574 = vmatpush.msra.mxu0 %v88
  %1575 = vmatpush.msra.mxu0 %v84
  %1576 = vmatmul.f32.gmra.mxu0 %v1446
  %v1577 = vpop.f32.mrf.mxu0
  %v1578 = vadd.f32 0.0, %v1577
  %1579 = vdwg.mxu0
  %1580 = vmatpush.msra.mxu0 %v145
  %1581 = vmatpush.msra.mxu0 %v141
  %1582 = vmatpush.msra.mxu0 %v137
  %1583 = vmatpush.msra.mxu0 %v133
  %1584 = vmatpush.msra.mxu0 %v129
  %1585 = vmatpush.msra.mxu0 %v125
  %1586 = vmatpush.msra.mxu0 %v121
  %1587 = vmatpush.msra.mxu0 %v117
  %1588 = vmatpush.msra.mxu0 %v113
  %1589 = vmatpush.msra.mxu0 %v109
  %1590 = vmatpush.msra.mxu0 %v105
  %1591 = vmatpush.msra.mxu0 %v101
  %1592 = vmatpush.msra.mxu0 %v97
  %1593 = vmatpush.msra.mxu0 %v93
  %1594 = vmatpush.msra.mxu0 %v89
  %1595 = vmatpush.msra.mxu0 %v85
  %1596 = vmatmul.f32.gmra.mxu0 %v1446
  %v1597 = vpop.f32.mrf.mxu0
  %v1598 = vadd.f32 0.0, %v1597
  %1599 = vdwg.mxu0
  %1600 = vmatpush.msra.mxu0 %v146
  %1601 = vmatpush.msra.mxu0 %v142
  %1602 = vmatpush.msra.mxu0 %v138
  %1603 = vmatpush.msra.mxu0 %v134
  %1604 = vmatpush.msra.mxu0 %v130
  %1605 = vmatpush.msra.mxu0 %v126
  %1606 = vmatpush.msra.mxu0 %v122
  %1607 = vmatpush.msra.mxu0 %v118
  %1608 = vmatpush.msra.mxu0 %v114
  %1609 = vmatpush.msra.mxu0 %v110
  %1610 = vmatpush.msra.mxu0 %v106
  %1611 = vmatpush.msra.mxu0 %v102
  %1612 = vmatpush.msra.mxu0 %v98
  %1613 = vmatpush.msra.mxu0 %v94
  %1614 = vmatpush.msra.mxu0 %v90
  %1615 = vmatpush.msra.mxu0 %v86
  %1616 = vmatmul.f32.gmra.mxu0 %v1446
  %v1617 = vpop.f32.mrf.mxu0
  %v1618 = vadd.f32 0.0, %v1617
  %1619 = vdwg.mxu0
  %v1620 = vadd.f32 %v1536, %v1558
  %v1621 = vadd.f32 %v1537, %v1578
  %v1622 = vadd.f32 %v1538, %v1598
  %v1623 = vadd.f32 %v1539, %v1618
  %v1624 = vxor.u32 %v1532, 2147483648
  %v1625 = vmul.f32 %v1624, 1.442695
  %v1626 = vpow.pop %v1625
  %v1627 = vadd.f32 %v1626, 1.0
  %v1628 = vrcp.pop %v1627
  %v1629 = vmul.f32 %v1627, %v1628
  %v1630 = vsub.f32 1.0, %v1629
  %v1631 = vmul.f32 %v1628, %v1630
  %v1632 = vadd.f32 %v1628, %v1631
  %vm1633 = vweird.f32 %v1627
  %vm1634 = vweird.f32 %v1628
  %vm1635 = vmor %vm1633, %vm1634
  %v1636 = vsel %vm1635, %v1628, %v1632
  %v1637 = vand.u32 2147483647, %v1627
  %vm1638 = vcmp.eq.f32.partialorder %v1637, 8.507059e+37
  %v1639 = vand.u32 %v1627, 2147483648
  %v1640 = vor.u32 1.1754944e-38, %v1639
  %v1641 = vsel %vm1638, %v1640, %v1636
  %v1642 = vmul.f32 1.0, %v1641
  %v1643 = vxor.u32 %v1533, 2147483648
  %v1644 = vmul.f32 %v1643, 1.442695
  %v1645 = vpow.pop %v1644
  %v1646 = vadd.f32 %v1645, 1.0
  %v1647 = vrcp.pop %v1646
  %v1648 = vmul.f32 %v1646, %v1647
  %v1649 = vsub.f32 1.0, %v1648
  %v1650 = vmul.f32 %v1647, %v1649
  %v1651 = vadd.f32 %v1647, %v1650
  %vm1652 = vweird.f32 %v1646
  %vm1653 = vweird.f32 %v1647
  %vm1654 = vmor %vm1652, %vm1653
  %v1655 = vsel %vm1654, %v1647, %v1651
  %v1656 = vand.u32 2147483647, %v1646
  %vm1657 = vcmp.eq.f32.partialorder %v1656, 8.507059e+37
  %v1658 = vand.u32 %v1646, 2147483648
  %v1659 = vor.u32 1.1754944e-38, %v1658
  %v1660 = vsel %vm1657, %v1659, %v1655
  %v1661 = vmul.f32 1.0, %v1660
  %v1662 = vtanh.pop %v1534
  %v1663 = vxor.u32 %v1535, 2147483648
  %v1664 = vmul.f32 %v1663, 1.442695
  %v1665 = vpow.pop %v1664
  %v1666 = vadd.f32 %v1665, 1.0
  %v1667 = vrcp.pop %v1666
  %v1668 = vmul.f32 %v1666, %v1667
  %v1669 = vsub.f32 1.0, %v1668
  %v1670 = vmul.f32 %v1667, %v1669
  %v1671 = vadd.f32 %v1667, %v1670
  %vm1672 = vweird.f32 %v1666
  %vm1673 = vweird.f32 %v1667
  %vm1674 = vmor %vm1672, %vm1673
  %v1675 = vsel %vm1674, %v1667, %v1671
  %v1676 = vand.u32 2147483647, %v1666
  %vm1677 = vcmp.eq.f32.partialorder %v1676, 8.507059e+37
  %v1678 = vand.u32 %v1666, 2147483648
  %v1679 = vor.u32 1.1754944e-38, %v1678
  %v1680 = vsel %vm1677, %v1679, %v1675
  %v1681 = vmul.f32 1.0, %v1680
  %v1682 = vmul.f32 %v1661, %v1445
  %v1683 = vmul.f32 %v1642, %v1662
  %v1684 = vadd.f32 %v1682, %v1683
  %v1685 = vtanh.pop %v1684
  %v1686 = vmul.f32 %v1681, %v1685
  %v1687 = vxor.u32 %v1620, 2147483648
  %v1688 = vmul.f32 %v1687, 1.442695
  %v1689 = vpow.pop %v1688
  %v1690 = vadd.f32 %v1689, 1.0
  %v1691 = vrcp.pop %v1690
  %v1692 = vmul.f32 %v1690, %v1691
  %v1693 = vsub.f32 1.0, %v1692
  %v1694 = vmul.f32 %v1691, %v1693
  %v1695 = vadd.f32 %v1691, %v1694
  %vm1696 = vweird.f32 %v1690
  %vm1697 = vweird.f32 %v1691
  %vm1698 = vmor %vm1696, %vm1697
  %v1699 = vsel %vm1698, %v1691, %v1695
  %v1700 = vand.u32 2147483647, %v1690
  %vm1701 = vcmp.eq.f32.partialorder %v1700, 8.507059e+37
  %v1702 = vand.u32 %v1690, 2147483648
  %v1703 = vor.u32 1.1754944e-38, %v1702
  %v1704 = vsel %vm1701, %v1703, %v1699
  %v1705 = vmul.f32 1.0, %v1704
  %v1706 = vxor.u32 %v1621, 2147483648
  %v1707 = vmul.f32 %v1706, 1.442695
  %v1708 = vpow.pop %v1707
  %v1709 = vadd.f32 %v1708, 1.0
  %v1710 = vrcp.pop %v1709
  %v1711 = vmul.f32 %v1709, %v1710
  %v1712 = vsub.f32 1.0, %v1711
  %v1713 = vmul.f32 %v1710, %v1712
  %v1714 = vadd.f32 %v1710, %v1713
  %vm1715 = vweird.f32 %v1709
  %vm1716 = vweird.f32 %v1710
  %vm1717 = vmor %vm1715, %vm1716
  %v1718 = vsel %vm1717, %v1710, %v1714
  %v1719 = vand.u32 2147483647, %v1709
  %vm1720 = vcmp.eq.f32.partialorder %v1719, 8.507059e+37
  %v1721 = vand.u32 %v1709, 2147483648
  %v1722 = vor.u32 1.1754944e-38, %v1721
  %v1723 = vsel %vm1720, %v1722, %v1718
  %v1724 = vmul.f32 1.0, %v1723
  %v1725 = vtanh.pop %v1622
  %v1726 = vxor.u32 %v1623, 2147483648
  %v1727 = vmul.f32 %v1726, 1.442695
  %v1728 = vpow.pop %v1727
  %v1729 = vadd.f32 %v1728, 1.0
  %v1730 = vrcp.pop %v1729
  %v1731 = vmul.f32 %v1729, %v1730
  %v1732 = vsub.f32 1.0, %v1731
  %v1733 = vmul.f32 %v1730, %v1732
  %v1734 = vadd.f32 %v1730, %v1733
  %vm1735 = vweird.f32 %v1729
  %vm1736 = vweird.f32 %v1730
  %vm1737 = vmor %vm1735, %vm1736
  %v1738 = vsel %vm1737, %v1730, %v1734
  %v1739 = vand.u32 2147483647, %v1729
  %vm1740 = vcmp.eq.f32.partialorder %v1739, 8.507059e+37
  %v1741 = vand.u32 %v1729, 2147483648
  %v1742 = vor.u32 1.1754944e-38, %v1741
  %v1743 = vsel %vm1740, %v1742, %v1738
  %v1744 = vmul.f32 1.0, %v1743
  %v1745 = vmul.f32 %v1724, %v1447
  %v1746 = vmul.f32 %v1705, %v1725
  %v1747 = vadd.f32 %v1745, %v1746
  %v1748 = vtanh.pop %v1747
  %v1749 = vmul.f32 %v1744, %v1748
  %v1750 = vsel %vm1440, %v1686, 0.0
  %1751 = vst [vmem:[%s1442] sm:$0xff] %v1750
  %v1752 = vsel %vm1432, %v1749, 0.0
  %1753 = vst [vmem:[%s1434 + $0x8] sm:$0xff] %v1752
  %v1754 = vsel %vm1440, %v1686, %v1444
  %v1755 = vsel %vm1440, %v1684, %v1445
  %v1756 = vsel %vm1432, %v1749, %v1446
  %v1757 = vsel %vm1432, %v1747, %v1447
  %v1758 = vld [vmem:[%s887] sm:$0xff]
  %v1759 = vld [vmem:[%s887 + $0x8] sm:$0xff]
  %v1760 = vld [vmem:[%s887 + $0x10] sm:$0xff]
  %v1761 = vld [vmem:[%s887 + $0x18] sm:$0xff]
  %1762 = vmatpush.msra.mxu0 %v79
  %1763 = vmatpush.msra.mxu0 %v75
  %1764 = vmatpush.msra.mxu0 %v71
  %1765 = vmatpush.msra.mxu0 %v67
  %1766 = vmatpush.msra.mxu0 %v63
  %1767 = vmatpush.msra.mxu0 %v59
  %1768 = vmatpush.msra.mxu0 %v55
  %1769 = vmatpush.msra.mxu0 %v51
  %1770 = vmatpush.msra.mxu0 %v47
  %1771 = vmatpush.msra.mxu0 %v43
  %1772 = vmatpush.msra.mxu0 %v39
  %1773 = vmatpush.msra.mxu0 %v35
  %1774 = vmatpush.msra.mxu0 %v31
  %1775 = vmatpush.msra.mxu0 %v27
  %1776 = vmatpush.msra.mxu0 %v23
  %1777 = vmatpush.msra.mxu0 %v19
  %1778 = vmatmul.f32.gmra.mxu0 %v1754
  %v1779 = vpop.f32.mrf.mxu0
  %v1780 = vadd.f32 0.0, %v1779
  %1781 = vdwg.mxu0
  %1782 = vmatpush.msra.mxu0 %v80
  %1783 = vmatpush.msra.mxu0 %v76
  %1784 = vmatpush.msra.mxu0 %v72
  %1785 = vmatpush.msra.mxu0 %v68
  %1786 = vmatpush.msra.mxu0 %v64
  %1787 = vmatpush.msra.mxu0 %v60
  %1788 = vmatpush.msra.mxu0 %v56
  %1789 = vmatpush.msra.mxu0 %v52
  %1790 = vmatpush.msra.mxu0 %v48
  %1791 = vmatpush.msra.mxu0 %v44
  %1792 = vmatpush.msra.mxu0 %v40
  %1793 = vmatpush.msra.mxu0 %v36
  %1794 = vmatpush.msra.mxu0 %v32
  %1795 = vmatpush.msra.mxu0 %v28
  %1796 = vmatpush.msra.mxu0 %v24
  %1797 = vmatpush.msra.mxu0 %v20
  %1798 = vmatmul.f32.gmra.mxu0 %v1754
  %v1799 = vpop.f32.mrf.mxu0
  %v1800 = vadd.f32 0.0, %v1799
  %1801 = vdwg.mxu0
  %1802 = vmatpush.msra.mxu0 %v81
  %1803 = vmatpush.msra.mxu0 %v77
  %1804 = vmatpush.msra.mxu0 %v73
  %1805 = vmatpush.msra.mxu0 %v69
  %1806 = vmatpush.msra.mxu0 %v65
  %1807 = vmatpush.msra.mxu0 %v61
  %1808 = vmatpush.msra.mxu0 %v57
  %1809 = vmatpush.msra.mxu0 %v53
  %1810 = vmatpush.msra.mxu0 %v49
  %1811 = vmatpush.msra.mxu0 %v45
  %1812 = vmatpush.msra.mxu0 %v41
  %1813 = vmatpush.msra.mxu0 %v37
  %1814 = vmatpush.msra.mxu0 %v33
  %1815 = vmatpush.msra.mxu0 %v29
  %1816 = vmatpush.msra.mxu0 %v25
  %1817 = vmatpush.msra.mxu0 %v21
  %1818 = vmatmul.f32.gmra.mxu0 %v1754
  %v1819 = vpop.f32.mrf.mxu0
  %v1820 = vadd.f32 0.0, %v1819
  %1821 = vdwg.mxu0
  %1822 = vmatpush.msra.mxu0 %v82
  %1823 = vmatpush.msra.mxu0 %v78
  %1824 = vmatpush.msra.mxu0 %v74
  %1825 = vmatpush.msra.mxu0 %v70
  %1826 = vmatpush.msra.mxu0 %v66
  %1827 = vmatpush.msra.mxu0 %v62
  %1828 = vmatpush.msra.mxu0 %v58
  %1829 = vmatpush.msra.mxu0 %v54
  %1830 = vmatpush.msra.mxu0 %v50
  %1831 = vmatpush.msra.mxu0 %v46
  %1832 = vmatpush.msra.mxu0 %v42
  %1833 = vmatpush.msra.mxu0 %v38
  %1834 = vmatpush.msra.mxu0 %v34
  %1835 = vmatpush.msra.mxu0 %v30
  %1836 = vmatpush.msra.mxu0 %v26
  %1837 = vmatpush.msra.mxu0 %v22
  %1838 = vmatmul.f32.gmra.mxu0 %v1754
  %v1839 = vpop.f32.mrf.mxu0
  %v1840 = vadd.f32 0.0, %v1839
  %1841 = vdwg.mxu0
  %v1842 = vadd.f32 %v1758, %v1780
  %v1843 = vadd.f32 %v1759, %v1800
  %v1844 = vadd.f32 %v1760, %v1820
  %v1845 = vadd.f32 %v1761, %v1840
  %v1846 = vld [vmem:[%s798 + $0x20] sm:$0xff]
  %v1847 = vld [vmem:[%s798 + $0x28] sm:$0xff]
  %v1848 = vld [vmem:[%s798 + $0x30] sm:$0xff]
  %v1849 = vld [vmem:[%s798 + $0x38] sm:$0xff]
  %1850 = vmatpush.msra.mxu0 %v143
  %1851 = vmatpush.msra.mxu0 %v139
  %1852 = vmatpush.msra.mxu0 %v135
  %1853 = vmatpush.msra.mxu0 %v131
  %1854 = vmatpush.msra.mxu0 %v127
  %1855 = vmatpush.msra.mxu0 %v123
  %1856 = vmatpush.msra.mxu0 %v119
  %1857 = vmatpush.msra.mxu0 %v115
  %1858 = vmatpush.msra.mxu0 %v111
  %1859 = vmatpush.msra.mxu0 %v107
  %1860 = vmatpush.msra.mxu0 %v103
  %1861 = vmatpush.msra.mxu0 %v99
  %1862 = vmatpush.msra.mxu0 %v95
  %1863 = vmatpush.msra.mxu0 %v91
  %1864 = vmatpush.msra.mxu0 %v87
  %1865 = vmatpush.msra.mxu0 %v83
  %1866 = vmatmul.f32.gmra.mxu0 %v1756
  %v1867 = vpop.f32.mrf.mxu0
  %v1868 = vadd.f32 0.0, %v1867
  %1869 = vdwg.mxu0
  %1870 = vmatpush.msra.mxu0 %v144
  %1871 = vmatpush.msra.mxu0 %v140
  %1872 = vmatpush.msra.mxu0 %v136
  %1873 = vmatpush.msra.mxu0 %v132
  %1874 = vmatpush.msra.mxu0 %v128
  %1875 = vmatpush.msra.mxu0 %v124
  %1876 = vmatpush.msra.mxu0 %v120
  %1877 = vmatpush.msra.mxu0 %v116
  %1878 = vmatpush.msra.mxu0 %v112
  %1879 = vmatpush.msra.mxu0 %v108
  %1880 = vmatpush.msra.mxu0 %v104
  %1881 = vmatpush.msra.mxu0 %v100
  %1882 = vmatpush.msra.mxu0 %v96
  %1883 = vmatpush.msra.mxu0 %v92
  %1884 = vmatpush.msra.mxu0 %v88
  %1885 = vmatpush.msra.mxu0 %v84
  %1886 = vmatmul.f32.gmra.mxu0 %v1756
  %v1887 = vpop.f32.mrf.mxu0
  %v1888 = vadd.f32 0.0, %v1887
  %1889 = vdwg.mxu0
  %1890 = vmatpush.msra.mxu0 %v145
  %1891 = vmatpush.msra.mxu0 %v141
  %1892 = vmatpush.msra.mxu0 %v137
  %1893 = vmatpush.msra.mxu0 %v133
  %1894 = vmatpush.msra.mxu0 %v129
  %1895 = vmatpush.msra.mxu0 %v125
  %1896 = vmatpush.msra.mxu0 %v121
  %1897 = vmatpush.msra.mxu0 %v117
  %1898 = vmatpush.msra.mxu0 %v113
  %1899 = vmatpush.msra.mxu0 %v109
  %1900 = vmatpush.msra.mxu0 %v105
  %1901 = vmatpush.msra.mxu0 %v101
  %1902 = vmatpush.msra.mxu0 %v97
  %1903 = vmatpush.msra.mxu0 %v93
  %1904 = vmatpush.msra.mxu0 %v89
  %1905 = vmatpush.msra.mxu0 %v85
  %1906 = vmatmul.f32.gmra.mxu0 %v1756
  %v1907 = vpop.f32.mrf.mxu0
  %v1908 = vadd.f32 0.0, %v1907
  %1909 = vdwg.mxu0
  %1910 = vmatpush.msra.mxu0 %v146
  %1911 = vmatpush.msra.mxu0 %v142
  %1912 = vmatpush.msra.mxu0 %v138
  %1913 = vmatpush.msra.mxu0 %v134
  %1914 = vmatpush.msra.mxu0 %v130
  %1915 = vmatpush.msra.mxu0 %v126
  %1916 = vmatpush.msra.mxu0 %v122
  %1917 = vmatpush.msra.mxu0 %v118
  %1918 = vmatpush.msra.mxu0 %v114
  %1919 = vmatpush.msra.mxu0 %v110
  %1920 = vmatpush.msra.mxu0 %v106
  %1921 = vmatpush.msra.mxu0 %v102
  %1922 = vmatpush.msra.mxu0 %v98
  %1923 = vmatpush.msra.mxu0 %v94
  %1924 = vmatpush.msra.mxu0 %v90
  %1925 = vmatpush.msra.mxu0 %v86
  %1926 = vmatmul.f32.gmra.mxu0 %v1756
  %v1927 = vpop.f32.mrf.mxu0
  %v1928 = vadd.f32 0.0, %v1927
  %1929 = vdwg.mxu0
  %v1930 = vadd.f32 %v1846, %v1868
  %v1931 = vadd.f32 %v1847, %v1888
  %v1932 = vadd.f32 %v1848, %v1908
  %v1933 = vadd.f32 %v1849, %v1928
  %v1934 = vxor.u32 %v1842, 2147483648
  %v1935 = vmul.f32 %v1934, 1.442695
  %v1936 = vpow.pop %v1935
  %v1937 = vadd.f32 %v1936, 1.0
  %v1938 = vrcp.pop %v1937
  %v1939 = vmul.f32 %v1937, %v1938
  %v1940 = vsub.f32 1.0, %v1939
  %v1941 = vmul.f32 %v1938, %v1940
  %v1942 = vadd.f32 %v1938, %v1941
  %vm1943 = vweird.f32 %v1937
  %vm1944 = vweird.f32 %v1938
  %vm1945 = vmor %vm1943, %vm1944
  %v1946 = vsel %vm1945, %v1938, %v1942
  %v1947 = vand.u32 2147483647, %v1937
  %vm1948 = vcmp.eq.f32.partialorder %v1947, 8.507059e+37
  %v1949 = vand.u32 %v1937, 2147483648
  %v1950 = vor.u32 1.1754944e-38, %v1949
  %v1951 = vsel %vm1948, %v1950, %v1946
  %v1952 = vmul.f32 1.0, %v1951
  %v1953 = vxor.u32 %v1843, 2147483648
  %v1954 = vmul.f32 %v1953, 1.442695
  %v1955 = vpow.pop %v1954
  %v1956 = vadd.f32 %v1955, 1.0
  %v1957 = vrcp.pop %v1956
  %v1958 = vmul.f32 %v1956, %v1957
  %v1959 = vsub.f32 1.0, %v1958
  %v1960 = vmul.f32 %v1957, %v1959
  %v1961 = vadd.f32 %v1957, %v1960
  %vm1962 = vweird.f32 %v1956
  %vm1963 = vweird.f32 %v1957
  %vm1964 = vmor %vm1962, %vm1963
  %v1965 = vsel %vm1964, %v1957, %v1961
  %v1966 = vand.u32 2147483647, %v1956
  %vm1967 = vcmp.eq.f32.partialorder %v1966, 8.507059e+37
  %v1968 = vand.u32 %v1956, 2147483648
  %v1969 = vor.u32 1.1754944e-38, %v1968
  %v1970 = vsel %vm1967, %v1969, %v1965
  %v1971 = vmul.f32 1.0, %v1970
  %v1972 = vtanh.pop %v1844
  %v1973 = vxor.u32 %v1845, 2147483648
  %v1974 = vmul.f32 %v1973, 1.442695
  %v1975 = vpow.pop %v1974
  %v1976 = vadd.f32 %v1975, 1.0
  %v1977 = vrcp.pop %v1976
  %v1978 = vmul.f32 %v1976, %v1977
  %v1979 = vsub.f32 1.0, %v1978
  %v1980 = vmul.f32 %v1977, %v1979
  %v1981 = vadd.f32 %v1977, %v1980
  %vm1982 = vweird.f32 %v1976
  %vm1983 = vweird.f32 %v1977
  %vm1984 = vmor %vm1982, %vm1983
  %v1985 = vsel %vm1984, %v1977, %v1981
  %v1986 = vand.u32 2147483647, %v1976
  %vm1987 = vcmp.eq.f32.partialorder %v1986, 8.507059e+37
  %v1988 = vand.u32 %v1976, 2147483648
  %v1989 = vor.u32 1.1754944e-38, %v1988
  %v1990 = vsel %vm1987, %v1989, %v1985
  %v1991 = vmul.f32 1.0, %v1990
  %v1992 = vmul.f32 %v1971, %v1755
  %v1993 = vmul.f32 %v1952, %v1972
  %v1994 = vadd.f32 %v1992, %v1993
  %v1995 = vtanh.pop %v1994
  %v1996 = vmul.f32 %v1991, %v1995
  %v1997 = vxor.u32 %v1930, 2147483648
  %v1998 = vmul.f32 %v1997, 1.442695
  %v1999 = vpow.pop %v1998
  %v2000 = vadd.f32 %v1999, 1.0
  %v2001 = vrcp.pop %v2000
  %v2002 = vmul.f32 %v2000, %v2001
  %v2003 = vsub.f32 1.0, %v2002
  %v2004 = vmul.f32 %v2001, %v2003
  %v2005 = vadd.f32 %v2001, %v2004
  %vm2006 = vweird.f32 %v2000
  %vm2007 = vweird.f32 %v2001
  %vm2008 = vmor %vm2006, %vm2007
  %v2009 = vsel %vm2008, %v2001, %v2005
  %v2010 = vand.u32 2147483647, %v2000
  %vm2011 = vcmp.eq.f32.partialorder %v2010, 8.507059e+37
  %v2012 = vand.u32 %v2000, 2147483648
  %v2013 = vor.u32 1.1754944e-38, %v2012
  %v2014 = vsel %vm2011, %v2013, %v2009
  %v2015 = vmul.f32 1.0, %v2014
  %v2016 = vxor.u32 %v1931, 2147483648
  %v2017 = vmul.f32 %v2016, 1.442695
  %v2018 = vpow.pop %v2017
  %v2019 = vadd.f32 %v2018, 1.0
  %v2020 = vrcp.pop %v2019
  %v2021 = vmul.f32 %v2019, %v2020
  %v2022 = vsub.f32 1.0, %v2021
  %v2023 = vmul.f32 %v2020, %v2022
  %v2024 = vadd.f32 %v2020, %v2023
  %vm2025 = vweird.f32 %v2019
  %vm2026 = vweird.f32 %v2020
  %vm2027 = vmor %vm2025, %vm2026
  %v2028 = vsel %vm2027, %v2020, %v2024
  %v2029 = vand.u32 2147483647, %v2019
  %vm2030 = vcmp.eq.f32.partialorder %v2029, 8.507059e+37
  %v2031 = vand.u32 %v2019, 2147483648
  %v2032 = vor.u32 1.1754944e-38, %v2031
  %v2033 = vsel %vm2030, %v2032, %v2028
  %v2034 = vmul.f32 1.0, %v2033
  %v2035 = vtanh.pop %v1932
  %v2036 = vxor.u32 %v1933, 2147483648
  %v2037 = vmul.f32 %v2036, 1.442695
  %v2038 = vpow.pop %v2037
  %v2039 = vadd.f32 %v2038, 1.0
  %v2040 = vrcp.pop %v2039
  %v2041 = vmul.f32 %v2039, %v2040
  %v2042 = vsub.f32 1.0, %v2041
  %v2043 = vmul.f32 %v2040, %v2042
  %v2044 = vadd.f32 %v2040, %v2043
  %vm2045 = vweird.f32 %v2039
  %vm2046 = vweird.f32 %v2040
  %vm2047 = vmor %vm2045, %vm2046
  %v2048 = vsel %vm2047, %v2040, %v2044
  %v2049 = vand.u32 2147483647, %v2039
  %vm2050 = vcmp.eq.f32.partialorder %v2049, 8.507059e+37
  %v2051 = vand.u32 %v2039, 2147483648
  %v2052 = vor.u32 1.1754944e-38, %v2051
  %v2053 = vsel %vm2050, %v2052, %v2048
  %v2054 = vmul.f32 1.0, %v2053
  %v2055 = vmul.f32 %v2034, %v1757
  %v2056 = vmul.f32 %v2015, %v2035
  %v2057 = vadd.f32 %v2055, %v2056
  %v2058 = vtanh.pop %v2057
  %v2059 = vmul.f32 %v2054, %v2058
  %v2060 = vsel %vm1114, %v1996, 0.0
  %2061 = vst [vmem:[%s1116] sm:$0xff] %v2060
  %v2062 = vsel %vm1106, %v2059, 0.0
  %2063 = vst [vmem:[%s1108 + $0x8] sm:$0xff] %v2062
  %v2064 = vsel %vm1114, %v1996, %v1754
  %v2065 = vsel %vm1114, %v1994, %v1755
  %v2066 = vsel %vm1106, %v2059, %v1756
  %v2067 = vsel %vm1106, %v2057, %v1757
  %v2068 = vld [vmem:[%s561] sm:$0xff]
  %v2069 = vld [vmem:[%s561 + $0x8] sm:$0xff]
  %v2070 = vld [vmem:[%s561 + $0x10] sm:$0xff]
  %v2071 = vld [vmem:[%s561 + $0x18] sm:$0xff]
  %2072 = vmatpush.msra.mxu0 %v79
  %2073 = vmatpush.msra.mxu0 %v75
  %2074 = vmatpush.msra.mxu0 %v71
  %2075 = vmatpush.msra.mxu0 %v67
  %2076 = vmatpush.msra.mxu0 %v63
  %2077 = vmatpush.msra.mxu0 %v59
  %2078 = vmatpush.msra.mxu0 %v55
  %2079 = vmatpush.msra.mxu0 %v51
  %2080 = vmatpush.msra.mxu0 %v47
  %2081 = vmatpush.msra.mxu0 %v43
  %2082 = vmatpush.msra.mxu0 %v39
  %2083 = vmatpush.msra.mxu0 %v35
  %2084 = vmatpush.msra.mxu0 %v31
  %2085 = vmatpush.msra.mxu0 %v27
  %2086 = vmatpush.msra.mxu0 %v23
  %2087 = vmatpush.msra.mxu0 %v19
  %2088 = vmatmul.f32.gmra.mxu0 %v2064
  %v2089 = vpop.f32.mrf.mxu0
  %v2090 = vadd.f32 0.0, %v2089
  %2091 = vdwg.mxu0
  %2092 = vmatpush.msra.mxu0 %v80
  %2093 = vmatpush.msra.mxu0 %v76
  %2094 = vmatpush.msra.mxu0 %v72
  %2095 = vmatpush.msra.mxu0 %v68
  %2096 = vmatpush.msra.mxu0 %v64
  %2097 = vmatpush.msra.mxu0 %v60
  %2098 = vmatpush.msra.mxu0 %v56
  %2099 = vmatpush.msra.mxu0 %v52
  %2100 = vmatpush.msra.mxu0 %v48
  %2101 = vmatpush.msra.mxu0 %v44
  %2102 = vmatpush.msra.mxu0 %v40
  %2103 = vmatpush.msra.mxu0 %v36
  %2104 = vmatpush.msra.mxu0 %v32
  %2105 = vmatpush.msra.mxu0 %v28
  %2106 = vmatpush.msra.mxu0 %v24
  %2107 = vmatpush.msra.mxu0 %v20
  %2108 = vmatmul.f32.gmra.mxu0 %v2064
  %v2109 = vpop.f32.mrf.mxu0
  %v2110 = vadd.f32 0.0, %v2109
  %2111 = vdwg.mxu0
  %2112 = vmatpush.msra.mxu0 %v81
  %2113 = vmatpush.msra.mxu0 %v77
  %2114 = vmatpush.msra.mxu0 %v73
  %2115 = vmatpush.msra.mxu0 %v69
  %2116 = vmatpush.msra.mxu0 %v65
  %2117 = vmatpush.msra.mxu0 %v61
  %2118 = vmatpush.msra.mxu0 %v57
  %2119 = vmatpush.msra.mxu0 %v53
  %2120 = vmatpush.msra.mxu0 %v49
  %2121 = vmatpush.msra.mxu0 %v45
  %2122 = vmatpush.msra.mxu0 %v41
  %2123 = vmatpush.msra.mxu0 %v37
  %2124 = vmatpush.msra.mxu0 %v33
  %2125 = vmatpush.msra.mxu0 %v29
  %2126 = vmatpush.msra.mxu0 %v25
  %2127 = vmatpush.msra.mxu0 %v21
  %2128 = vmatmul.f32.gmra.mxu0 %v2064
  %v2129 = vpop.f32.mrf.mxu0
  %v2130 = vadd.f32 0.0, %v2129
  %2131 = vdwg.mxu0
  %2132 = vmatpush.msra.mxu0 %v82
  %2133 = vmatpush.msra.mxu0 %v78
  %2134 = vmatpush.msra.mxu0 %v74
  %2135 = vmatpush.msra.mxu0 %v70
  %2136 = vmatpush.msra.mxu0 %v66
  %2137 = vmatpush.msra.mxu0 %v62
  %2138 = vmatpush.msra.mxu0 %v58
  %2139 = vmatpush.msra.mxu0 %v54
  %2140 = vmatpush.msra.mxu0 %v50
  %2141 = vmatpush.msra.mxu0 %v46
  %2142 = vmatpush.msra.mxu0 %v42
  %2143 = vmatpush.msra.mxu0 %v38
  %2144 = vmatpush.msra.mxu0 %v34
  %2145 = vmatpush.msra.mxu0 %v30
  %2146 = vmatpush.msra.mxu0 %v26
  %2147 = vmatpush.msra.mxu0 %v22
  %2148 = vmatmul.f32.gmra.mxu0 %v2064
  %v2149 = vpop.f32.mrf.mxu0
  %v2150 = vadd.f32 0.0, %v2149
  %2151 = vdwg.mxu0
  %v2152 = vadd.f32 %v2068, %v2090
  %v2153 = vadd.f32 %v2069, %v2110
  %v2154 = vadd.f32 %v2070, %v2130
  %v2155 = vadd.f32 %v2071, %v2150
  %v2156 = vld [vmem:[%s472 + $0x20] sm:$0xff]
  %v2157 = vld [vmem:[%s472 + $0x28] sm:$0xff]
  %v2158 = vld [vmem:[%s472 + $0x30] sm:$0xff]
  %v2159 = vld [vmem:[%s472 + $0x38] sm:$0xff]
  %2160 = vmatpush.msra.mxu0 %v143
  %2161 = vmatpush.msra.mxu0 %v139
  %2162 = vmatpush.msra.mxu0 %v135
  %2163 = vmatpush.msra.mxu0 %v131
  %2164 = vmatpush.msra.mxu0 %v127
  %2165 = vmatpush.msra.mxu0 %v123
  %2166 = vmatpush.msra.mxu0 %v119
  %2167 = vmatpush.msra.mxu0 %v115
  %2168 = vmatpush.msra.mxu0 %v111
  %2169 = vmatpush.msra.mxu0 %v107
  %2170 = vmatpush.msra.mxu0 %v103
  %2171 = vmatpush.msra.mxu0 %v99
  %2172 = vmatpush.msra.mxu0 %v95
  %2173 = vmatpush.msra.mxu0 %v91
  %2174 = vmatpush.msra.mxu0 %v87
  %2175 = vmatpush.msra.mxu0 %v83
  %2176 = vmatmul.f32.gmra.mxu0 %v2066
  %v2177 = vpop.f32.mrf.mxu0
  %v2178 = vadd.f32 0.0, %v2177
  %2179 = vdwg.mxu0
  %2180 = vmatpush.msra.mxu0 %v144
  %2181 = vmatpush.msra.mxu0 %v140
  %2182 = vmatpush.msra.mxu0 %v136
  %2183 = vmatpush.msra.mxu0 %v132
  %2184 = vmatpush.msra.mxu0 %v128
  %2185 = vmatpush.msra.mxu0 %v124
  %2186 = vmatpush.msra.mxu0 %v120
  %2187 = vmatpush.msra.mxu0 %v116
  %2188 = vmatpush.msra.mxu0 %v112
  %2189 = vmatpush.msra.mxu0 %v108
  %2190 = vmatpush.msra.mxu0 %v104
  %2191 = vmatpush.msra.mxu0 %v100
  %2192 = vmatpush.msra.mxu0 %v96
  %2193 = vmatpush.msra.mxu0 %v92
  %2194 = vmatpush.msra.mxu0 %v88
  %2195 = vmatpush.msra.mxu0 %v84
  %2196 = vmatmul.f32.gmra.mxu0 %v2066
  %v2197 = vpop.f32.mrf.mxu0
  %v2198 = vadd.f32 0.0, %v2197
  %2199 = vdwg.mxu0
  %2200 = vmatpush.msra.mxu0 %v145
  %2201 = vmatpush.msra.mxu0 %v141
  %2202 = vmatpush.msra.mxu0 %v137
  %2203 = vmatpush.msra.mxu0 %v133
  %2204 = vmatpush.msra.mxu0 %v129
  %2205 = vmatpush.msra.mxu0 %v125
  %2206 = vmatpush.msra.mxu0 %v121
  %2207 = vmatpush.msra.mxu0 %v117
  %2208 = vmatpush.msra.mxu0 %v113
  %2209 = vmatpush.msra.mxu0 %v109
  %2210 = vmatpush.msra.mxu0 %v105
  %2211 = vmatpush.msra.mxu0 %v101
  %2212 = vmatpush.msra.mxu0 %v97
  %2213 = vmatpush.msra.mxu0 %v93
  %2214 = vmatpush.msra.mxu0 %v89
  %2215 = vmatpush.msra.mxu0 %v85
  %2216 = vmatmul.f32.gmra.mxu0 %v2066
  %v2217 = vpop.f32.mrf.mxu0
  %v2218 = vadd.f32 0.0, %v2217
  %2219 = vdwg.mxu0
  %2220 = vmatpush.msra.mxu0 %v146
  %2221 = vmatpush.msra.mxu0 %v142
  %2222 = vmatpush.msra.mxu0 %v138
  %2223 = vmatpush.msra.mxu0 %v134
  %2224 = vmatpush.msra.mxu0 %v130
  %2225 = vmatpush.msra.mxu0 %v126
  %2226 = vmatpush.msra.mxu0 %v122
  %2227 = vmatpush.msra.mxu0 %v118
  %2228 = vmatpush.msra.mxu0 %v114
  %2229 = vmatpush.msra.mxu0 %v110
  %2230 = vmatpush.msra.mxu0 %v106
  %2231 = vmatpush.msra.mxu0 %v102
  %2232 = vmatpush.msra.mxu0 %v98
  %2233 = vmatpush.msra.mxu0 %v94
  %2234 = vmatpush.msra.mxu0 %v90
  %2235 = vmatpush.msra.mxu0 %v86
  %2236 = vmatmul.f32.gmra.mxu0 %v2066
  %v2237 = vpop.f32.mrf.mxu0
  %v2238 = vadd.f32 0.0, %v2237
  %2239 = vdwg.mxu0
  %v2240 = vadd.f32 %v2156, %v2178
  %v2241 = vadd.f32 %v2157, %v2198
  %v2242 = vadd.f32 %v2158, %v2218
  %v2243 = vadd.f32 %v2159, %v2238
  %v2244 = vxor.u32 %v2152, 2147483648
  %v2245 = vmul.f32 %v2244, 1.442695
  %v2246 = vpow.pop %v2245
  %v2247 = vadd.f32 %v2246, 1.0
  %v2248 = vrcp.pop %v2247
  %v2249 = vmul.f32 %v2247, %v2248
  %v2250 = vsub.f32 1.0, %v2249
  %v2251 = vmul.f32 %v2248, %v2250
  %v2252 = vadd.f32 %v2248, %v2251
  %vm2253 = vweird.f32 %v2247
  %vm2254 = vweird.f32 %v2248
  %vm2255 = vmor %vm2253, %vm2254
  %v2256 = vsel %vm2255, %v2248, %v2252
  %v2257 = vand.u32 2147483647, %v2247
  %vm2258 = vcmp.eq.f32.partialorder %v2257, 8.507059e+37
  %v2259 = vand.u32 %v2247, 2147483648
  %v2260 = vor.u32 1.1754944e-38, %v2259
  %v2261 = vsel %vm2258, %v2260, %v2256
  %v2262 = vmul.f32 1.0, %v2261
  %v2263 = vxor.u32 %v2153, 2147483648
  %v2264 = vmul.f32 %v2263, 1.442695
  %v2265 = vpow.pop %v2264
  %v2266 = vadd.f32 %v2265, 1.0
  %v2267 = vrcp.pop %v2266
  %v2268 = vmul.f32 %v2266, %v2267
  %v2269 = vsub.f32 1.0, %v2268
  %v2270 = vmul.f32 %v2267, %v2269
  %v2271 = vadd.f32 %v2267, %v2270
  %vm2272 = vweird.f32 %v2266
  %vm2273 = vweird.f32 %v2267
  %vm2274 = vmor %vm2272, %vm2273
  %v2275 = vsel %vm2274, %v2267, %v2271
  %v2276 = vand.u32 2147483647, %v2266
  %vm2277 = vcmp.eq.f32.partialorder %v2276, 8.507059e+37
  %v2278 = vand.u32 %v2266, 2147483648
  %v2279 = vor.u32 1.1754944e-38, %v2278
  %v2280 = vsel %vm2277, %v2279, %v2275
  %v2281 = vmul.f32 1.0, %v2280
  %v2282 = vtanh.pop %v2154
  %v2283 = vxor.u32 %v2155, 2147483648
  %v2284 = vmul.f32 %v2283, 1.442695
  %v2285 = vpow.pop %v2284
  %v2286 = vadd.f32 %v2285, 1.0
  %v2287 = vrcp.pop %v2286
  %v2288 = vmul.f32 %v2286, %v2287
  %v2289 = vsub.f32 1.0, %v2288
  %v2290 = vmul.f32 %v2287, %v2289
  %v2291 = vadd.f32 %v2287, %v2290
  %vm2292 = vweird.f32 %v2286
  %vm2293 = vweird.f32 %v2287
  %vm2294 = vmor %vm2292, %vm2293
  %v2295 = vsel %vm2294, %v2287, %v2291
  %v2296 = vand.u32 2147483647, %v2286
  %vm2297 = vcmp.eq.f32.partialorder %v2296, 8.507059e+37
  %v2298 = vand.u32 %v2286, 2147483648
  %v2299 = vor.u32 1.1754944e-38, %v2298
  %v2300 = vsel %vm2297, %v2299, %v2295
  %v2301 = vmul.f32 1.0, %v2300
  %v2302 = vmul.f32 %v2281, %v2065
  %v2303 = vmul.f32 %v2262, %v2282
  %v2304 = vadd.f32 %v2302, %v2303
  %v2305 = vtanh.pop %v2304
  %v2306 = vmul.f32 %v2301, %v2305
  %v2307 = vxor.u32 %v2240, 2147483648
  %v2308 = vmul.f32 %v2307, 1.442695
  %v2309 = vpow.pop %v2308
  %v2310 = vadd.f32 %v2309, 1.0
  %v2311 = vrcp.pop %v2310
  %v2312 = vmul.f32 %v2310, %v2311
  %v2313 = vsub.f32 1.0, %v2312
  %v2314 = vmul.f32 %v2311, %v2313
  %v2315 = vadd.f32 %v2311, %v2314
  %vm2316 = vweird.f32 %v2310
  %vm2317 = vweird.f32 %v2311
  %vm2318 = vmor %vm2316, %vm2317
  %v2319 = vsel %vm2318, %v2311, %v2315
  %v2320 = vand.u32 2147483647, %v2310
  %vm2321 = vcmp.eq.f32.partialorder %v2320, 8.507059e+37
  %v2322 = vand.u32 %v2310, 2147483648
  %v2323 = vor.u32 1.1754944e-38, %v2322
  %v2324 = vsel %vm2321, %v2323, %v2319
  %v2325 = vmul.f32 1.0, %v2324
  %v2326 = vxor.u32 %v2241, 2147483648
  %v2327 = vmul.f32 %v2326, 1.442695
  %v2328 = vpow.pop %v2327
  %v2329 = vadd.f32 %v2328, 1.0
  %v2330 = vrcp.pop %v2329
  %v2331 = vmul.f32 %v2329, %v2330
  %v2332 = vsub.f32 1.0, %v2331
  %v2333 = vmul.f32 %v2330, %v2332
  %v2334 = vadd.f32 %v2330, %v2333
  %vm2335 = vweird.f32 %v2329
  %vm2336 = vweird.f32 %v2330
  %vm2337 = vmor %vm2335, %vm2336
  %v2338 = vsel %vm2337, %v2330, %v2334
  %v2339 = vand.u32 2147483647, %v2329
  %vm2340 = vcmp.eq.f32.partialorder %v2339, 8.507059e+37
  %v2341 = vand.u32 %v2329, 2147483648
  %v2342 = vor.u32 1.1754944e-38, %v2341
  %v2343 = vsel %vm2340, %v2342, %v2338
  %v2344 = vmul.f32 1.0, %v2343
  %v2345 = vtanh.pop %v2242
  %v2346 = vxor.u32 %v2243, 2147483648
  %v2347 = vmul.f32 %v2346, 1.442695
  %v2348 = vpow.pop %v2347
  %v2349 = vadd.f32 %v2348, 1.0
  %v2350 = vrcp.pop %v2349
  %v2351 = vmul.f32 %v2349, %v2350
  %v2352 = vsub.f32 1.0, %v2351
  %v2353 = vmul.f32 %v2350, %v2352
  %v2354 = vadd.f32 %v2350, %v2353
  %vm2355 = vweird.f32 %v2349
  %vm2356 = vweird.f32 %v2350
  %vm2357 = vmor %vm2355, %vm2356
  %v2358 = vsel %vm2357, %v2350, %v2354
  %v2359 = vand.u32 2147483647, %v2349
  %vm2360 = vcmp.eq.f32.partialorder %v2359, 8.507059e+37
  %v2361 = vand.u32 %v2349, 2147483648
  %v2362 = vor.u32 1.1754944e-38, %v2361
  %v2363 = vsel %vm2360, %v2362, %v2358
  %v2364 = vmul.f32 1.0, %v2363
  %v2365 = vmul.f32 %v2344, %v2067
  %v2366 = vmul.f32 %v2325, %v2345
  %v2367 = vadd.f32 %v2365, %v2366
  %v2368 = vtanh.pop %v2367
  %v2369 = vmul.f32 %v2364, %v2368
  %v2370 = vsel %vm788, %v2306, 0.0
  %2371 = vst [vmem:[%s790] sm:$0xff] %v2370
  %v2372 = vsel %vm780, %v2369, 0.0
  %2373 = vst [vmem:[%s782 + $0x8] sm:$0xff] %v2372
  %v2374 = vsel %vm788, %v2306, %v2064
  %v2375 = vsel %vm788, %v2304, %v2065
  %v2376 = vsel %vm780, %v2369, %v2066
  %v2377 = vsel %vm780, %v2367, %v2067
  %v2378 = vld [vmem:[%s238] sm:$0xff]
  %v2379 = vld [vmem:[%s238 + $0x8] sm:$0xff]
  %v2380 = vld [vmem:[%s238 + $0x10] sm:$0xff]
  %v2381 = vld [vmem:[%s238 + $0x18] sm:$0xff]
  %2382 = vmatpush.msra.mxu0 %v79
  %2383 = vmatpush.msra.mxu0 %v75
  %2384 = vmatpush.msra.mxu0 %v71
  %2385 = vmatpush.msra.mxu0 %v67
  %2386 = vmatpush.msra.mxu0 %v63
  %2387 = vmatpush.msra.mxu0 %v59
  %2388 = vmatpush.msra.mxu0 %v55
  %2389 = vmatpush.msra.mxu0 %v51
  %2390 = vmatpush.msra.mxu0 %v47
  %2391 = vmatpush.msra.mxu0 %v43
  %2392 = vmatpush.msra.mxu0 %v39
  %2393 = vmatpush.msra.mxu0 %v35
  %2394 = vmatpush.msra.mxu0 %v31
  %2395 = vmatpush.msra.mxu0 %v27
  %2396 = vmatpush.msra.mxu0 %v23
  %2397 = vmatpush.msra.mxu0 %v19
  %2398 = vmatmul.f32.gmra.mxu0 %v2374
  %v2399 = vpop.f32.mrf.mxu0
  %v2400 = vadd.f32 0.0, %v2399
  %2401 = vdwg.mxu0
  %2402 = vmatpush.msra.mxu0 %v80
  %2403 = vmatpush.msra.mxu0 %v76
  %2404 = vmatpush.msra.mxu0 %v72
  %2405 = vmatpush.msra.mxu0 %v68
  %2406 = vmatpush.msra.mxu0 %v64
  %2407 = vmatpush.msra.mxu0 %v60
  %2408 = vmatpush.msra.mxu0 %v56
  %2409 = vmatpush.msra.mxu0 %v52
  %2410 = vmatpush.msra.mxu0 %v48
  %2411 = vmatpush.msra.mxu0 %v44
  %2412 = vmatpush.msra.mxu0 %v40
  %2413 = vmatpush.msra.mxu0 %v36
  %2414 = vmatpush.msra.mxu0 %v32
  %2415 = vmatpush.msra.mxu0 %v28
  %2416 = vmatpush.msra.mxu0 %v24
  %2417 = vmatpush.msra.mxu0 %v20
  %2418 = vmatmul.f32.gmra.mxu0 %v2374
  %v2419 = vpop.f32.mrf.mxu0
  %v2420 = vadd.f32 0.0, %v2419
  %2421 = vdwg.mxu0
  %2422 = vmatpush.msra.mxu0 %v81
  %2423 = vmatpush.msra.mxu0 %v77
  %2424 = vmatpush.msra.mxu0 %v73
  %2425 = vmatpush.msra.mxu0 %v69
  %2426 = vmatpush.msra.mxu0 %v65
  %2427 = vmatpush.msra.mxu0 %v61
  %2428 = vmatpush.msra.mxu0 %v57
  %2429 = vmatpush.msra.mxu0 %v53
  %2430 = vmatpush.msra.mxu0 %v49
  %2431 = vmatpush.msra.mxu0 %v45
  %2432 = vmatpush.msra.mxu0 %v41
  %2433 = vmatpush.msra.mxu0 %v37
  %2434 = vmatpush.msra.mxu0 %v33
  %2435 = vmatpush.msra.mxu0 %v29
  %2436 = vmatpush.msra.mxu0 %v25
  %2437 = vmatpush.msra.mxu0 %v21
  %2438 = vmatmul.f32.gmra.mxu0 %v2374
  %v2439 = vpop.f32.mrf.mxu0
  %v2440 = vadd.f32 0.0, %v2439
  %2441 = vdwg.mxu0
  %2442 = vmatpush.msra.mxu0 %v82
  %2443 = vmatpush.msra.mxu0 %v78
  %2444 = vmatpush.msra.mxu0 %v74
  %2445 = vmatpush.msra.mxu0 %v70
  %2446 = vmatpush.msra.mxu0 %v66
  %2447 = vmatpush.msra.mxu0 %v62
  %2448 = vmatpush.msra.mxu0 %v58
  %2449 = vmatpush.msra.mxu0 %v54
  %2450 = vmatpush.msra.mxu0 %v50
  %2451 = vmatpush.msra.mxu0 %v46
  %2452 = vmatpush.msra.mxu0 %v42
  %2453 = vmatpush.msra.mxu0 %v38
  %2454 = vmatpush.msra.mxu0 %v34
  %2455 = vmatpush.msra.mxu0 %v30
  %2456 = vmatpush.msra.mxu0 %v26
  %2457 = vmatpush.msra.mxu0 %v22
  %2458 = vmatmul.f32.gmra.mxu0 %v2374
  %v2459 = vpop.f32.mrf.mxu0
  %v2460 = vadd.f32 0.0, %v2459
  %2461 = vdwg.mxu0
  %v2462 = vadd.f32 %v2378, %v2400
  %v2463 = vadd.f32 %v2379, %v2420
  %v2464 = vadd.f32 %v2380, %v2440
  %v2465 = vadd.f32 %v2381, %v2460
  %v2466 = vld [vmem:[%s0 + $0x20] sm:$0xff]
  %v2467 = vld [vmem:[%s0 + $0x28] sm:$0xff]
  %v2468 = vld [vmem:[%s0 + $0x30] sm:$0xff]
  %v2469 = vld [vmem:[%s0 + $0x38] sm:$0xff]
  %2470 = vmatpush.msra.mxu0 %v143
  %2471 = vmatpush.msra.mxu0 %v139
  %2472 = vmatpush.msra.mxu0 %v135
  %2473 = vmatpush.msra.mxu0 %v131
  %2474 = vmatpush.msra.mxu0 %v127
  %2475 = vmatpush.msra.mxu0 %v123
  %2476 = vmatpush.msra.mxu0 %v119
  %2477 = vmatpush.msra.mxu0 %v115
  %2478 = vmatpush.msra.mxu0 %v111
  %2479 = vmatpush.msra.mxu0 %v107
  %2480 = vmatpush.msra.mxu0 %v103
  %2481 = vmatpush.msra.mxu0 %v99
  %2482 = vmatpush.msra.mxu0 %v95
  %2483 = vmatpush.msra.mxu0 %v91
  %2484 = vmatpush.msra.mxu0 %v87
  %2485 = vmatpush.msra.mxu0 %v83
  %2486 = vmatmul.f32.gmra.mxu0 %v2376
  %v2487 = vpop.f32.mrf.mxu0
  %v2488 = vadd.f32 0.0, %v2487
  %2489 = vdwg.mxu0
  %2490 = vmatpush.msra.mxu0 %v144
  %2491 = vmatpush.msra.mxu0 %v140
  %2492 = vmatpush.msra.mxu0 %v136
  %2493 = vmatpush.msra.mxu0 %v132
  %2494 = vmatpush.msra.mxu0 %v128
  %2495 = vmatpush.msra.mxu0 %v124
  %2496 = vmatpush.msra.mxu0 %v120
  %2497 = vmatpush.msra.mxu0 %v116
  %2498 = vmatpush.msra.mxu0 %v112
  %2499 = vmatpush.msra.mxu0 %v108
  %2500 = vmatpush.msra.mxu0 %v104
  %2501 = vmatpush.msra.mxu0 %v100
  %2502 = vmatpush.msra.mxu0 %v96
  %2503 = vmatpush.msra.mxu0 %v92
  %2504 = vmatpush.msra.mxu0 %v88
  %2505 = vmatpush.msra.mxu0 %v84
  %2506 = vmatmul.f32.gmra.mxu0 %v2376
  %v2507 = vpop.f32.mrf.mxu0
  %v2508 = vadd.f32 0.0, %v2507
  %2509 = vdwg.mxu0
  %2510 = vmatpush.msra.mxu0 %v145
  %2511 = vmatpush.msra.mxu0 %v141
  %2512 = vmatpush.msra.mxu0 %v137
  %2513 = vmatpush.msra.mxu0 %v133
  %2514 = vmatpush.msra.mxu0 %v129
  %2515 = vmatpush.msra.mxu0 %v125
  %2516 = vmatpush.msra.mxu0 %v121
  %2517 = vmatpush.msra.mxu0 %v117
  %2518 = vmatpush.msra.mxu0 %v113
  %2519 = vmatpush.msra.mxu0 %v109
  %2520 = vmatpush.msra.mxu0 %v105
  %2521 = vmatpush.msra.mxu0 %v101
  %2522 = vmatpush.msra.mxu0 %v97
  %2523 = vmatpush.msra.mxu0 %v93
  %2524 = vmatpush.msra.mxu0 %v89
  %2525 = vmatpush.msra.mxu0 %v85
  %2526 = vmatmul.f32.gmra.mxu0 %v2376
  %v2527 = vpop.f32.mrf.mxu0
  %v2528 = vadd.f32 0.0, %v2527
  %2529 = vdwg.mxu0
  %2530 = vmatpush.msra.mxu0 %v146
  %2531 = vmatpush.msra.mxu0 %v142
  %2532 = vmatpush.msra.mxu0 %v138
  %2533 = vmatpush.msra.mxu0 %v134
  %2534 = vmatpush.msra.mxu0 %v130
  %2535 = vmatpush.msra.mxu0 %v126
  %2536 = vmatpush.msra.mxu0 %v122
  %2537 = vmatpush.msra.mxu0 %v118
  %2538 = vmatpush.msra.mxu0 %v114
  %2539 = vmatpush.msra.mxu0 %v110
  %2540 = vmatpush.msra.mxu0 %v106
  %2541 = vmatpush.msra.mxu0 %v102
  %2542 = vmatpush.msra.mxu0 %v98
  %2543 = vmatpush.msra.mxu0 %v94
  %2544 = vmatpush.msra.mxu0 %v90
  %2545 = vmatpush.msra.mxu0 %v86
  %2546 = vmatmul.f32.gmra.mxu0 %v2376
  %v2547 = vpop.f32.mrf.mxu0
  %v2548 = vadd.f32 0.0, %v2547
  %2549 = vdwg.mxu0
  %v2550 = vadd.f32 %v2466, %v2488
  %v2551 = vadd.f32 %v2467, %v2508
  %v2552 = vadd.f32 %v2468, %v2528
  %v2553 = vadd.f32 %v2469, %v2548
  %v2554 = vxor.u32 %v2462, 2147483648
  %v2555 = vmul.f32 %v2554, 1.442695
  %v2556 = vpow.pop %v2555
  %v2557 = vadd.f32 %v2556, 1.0
  %v2558 = vrcp.pop %v2557
  %v2559 = vmul.f32 %v2557, %v2558
  %v2560 = vsub.f32 1.0, %v2559
  %v2561 = vmul.f32 %v2558, %v2560
  %v2562 = vadd.f32 %v2558, %v2561
  %vm2563 = vweird.f32 %v2557
  %vm2564 = vweird.f32 %v2558
  %vm2565 = vmor %vm2563, %vm2564
  %v2566 = vsel %vm2565, %v2558, %v2562
  %v2567 = vand.u32 2147483647, %v2557
  %vm2568 = vcmp.eq.f32.partialorder %v2567, 8.507059e+37
  %v2569 = vand.u32 %v2557, 2147483648
  %v2570 = vor.u32 1.1754944e-38, %v2569
  %v2571 = vsel %vm2568, %v2570, %v2566
  %v2572 = vmul.f32 1.0, %v2571
  %v2573 = vxor.u32 %v2463, 2147483648
  %v2574 = vmul.f32 %v2573, 1.442695
  %v2575 = vpow.pop %v2574
  %v2576 = vadd.f32 %v2575, 1.0
  %v2577 = vrcp.pop %v2576
  %v2578 = vmul.f32 %v2576, %v2577
  %v2579 = vsub.f32 1.0, %v2578
  %v2580 = vmul.f32 %v2577, %v2579
  %v2581 = vadd.f32 %v2577, %v2580
  %vm2582 = vweird.f32 %v2576
  %vm2583 = vweird.f32 %v2577
  %vm2584 = vmor %vm2582, %vm2583
  %v2585 = vsel %vm2584, %v2577, %v2581
  %v2586 = vand.u32 2147483647, %v2576
  %vm2587 = vcmp.eq.f32.partialorder %v2586, 8.507059e+37
  %v2588 = vand.u32 %v2576, 2147483648
  %v2589 = vor.u32 1.1754944e-38, %v2588
  %v2590 = vsel %vm2587, %v2589, %v2585
  %v2591 = vmul.f32 1.0, %v2590
  %v2592 = vtanh.pop %v2464
  %v2593 = vxor.u32 %v2465, 2147483648
  %v2594 = vmul.f32 %v2593, 1.442695
  %v2595 = vpow.pop %v2594
  %v2596 = vadd.f32 %v2595, 1.0
  %v2597 = vrcp.pop %v2596
  %v2598 = vmul.f32 %v2596, %v2597
  %v2599 = vsub.f32 1.0, %v2598
  %v2600 = vmul.f32 %v2597, %v2599
  %v2601 = vadd.f32 %v2597, %v2600
  %vm2602 = vweird.f32 %v2596
  %vm2603 = vweird.f32 %v2597
  %vm2604 = vmor %vm2602, %vm2603
  %v2605 = vsel %vm2604, %v2597, %v2601
  %v2606 = vand.u32 2147483647, %v2596
  %vm2607 = vcmp.eq.f32.partialorder %v2606, 8.507059e+37
  %v2608 = vand.u32 %v2596, 2147483648
  %v2609 = vor.u32 1.1754944e-38, %v2608
  %v2610 = vsel %vm2607, %v2609, %v2605
  %v2611 = vmul.f32 1.0, %v2610
  %v2612 = vmul.f32 %v2591, %v2375
  %v2613 = vmul.f32 %v2572, %v2592
  %v2614 = vadd.f32 %v2612, %v2613
  %v2615 = vtanh.pop %v2614
  %v2616 = vmul.f32 %v2611, %v2615
  %v2617 = vxor.u32 %v2550, 2147483648
  %v2618 = vmul.f32 %v2617, 1.442695
  %v2619 = vpow.pop %v2618
  %v2620 = vadd.f32 %v2619, 1.0
  %v2621 = vrcp.pop %v2620
  %v2622 = vmul.f32 %v2620, %v2621
  %v2623 = vsub.f32 1.0, %v2622
  %v2624 = vmul.f32 %v2621, %v2623
  %v2625 = vadd.f32 %v2621, %v2624
  %vm2626 = vweird.f32 %v2620
  %vm2627 = vweird.f32 %v2621
  %vm2628 = vmor %vm2626, %vm2627
  %v2629 = vsel %vm2628, %v2621, %v2625
  %v2630 = vand.u32 2147483647, %v2620
  %vm2631 = vcmp.eq.f32.partialorder %v2630, 8.507059e+37
  %v2632 = vand.u32 %v2620, 2147483648
  %v2633 = vor.u32 1.1754944e-38, %v2632
  %v2634 = vsel %vm2631, %v2633, %v2629
  %v2635 = vmul.f32 1.0, %v2634
  %v2636 = vxor.u32 %v2551, 2147483648
  %v2637 = vmul.f32 %v2636, 1.442695
  %v2638 = vpow.pop %v2637
  %v2639 = vadd.f32 %v2638, 1.0
  %v2640 = vrcp.pop %v2639
  %v2641 = vmul.f32 %v2639, %v2640
  %v2642 = vsub.f32 1.0, %v2641
  %v2643 = vmul.f32 %v2640, %v2642
  %v2644 = vadd.f32 %v2640, %v2643
  %vm2645 = vweird.f32 %v2639
  %vm2646 = vweird.f32 %v2640
  %vm2647 = vmor %vm2645, %vm2646
  %v2648 = vsel %vm2647, %v2640, %v2644
  %v2649 = vand.u32 2147483647, %v2639
  %vm2650 = vcmp.eq.f32.partialorder %v2649, 8.507059e+37
  %v2651 = vand.u32 %v2639, 2147483648
  %v2652 = vor.u32 1.1754944e-38, %v2651
  %v2653 = vsel %vm2650, %v2652, %v2648
  %v2654 = vmul.f32 1.0, %v2653
  %v2655 = vtanh.pop %v2552
  %v2656 = vxor.u32 %v2553, 2147483648
  %v2657 = vmul.f32 %v2656, 1.442695
  %v2658 = vpow.pop %v2657
  %v2659 = vadd.f32 %v2658, 1.0
  %v2660 = vrcp.pop %v2659
  %v2661 = vmul.f32 %v2659, %v2660
  %v2662 = vsub.f32 1.0, %v2661
  %v2663 = vmul.f32 %v2660, %v2662
  %v2664 = vadd.f32 %v2660, %v2663
  %vm2665 = vweird.f32 %v2659
  %vm2666 = vweird.f32 %v2660
  %vm2667 = vmor %vm2665, %vm2666
  %v2668 = vsel %vm2667, %v2660, %v2664
  %v2669 = vand.u32 2147483647, %v2659
  %vm2670 = vcmp.eq.f32.partialorder %v2669, 8.507059e+37
  %v2671 = vand.u32 %v2659, 2147483648
  %v2672 = vor.u32 1.1754944e-38, %v2671
  %v2673 = vsel %vm2670, %v2672, %v2668
  %v2674 = vmul.f32 1.0, %v2673
  %v2675 = vmul.f32 %v2654, %v2377
  %v2676 = vmul.f32 %v2635, %v2655
  %v2677 = vadd.f32 %v2675, %v2676
  %v2678 = vtanh.pop %v2677
  %v2679 = vmul.f32 %v2674, %v2678
  %v2680 = vsel %vm464, %v2616, 0.0
  %2681 = vst [vmem:[%s466] sm:$0xff] %v2680
  %v2682 = vsel %vm457, %v2679, 0.0
  %2683 = vst [vmem:[%s4 + $0x8] sm:$0xff] %v2682
  %v2684 = vsel %vm464, %v2616, %v2374
  %v2685 = vsel %vm457, %v2679, %v2376
  %2686 = vst [vmem:[%s5] sm:$0xff] %v2684
  %2687 = vst [vmem:[%s5 + $0x8] sm:$0xff] %v2685
  // Predicated region
  $region18: #{encoder_forward.1} parent=0 // pred_check
    _
  $region19: #{encoder_forward.1} parent=0 // pred_check_branch
    %2689 = sbr.rel (0) target = $region21
  $region20: #{encoder_forward.1} parent=0 // pred_region
    _
  $region21: #{encoder_forward.1} parent=0 // pred_fallthru
    _
  // Predicated region
  $region22: #{encoder_forward.1} parent=0 // pred_check
    _
  $region23: #{encoder_forward.1} parent=0 // pred_check_branch
    %2691 = sbr.rel (0) target = $region25
  $region24: #{encoder_forward.1} parent=0 // pred_region
    _
  $region25: #{encoder_forward.1} parent=0 // pred_fallthru
    _
  // Predicated region
  $region26: #{encoder_forward.1} parent=0 // pred_check
    _
  $region27: #{encoder_forward.1} parent=0 // pred_check_branch
    %2693 = sbr.rel (0) target = $region29
  $region28: #{encoder_forward.1} parent=0 // pred_region
    _
  $region29: #{encoder_forward.1} parent=0 // pred_fallthru
    _
  // Predicated region
  $region30: #{encoder_forward.1} parent=0 // pred_check
    _
  $region31: #{encoder_forward.1} parent=0 // pred_check_branch
    %2695 = sbr.rel (0) target = $region33
  $region32: #{encoder_forward.1} parent=0 // pred_region
    _
  $region33: #{encoder_forward.1} parent=0 // pred_fallthru
    _

</llo_original>
